<compile_context>
chip_gen: v7x
topology: tpu7x:2x2x1
jax: 0.10.0
libtpu: 0.0.40
codegen_flags: <defaults>
</compile_context>

<pallas_src>
import jax
import jax.numpy as jnp
from jax.experimental import pallas as pl
from jax.experimental.pallas import tpu as pltpu

VP_NUM = 16
IN_DIM = 512
HID1 = 1024
HID2 = 512
OUT_DIM = 3 * VP_NUM   # 48 logical outputs
OUT_PAD = 128          # lane-dense padded output width
LEAKY_SLOPE = 0.01     # PyTorch nn.LeakyReLU default negative_slope
TB_DEFAULT = 512       # batch tile: safe on v5e (16 MiB scoped VMEM), good on v6e/v7x


def _leaky_relu(x):
    return jnp.where(x >= 0, x, LEAKY_SLOPE * x)


def translate_decoder_kernel(x_ref, w1_ref, b1_ref, w2_ref, b2_ref,
                             w3_ref, b3_ref, o_ref):
    # x arrives as f32; cast to bf16 on the VPU (free under MXU slack) so the
    # HBM side only ever carries x once at 4 B/elem.
    x = x_ref[...].astype(jnp.bfloat16)

    h1 = jnp.dot(x, w1_ref[...],
                 preferred_element_type=jnp.float32) + b1_ref[...]
    h1 = _leaky_relu(h1)

    h2 = jnp.dot(h1.astype(jnp.bfloat16), w2_ref[...],
                 preferred_element_type=jnp.float32) + b2_ref[...]
    h2 = _leaky_relu(h2)

    out = jnp.dot(h2.astype(jnp.bfloat16), w3_ref[...],
                  preferred_element_type=jnp.float32) + b3_ref[...]
    o_ref[...] = jnp.tanh(out)


def _round_up(x, m):
    return ((x + m - 1) // m) * m


def translate_decoder_forward(global_features, params, *, tb=TB_DEFAULT):
    """Returns a list of vp_num arrays of shape (B, 3), matching
    translates.split(3, dim=1) in the PyTorch module."""
    w1, b1, w2, b2, w3, b3 = params
    B = global_features.shape[0]

    # Batch tiling:
    #  * small B: one grid step over the whole batch (block dim == array dim,
    #    so the (8,128) divisibility rule is satisfied exactly);
    #  * larger B: >= 2 evenly-sized grid steps (both v7x TCs get work), tile
    #    rounded up to a multiple of 8.  Pallas masks the ragged last block
    #    itself, so no wrapper-side jnp.pad pass over x is needed.
    if B <= 64:
        tb = B
        num_blocks = 1
    else:
        num_blocks = max(2, pl.cdiv(B, tb))
        tb = _round_up(pl.cdiv(B, num_blocks), 8)
        num_blocks = pl.cdiv(B, tb)

    # Weights/biases never change across the grid -> single VMEM buffer.
    resident = pl.Buffered(1)

    weight_bytes = (IN_DIM * HID1 + HID1 * HID2 + HID2 * OUT_PAD) * 2  # bf16
    bias_bytes = (HID1 + HID2 + OUT_PAD) * 4
    cost = pl.CostEstimate(
        flops=2 * B * (IN_DIM * HID1 + HID1 * HID2 + HID2 * OUT_PAD),
        transcendentals=B * OUT_PAD,
        bytes_accessed=weight_bytes + bias_bytes
        + B * IN_DIM * 4 + B * OUT_PAD * 4)

    out = pl.pallas_call(
        translate_decoder_kernel,
        out_shape=jax.ShapeDtypeStruct((B, OUT_PAD), jnp.float32),
        grid=(num_blocks,),
        in_specs=[
            # x streams per batch tile (double-buffered by Pallas), read as f32.
            pl.BlockSpec((tb, IN_DIM), lambda i: (i, 0)),
            # Weights/biases: constant index_map + single buffer -> fetched
            # once and resident in VMEM for the whole grid.
            pl.BlockSpec((IN_DIM, HID1), lambda i: (0, 0), pipeline_mode=resident),
            pl.BlockSpec((1, HID1), lambda i: (0, 0), pipeline_mode=resident),
            pl.BlockSpec((HID1, HID2), lambda i: (0, 0), pipeline_mode=resident),
            pl.BlockSpec((1, HID2), lambda i: (0, 0), pipeline_mode=resident),
            pl.BlockSpec((HID2, OUT_PAD), lambda i: (0, 0), pipeline_mode=resident),
            pl.BlockSpec((1, OUT_PAD), lambda i: (0, 0), pipeline_mode=resident),
        ],
        out_specs=pl.BlockSpec((tb, OUT_PAD), lambda i: (i, 0)),
        compiler_params=pltpu.CompilerParams(
            dimension_semantics=("parallel",)),
        cost_estimate=cost,
    )(global_features, w1, b1, w2, b2, w3, b3)

    # Glue (not hot path): drop lane padding, one reshape, then split.
    out3 = out[:, :OUT_DIM].reshape(B, VP_NUM, 3)
    return [out3[:, i, :] for i in range(VP_NUM)]


def init_params(key):
    """nn.Linear-style uniform(-1/sqrt(fan_in), +) init.
    Weights are stored in bf16 (halves HBM weight bytes); biases stay f32.
    Layer 3 is zero-padded from OUT_DIM=48 to OUT_PAD=128 lanes."""
    ks = jax.random.split(key, 6)

    def lin(kw, kb, fan_in, fan_out, pad_to=None):
        bound = 1.0 / jnp.sqrt(fan_in)
        w = jax.random.uniform(kw, (fan_in, fan_out), jnp.float32, -bound, bound)
        b = jax.random.uniform(kb, (1, fan_out), jnp.float32, -bound, bound)
        if pad_to is not None and pad_to > fan_out:
            w = jnp.pad(w, ((0, 0), (0, pad_to - fan_out)))
            b = jnp.pad(b, ((0, 0), (0, pad_to - fan_out)))
        return w.astype(jnp.bfloat16), b

    w1, b1 = lin(ks[0], ks[1], IN_DIM, HID1)
    w2, b2 = lin(ks[2], ks[3], HID1, HID2)
    w3, b3 = lin(ks[4], ks[5], HID2, OUT_DIM, pad_to=OUT_PAD)
    return (w1, b1, w2, b2, w3, b3)


def reference_forward(global_features, params, *, emulate_bf16=True):
    """Plain-JAX reference of the PyTorch forward.  With emulate_bf16=True it
    reproduces the kernel's bf16 operand casts (tight tolerance); with False
    it is the pure-f32 PyTorch-equivalent forward (loose tolerance)."""
    w1, b1, w2, b2, w3, b3 = params
    f32 = jnp.float32

    def cast(a):
        return a.astype(jnp.bfloat16).astype(f32) if emulate_bf16 else a.astype(f32)

    h = cast(global_features) @ w1.astype(f32) + b1
    h = _leaky_relu(h)
    h = cast(h) @ w2.astype(f32) + b2
    h = _leaky_relu(h)
    out = cast(h) @ w3.astype(f32) + b3
    out = jnp.tanh(out)[:, :OUT_DIM]
    return [out[:, i * 3:(i + 1) * 3] for i in range(VP_NUM)]


if __name__ == "__main__":
    key = jax.random.PRNGKey(0)
    k_x, k_p = jax.random.split(key)

    B = 2
    global_features = jax.random.normal(k_x, (B, IN_DIM), jnp.float32)
    params = init_params(k_p)

    translates = translate_decoder_forward(global_features, params)
    translates = jax.block_until_ready(translates)

    # Sanity: shapes + numeric agreement with the bf16-emulating reference
    # (tight) and with the pure-f32 PyTorch-style forward (loose, accounts
    # for bf16 weight/activation quantization).
    ref_bf16 = reference_forward(global_features, params, emulate_bf16=True)
    ref_f32 = reference_forward(global_features, params, emulate_bf16=False)
    assert len(translates) == VP_NUM
    for t, rb, rf in zip(translates, ref_bf16, ref_f32):
        assert t.shape == (B, 3)
        assert jnp.max(jnp.abs(t - rb)) < 2e-3
        assert jnp.max(jnp.abs(t - rf)) < 5e-2

    print("KERNEL_OK")
</pallas_src>

<mosaic_0001>
module attributes {stable_mosaic.version = 11 : i64} {
  func.func @translate_decoder_kernel(%arg0: i32, %arg1: memref<2x512xf32, #tpu.memory_space<vmem>>, %arg2: memref<512x1024xbf16, #tpu.memory_space<vmem>>, %arg3: memref<1x1024xf32, #tpu.memory_space<vmem>>, %arg4: memref<1024x512xbf16, #tpu.memory_space<vmem>>, %arg5: memref<1x512xf32, #tpu.memory_space<vmem>>, %arg6: memref<512x128xbf16, #tpu.memory_space<vmem>>, %arg7: memref<1x128xf32, #tpu.memory_space<vmem>>, %arg8: memref<2x128xf32, #tpu.memory_space<vmem>>) attributes {dimension_semantics = [#tpu.dimension_semantics<parallel>], iteration_bounds = array<i64: 1>, scalar_prefetch = 0 : i64, scratch_operands = 0 : i64, tpu.core_type = #tpu.core_type<tc>, window_params = [{transform_indices = @transform_0, window_bounds = array<i64: 2, 512>}, {pipeline_mode = #tpu.pipeline_mode<synchronous>, transform_indices = @transform_1, window_bounds = array<i64: 512, 1024>}, {pipeline_mode = #tpu.pipeline_mode<synchronous>, transform_indices = @transform_2, window_bounds = array<i64: 1, 1024>}, {pipeline_mode = #tpu.pipeline_mode<synchronous>, transform_indices = @transform_3, window_bounds = array<i64: 1024, 512>}, {pipeline_mode = #tpu.pipeline_mode<synchronous>, transform_indices = @transform_4, window_bounds = array<i64: 1, 512>}, {pipeline_mode = #tpu.pipeline_mode<synchronous>, transform_indices = @transform_5, window_bounds = array<i64: 512, 128>}, {pipeline_mode = #tpu.pipeline_mode<synchronous>, transform_indices = @transform_6, window_bounds = array<i64: 1, 128>}, {transform_indices = @transform_7, window_bounds = array<i64: 2, 128>}]} {
    %c0 = arith.constant 0 : index
    %c0_0 = arith.constant 0 : index
    %0 = vector.load %arg1[%c0, %c0_0] : memref<2x512xf32, #tpu.memory_space<vmem>>, vector<2x512xf32>
    %1 = arith.truncf %0 : vector<2x512xf32> to vector<2x512xbf16>
    %c0_1 = arith.constant 0 : index
    %c0_2 = arith.constant 0 : index
    %2 = vector.load %arg2[%c0_1, %c0_2] : memref<512x1024xbf16, #tpu.memory_space<vmem>>, vector<512x1024xbf16>
    %cst = arith.constant dense<0.000000e+00> : vector<2x1024xf32>
    %3 = tpu.matmul %1, %2, %cst {dimension_numbers = #tpu.dot_dimension_numbers<[1], [0], [0], [1], [0, 0, 1, 1], [], []>} : vector<2x512xbf16>, vector<512x1024xbf16>, vector<2x1024xf32> -> vector<2x1024xf32>
    %c0_3 = arith.constant 0 : index
    %c0_4 = arith.constant 0 : index
    %4 = vector.load %arg3[%c0_3, %c0_4] : memref<1x1024xf32, #tpu.memory_space<vmem>>, vector<1x1024xf32>
    %5 = vector.broadcast %4 : vector<1x1024xf32> to vector<2x1024xf32>
    %6 = arith.addf %3, %5 : vector<2x1024xf32>
    %cst_5 = arith.constant 0.000000e+00 : f32
    %7 = vector.broadcast %cst_5 : f32 to vector<2x1024xf32>
    %8 = arith.cmpf oge, %6, %7 : vector<2x1024xf32>
    %cst_6 = arith.constant 0.00999999977 : f32
    %9 = vector.broadcast %cst_6 : f32 to vector<2x1024xf32>
    %10 = arith.mulf %9, %6 : vector<2x1024xf32>
    %11 = arith.select %8, %6, %10 : vector<2x1024xi1>, vector<2x1024xf32>
    %12 = arith.truncf %11 : vector<2x1024xf32> to vector<2x1024xbf16>
    %c0_7 = arith.constant 0 : index
    %c0_8 = arith.constant 0 : index
    %13 = vector.load %arg4[%c0_7, %c0_8] : memref<1024x512xbf16, #tpu.memory_space<vmem>>, vector<1024x512xbf16>
    %cst_9 = arith.constant dense<0.000000e+00> : vector<2x512xf32>
    %14 = tpu.matmul %12, %13, %cst_9 {dimension_numbers = #tpu.dot_dimension_numbers<[1], [0], [0], [1], [0, 0, 1, 1], [], []>} : vector<2x1024xbf16>, vector<1024x512xbf16>, vector<2x512xf32> -> vector<2x512xf32>
    %c0_10 = arith.constant 0 : index
    %c0_11 = arith.constant 0 : index
    %15 = vector.load %arg5[%c0_10, %c0_11] : memref<1x512xf32, #tpu.memory_space<vmem>>, vector<1x512xf32>
    %16 = vector.broadcast %15 : vector<1x512xf32> to vector<2x512xf32>
    %17 = arith.addf %14, %16 : vector<2x512xf32>
    %cst_12 = arith.constant 0.000000e+00 : f32
    %18 = vector.broadcast %cst_12 : f32 to vector<2x512xf32>
    %19 = arith.cmpf oge, %17, %18 : vector<2x512xf32>
    %cst_13 = arith.constant 0.00999999977 : f32
    %20 = vector.broadcast %cst_13 : f32 to vector<2x512xf32>
    %21 = arith.mulf %20, %17 : vector<2x512xf32>
    %22 = arith.select %19, %17, %21 : vector<2x512xi1>, vector<2x512xf32>
    %23 = arith.truncf %22 : vector<2x512xf32> to vector<2x512xbf16>
    %c0_14 = arith.constant 0 : index
    %c0_15 = arith.constant 0 : index
    %24 = vector.load %arg6[%c0_14, %c0_15] : memref<512x128xbf16, #tpu.memory_space<vmem>>, vector<512x128xbf16>
    %cst_16 = arith.constant dense<0.000000e+00> : vector<2x128xf32>
    %25 = tpu.matmul %23, %24, %cst_16 {dimension_numbers = #tpu.dot_dimension_numbers<[1], [0], [0], [1], [0, 0, 1, 1], [], []>} : vector<2x512xbf16>, vector<512x128xbf16>, vector<2x128xf32> -> vector<2x128xf32>
    %c0_17 = arith.constant 0 : index
    %c0_18 = arith.constant 0 : index
    %26 = vector.load %arg7[%c0_17, %c0_18] : memref<1x128xf32, #tpu.memory_space<vmem>>, vector<1x128xf32>
    %27 = vector.broadcast %26 : vector<1x128xf32> to vector<2x128xf32>
    %28 = arith.addf %25, %27 : vector<2x128xf32>
    %29 = math.tanh %28 : vector<2x128xf32>
    %c0_19 = arith.constant 0 : index
    %c0_20 = arith.constant 0 : index
    %30 = vector.load %arg8[%c0_19, %c0_20] : memref<2x128xf32, #tpu.memory_space<vmem>>, vector<2x128xf32>
    tpu.vector_store %arg8[%c0_19, %c0_20], %29 {strides = array<i32>} : memref<2x128xf32, #tpu.memory_space<vmem>>, vector<2x128xf32>,
    return
  }
  func.func @transform_0(%arg0: i32) -> (i32, i32) {
    %c0_i32 = arith.constant 0 : i32
    %c0_i32_0 = arith.constant 0 : i32
    return %arg0, %c0_i32 : i32, i32
  }
  func.func @transform_1(%arg0: i32) -> (i32, i32) {
    %c0_i32 = arith.constant 0 : i32
    %c0_i32_0 = arith.constant 0 : i32
    %c0_i32_1 = arith.constant 0 : i32
    return %c0_i32, %c0_i32_0 : i32, i32
  }
  func.func @transform_2(%arg0: i32) -> (i32, i32) {
    %c0_i32 = arith.constant 0 : i32
    %c0_i32_0 = arith.constant 0 : i32
    %c0_i32_1 = arith.constant 0 : i32
    return %c0_i32, %c0_i32_0 : i32, i32
  }
  func.func @transform_3(%arg0: i32) -> (i32, i32) {
    %c0_i32 = arith.constant 0 : i32
    %c0_i32_0 = arith.constant 0 : i32
    %c0_i32_1 = arith.constant 0 : i32
    return %c0_i32, %c0_i32_0 : i32, i32
  }
  func.func @transform_4(%arg0: i32) -> (i32, i32) {
    %c0_i32 = arith.constant 0 : i32
    %c0_i32_0 = arith.constant 0 : i32
    %c0_i32_1 = arith.constant 0 : i32
    return %c0_i32, %c0_i32_0 : i32, i32
  }
  func.func @transform_5(%arg0: i32) -> (i32, i32) {
    %c0_i32 = arith.constant 0 : i32
    %c0_i32_0 = arith.constant 0 : i32
    %c0_i32_1 = arith.constant 0 : i32
    return %c0_i32, %c0_i32_0 : i32, i32
  }
  func.func @transform_6(%arg0: i32) -> (i32, i32) {
    %c0_i32 = arith.constant 0 : i32
    %c0_i32_0 = arith.constant 0 : i32
    %c0_i32_1 = arith.constant 0 : i32
    return %c0_i32, %c0_i32_0 : i32, i32
  }
  func.func @transform_7(%arg0: i32) -> (i32, i32) {
    %c0_i32 = arith.constant 0 : i32
    %c0_i32_0 = arith.constant 0 : i32
    return %arg0, %c0_i32 : i32, i32
  }
}

</mosaic_0001>

<llo_original>
// kernel: tpu_custom_call.1
$region0: #{tpu_custom_call.1}
  #allocation0 [shape = 'u32[]', space=smem, size = 0x4, offset = 0x4, fixed_abs, tag = 'smem constant byte address 0x4 - core index']
  #allocation1 [shape = 'u32[144,128]{1,0:T(1,128)}', space=vmem, size = 0x12000, scoped, tag = 'internal scratch']
  %s0 = inlined_call_operand.hbm [shape: f32[2,512], index: 0, kind: input, shape index: {}]
  %s1 = inlined_call_operand.hbm [shape: bf16[512,1024], index: 1, kind: input, shape index: {}]
  %s2 = inlined_call_operand.hbm [shape: f32[1,1024], index: 2, kind: input, shape index: {}]
  %s3 = inlined_call_operand.hbm [shape: bf16[1024,512], index: 3, kind: input, shape index: {}]
  %s4 = inlined_call_operand.vmem [shape: f32[1,512], index: 4, kind: input, shape index: {}]
  %s5 = inlined_call_operand.hbm [shape: bf16[512,128], index: 5, kind: input, shape index: {}]
  %s6 = inlined_call_operand.vmem [shape: f32[1,128], index: 6, kind: input, shape index: {}]
  %s7 = inlined_call_operand.hbm [shape: f32[2,128], index: 7, kind: output, shape index: {}]
  %s8 = sld [smem:[#allocation0]]
  $region58: #{tpu_custom_call.1} parent=0
    _
  %s10 = ssub.s32 1, %s8
  %s11 = scalar_select 0, %s10, %s8
  $region1: #{tpu_custom_call.1} parent=0
    #allocation2 [shape = 'u8[4096]{0}', space=vmem, size = 0x1000, scoped, tag = 'input window, operand 0, single buffered']
    #allocation3 [shape = 's32[1]{0}', space=sflag, size = 0x4, scoped, tag = 'scoped memory for tpu_custom_call.1']
    #allocation4 [shape = 's32[1]{0}', space=sflag, size = 0x4, scoped, tag = 'scoped memory for tpu_custom_call.1']
    #allocation5 [shape = 'u8[1048576]{0}', space=vmem, size = 0x100000, scoped, tag = 'input window, operand 1, single buffered']
    #allocation6 [shape = 's32[1]{0}', space=sflag, size = 0x4, scoped, tag = 'scoped memory for tpu_custom_call.1']
    #allocation7 [shape = 'u8[4096]{0}', space=vmem, size = 0x1000, scoped, tag = 'input window, operand 2, single buffered']
    #allocation8 [shape = 'u8[1048576]{0}', space=vmem, size = 0x100000, scoped, tag = 'input window, operand 3, single buffered']
    #allocation9 [shape = 's32[1]{0}', space=sflag, size = 0x4, scoped, tag = 'scoped memory for tpu_custom_call.1']
    #allocation10 [shape = 'u8[131072]{0}', space=vmem, size = 0x20000, scoped, tag = 'input window, operand 5, single buffered']
    #allocation11 [shape = 'u8[1024]{0}', space=vmem, size = 0x400, scoped, tag = 'output window, operand 0, single buffered']
    %12 = vsyncpa [#allocation3], 0
    %13 = vsyncpa [#allocation6], 0
    %14 = vsyncpa [#allocation9], 0
    %15 = vsyncpa [#allocation4], 0
    // Predicated region
    $region2: #{tpu_custom_call.1} parent=1 // pred_check
      _
    $region3: #{tpu_custom_call.1} parent=1 // pred_check_branch
      %17 = sbr.rel (0) target = $region5
    $region4: #{tpu_custom_call.1} parent=1 // pred_region
      %s19 = ssub.s32 128, 128
      %20 = vsyncadd [#allocation3], %s19
      %s22 = sshll.u32 [#allocation2], 4
      %s23 = int_to_ptr.vmem [resolvable:$true] %s22
      %25 = dma.hbm_to_vmem [thread:$0]  %s0, 128, %s23, [#allocation3]
    $region5: #{tpu_custom_call.1} parent=1 // pred_fallthru
      _
    // Predicated region
    $region6: #{tpu_custom_call.1} parent=1 // pred_check
      _
    $region7: #{tpu_custom_call.1} parent=1 // pred_check_branch
      %27 = sbr.rel (0) target = $region9
    $region8: #{tpu_custom_call.1} parent=1 // pred_region
      %s29 = ssub.s32 32768, 32768
      %30 = vsyncadd [#allocation6], %s29
      %s31 = sshll.u32 [#allocation5], 4
      %s32 = int_to_ptr.vmem [resolvable:$true] %s31
      %37 = dma.hbm_to_vmem [thread:$0]  %s1, 32768, %s32, [#allocation6], 512, 512, 32
    $region9: #{tpu_custom_call.1} parent=1 // pred_fallthru
      _
    // Predicated region
    $region10: #{tpu_custom_call.1} parent=1 // pred_check
      _
    $region11: #{tpu_custom_call.1} parent=1 // pred_check_branch
      %39 = sbr.rel (0) target = $region13
    $region12: #{tpu_custom_call.1} parent=1 // pred_region
      %s41 = ssub.s32 128, 128
      %42 = vsyncadd [#allocation6], %s41
      %s44 = sshll.u32 [#allocation7], 4
      %s45 = int_to_ptr.vmem [resolvable:$true] %s44
      %47 = dma.hbm_to_vmem [thread:$0]  %s2, 128, %s45, [#allocation6]
    $region13: #{tpu_custom_call.1} parent=1 // pred_fallthru
      _
    // Predicated region
    $region14: #{tpu_custom_call.1} parent=1 // pred_check
      _
    $region15: #{tpu_custom_call.1} parent=1 // pred_check_branch
      %49 = sbr.rel (0) target = $region17
    $region16: #{tpu_custom_call.1} parent=1 // pred_region
      %s51 = ssub.s32 32768, 32768
      %52 = vsyncadd [#allocation9], %s51
      %s53 = sshll.u32 [#allocation8], 4
      %s54 = int_to_ptr.vmem [resolvable:$true] %s53
      %59 = dma.hbm_to_vmem [thread:$0]  %s3, 32768, %s54, [#allocation9], 256, 256, 16
    $region17: #{tpu_custom_call.1} parent=1 // pred_fallthru
      _
    // Predicated region
    $region18: #{tpu_custom_call.1} parent=1 // pred_check
      _
    $region19: #{tpu_custom_call.1} parent=1 // pred_check_branch
      %61 = sbr.rel (0) target = $region21
    $region20: #{tpu_custom_call.1} parent=1 // pred_region
      _
    $region21: #{tpu_custom_call.1} parent=1 // pred_fallthru
      _
    // Predicated region
    $region22: #{tpu_custom_call.1} parent=1 // pred_check
      _
    $region23: #{tpu_custom_call.1} parent=1 // pred_check_branch
      %63 = sbr.rel (0) target = $region25
    $region24: #{tpu_custom_call.1} parent=1 // pred_region
      %s65 = ssub.s32 4096, 4096
      %66 = vsyncadd [#allocation9], %s65
      %s67 = sshll.u32 [#allocation10], 4
      %s68 = int_to_ptr.vmem [resolvable:$true] %s67
      %73 = dma.hbm_to_vmem [thread:$0]  %s5, 4096, %s68, [#allocation9], 64, 64, 4
    $region25: #{tpu_custom_call.1} parent=1 // pred_fallthru
      _
    // Predicated region
    $region26: #{tpu_custom_call.1} parent=1 // pred_check
      _
    $region27: #{tpu_custom_call.1} parent=1 // pred_check_branch
      %75 = sbr.rel (0) target = $region29
    $region28: #{tpu_custom_call.1} parent=1 // pred_region
      _
    $region29: #{tpu_custom_call.1} parent=1 // pred_fallthru
      _
    // Predicated region
    $region30: #{tpu_custom_call.1} parent=1 // pred_check
      _
    $region31: #{tpu_custom_call.1} parent=1 // pred_check_branch
      %77 = sbr.rel (0) target = $region33
    $region32: #{tpu_custom_call.1} parent=1 // pred_region
      %78 = dma.done [#allocation3], 128
    $region33: #{tpu_custom_call.1} parent=1 // pred_fallthru
      _
    // Predicated region
    $region34: #{tpu_custom_call.1} parent=1 // pred_check
      _
    $region35: #{tpu_custom_call.1} parent=1 // pred_check_branch
      %80 = sbr.rel (0) target = $region37
    $region36: #{tpu_custom_call.1} parent=1 // pred_region
      %81 = dma.done [#allocation6], 32768
    $region37: #{tpu_custom_call.1} parent=1 // pred_fallthru
      _
    // Predicated region
    $region38: #{tpu_custom_call.1} parent=1 // pred_check
      _
    $region39: #{tpu_custom_call.1} parent=1 // pred_check_branch
      %83 = sbr.rel (0) target = $region41
    $region40: #{tpu_custom_call.1} parent=1 // pred_region
      %84 = dma.done [#allocation6], 128
    $region41: #{tpu_custom_call.1} parent=1 // pred_fallthru
      _
    // Predicated region
    $region42: #{tpu_custom_call.1} parent=1 // pred_check
      _
    $region43: #{tpu_custom_call.1} parent=1 // pred_check_branch
      %86 = sbr.rel (0) target = $region45
    $region44: #{tpu_custom_call.1} parent=1 // pred_region
      %87 = dma.done [#allocation9], 32768
    $region45: #{tpu_custom_call.1} parent=1 // pred_fallthru
      _
    // Predicated region
    $region46: #{tpu_custom_call.1} parent=1 // pred_check
      _
    $region47: #{tpu_custom_call.1} parent=1 // pred_check_branch
      %89 = sbr.rel (0) target = $region49
    $region48: #{tpu_custom_call.1} parent=1 // pred_region
      %90 = dma.done [#allocation9], 4096
    $region49: #{tpu_custom_call.1} parent=1 // pred_fallthru
      _
    %v92 = vld [vmem:[#allocation2] sm:$0xff]
    %v94 = vcombine.high %v92, %v92
    %v96 = vunpack.c.l.s4 1983009808
    %v97 = vunpack.c.0.s8 %v96
    %v98 = vlaneseq
    %v99 = vshrl.u32 %v98, 7
    %v100 = vsub.s32 %v97, %v99
    %v101 = vrot.slane %v92, %v100
    %v103 = vunpack.c.l.s4 1983009808
    %v104 = vunpack.c.0.s8 %v103
    %v105 = vlaneseq
    %v106 = vshrl.u32 %v105, 7
    %v107 = vsub.s32 %v104, %v106
    %v108 = vrot.slane %v94, %v107
    %v109 = vcombine.high %v101, %v101
    %v110 = vcombine.high %v108, %v108
    %v115 = vpack.c.bf16 %v101, %v101
    %v116 = vpack.c.bf16 %v109, %v109
    %v117 = vpack.c.bf16 %v108, %v108
    %v118 = vpack.c.bf16 %v110, %v110
    %v119 = vld [vmem:[#allocation5] sm:$0xff]
    %v120 = vld [vmem:[#allocation5 + $0x8] sm:$0xff]
    %v121 = vld [vmem:[#allocation5 + $0x10] sm:$0xff]
    %v122 = vld [vmem:[#allocation5 + $0x18] sm:$0xff]
    %v123 = vld [vmem:[#allocation5 + $0x20] sm:$0xff]
    %v124 = vld [vmem:[#allocation5 + $0x28] sm:$0xff]
    %v125 = vld [vmem:[#allocation5 + $0x30] sm:$0xff]
    %v126 = vld [vmem:[#allocation5 + $0x38] sm:$0xff]
    %v127 = vld [vmem:[#allocation5 + $0x40] sm:$0xff]
    %v128 = vld [vmem:[#allocation5 + $0x48] sm:$0xff]
    %v129 = vld [vmem:[#allocation5 + $0x50] sm:$0xff]
    %v130 = vld [vmem:[#allocation5 + $0x58] sm:$0xff]
    %v131 = vld [vmem:[#allocation5 + $0x60] sm:$0xff]
    %v132 = vld [vmem:[#allocation5 + $0x68] sm:$0xff]
    %v133 = vld [vmem:[#allocation5 + $0x70] sm:$0xff]
    %v134 = vld [vmem:[#allocation5 + $0x78] sm:$0xff]
    %v135 = vld [vmem:[#allocation5 + $0x80] sm:$0xff]
    %v136 = vld [vmem:[#allocation5 + $0x88] sm:$0xff]
    %v137 = vld [vmem:[#allocation5 + $0x90] sm:$0xff]
    %v138 = vld [vmem:[#allocation5 + $0x98] sm:$0xff]
    %v139 = vld [vmem:[#allocation5 + $0xa0] sm:$0xff]
    %v140 = vld [vmem:[#allocation5 + $0xa8] sm:$0xff]
    %v141 = vld [vmem:[#allocation5 + $0xb0] sm:$0xff]
    %v142 = vld [vmem:[#allocation5 + $0xb8] sm:$0xff]
    %v143 = vld [vmem:[#allocation5 + $0xc0] sm:$0xff]
    %v144 = vld [vmem:[#allocation5 + $0xc8] sm:$0xff]
    %v145 = vld [vmem:[#allocation5 + $0xd0] sm:$0xff]
    %v146 = vld [vmem:[#allocation5 + $0xd8] sm:$0xff]
    %v147 = vld [vmem:[#allocation5 + $0xe0] sm:$0xff]
    %v148 = vld [vmem:[#allocation5 + $0xe8] sm:$0xff]
    %v149 = vld [vmem:[#allocation5 + $0xf0] sm:$0xff]
    %v150 = vld [vmem:[#allocation5 + $0xf8] sm:$0xff]
    %v151 = vld [vmem:[#allocation5 + $0x100] sm:$0xff]
    %v152 = vld [vmem:[#allocation5 + $0x108] sm:$0xff]
    %v153 = vld [vmem:[#allocation5 + $0x110] sm:$0xff]
    %v154 = vld [vmem:[#allocation5 + $0x118] sm:$0xff]
    %v155 = vld [vmem:[#allocation5 + $0x120] sm:$0xff]
    %v156 = vld [vmem:[#allocation5 + $0x128] sm:$0xff]
    %v157 = vld [vmem:[#allocation5 + $0x130] sm:$0xff]
    %v158 = vld [vmem:[#allocation5 + $0x138] sm:$0xff]
    %v159 = vld [vmem:[#allocation5 + $0x140] sm:$0xff]
    %v160 = vld [vmem:[#allocation5 + $0x148] sm:$0xff]
    %v161 = vld [vmem:[#allocation5 + $0x150] sm:$0xff]
    %v162 = vld [vmem:[#allocation5 + $0x158] sm:$0xff]
    %v163 = vld [vmem:[#allocation5 + $0x160] sm:$0xff]
    %v164 = vld [vmem:[#allocation5 + $0x168] sm:$0xff]
    %v165 = vld [vmem:[#allocation5 + $0x170] sm:$0xff]
    %v166 = vld [vmem:[#allocation5 + $0x178] sm:$0xff]
    %v167 = vld [vmem:[#allocation5 + $0x180] sm:$0xff]
    %v168 = vld [vmem:[#allocation5 + $0x188] sm:$0xff]
    %v169 = vld [vmem:[#allocation5 + $0x190] sm:$0xff]
    %v170 = vld [vmem:[#allocation5 + $0x198] sm:$0xff]
    %v171 = vld [vmem:[#allocation5 + $0x1a0] sm:$0xff]
    %v172 = vld [vmem:[#allocation5 + $0x1a8] sm:$0xff]
    %v173 = vld [vmem:[#allocation5 + $0x1b0] sm:$0xff]
    %v174 = vld [vmem:[#allocation5 + $0x1b8] sm:$0xff]
    %v175 = vld [vmem:[#allocation5 + $0x1c0] sm:$0xff]
    %v176 = vld [vmem:[#allocation5 + $0x1c8] sm:$0xff]
    %v177 = vld [vmem:[#allocation5 + $0x1d0] sm:$0xff]
    %v178 = vld [vmem:[#allocation5 + $0x1d8] sm:$0xff]
    %v179 = vld [vmem:[#allocation5 + $0x1e0] sm:$0xff]
    %v180 = vld [vmem:[#allocation5 + $0x1e8] sm:$0xff]
    %v181 = vld [vmem:[#allocation5 + $0x1f0] sm:$0xff]
    %v182 = vld [vmem:[#allocation5 + $0x1f8] sm:$0xff]
    %v183 = vld [vmem:[#allocation5 + $0x200] sm:$0xff]
    %v184 = vld [vmem:[#allocation5 + $0x208] sm:$0xff]
    %v185 = vld [vmem:[#allocation5 + $0x210] sm:$0xff]
    %v186 = vld [vmem:[#allocation5 + $0x218] sm:$0xff]
    %v187 = vld [vmem:[#allocation5 + $0x220] sm:$0xff]
    %v188 = vld [vmem:[#allocation5 + $0x228] sm:$0xff]
    %v189 = vld [vmem:[#allocation5 + $0x230] sm:$0xff]
    %v190 = vld [vmem:[#allocation5 + $0x238] sm:$0xff]
    %v191 = vld [vmem:[#allocation5 + $0x240] sm:$0xff]
    %v192 = vld [vmem:[#allocation5 + $0x248] sm:$0xff]
    %v193 = vld [vmem:[#allocation5 + $0x250] sm:$0xff]
    %v194 = vld [vmem:[#allocation5 + $0x258] sm:$0xff]
    %v195 = vld [vmem:[#allocation5 + $0x260] sm:$0xff]
    %v196 = vld [vmem:[#allocation5 + $0x268] sm:$0xff]
    %v197 = vld [vmem:[#allocation5 + $0x270] sm:$0xff]
    %v198 = vld [vmem:[#allocation5 + $0x278] sm:$0xff]
    %v199 = vld [vmem:[#allocation5 + $0x280] sm:$0xff]
    %v200 = vld [vmem:[#allocation5 + $0x288] sm:$0xff]
    %v201 = vld [vmem:[#allocation5 + $0x290] sm:$0xff]
    %v202 = vld [vmem:[#allocation5 + $0x298] sm:$0xff]
    %v203 = vld [vmem:[#allocation5 + $0x2a0] sm:$0xff]
    %v204 = vld [vmem:[#allocation5 + $0x2a8] sm:$0xff]
    %v205 = vld [vmem:[#allocation5 + $0x2b0] sm:$0xff]
    %v206 = vld [vmem:[#allocation5 + $0x2b8] sm:$0xff]
    %v207 = vld [vmem:[#allocation5 + $0x2c0] sm:$0xff]
    %v208 = vld [vmem:[#allocation5 + $0x2c8] sm:$0xff]
    %v209 = vld [vmem:[#allocation5 + $0x2d0] sm:$0xff]
    %v210 = vld [vmem:[#allocation5 + $0x2d8] sm:$0xff]
    %v211 = vld [vmem:[#allocation5 + $0x2e0] sm:$0xff]
    %v212 = vld [vmem:[#allocation5 + $0x2e8] sm:$0xff]
    %v213 = vld [vmem:[#allocation5 + $0x2f0] sm:$0xff]
    %v214 = vld [vmem:[#allocation5 + $0x2f8] sm:$0xff]
    %v215 = vld [vmem:[#allocation5 + $0x300] sm:$0xff]
    %v216 = vld [vmem:[#allocation5 + $0x308] sm:$0xff]
    %v217 = vld [vmem:[#allocation5 + $0x310] sm:$0xff]
    %v218 = vld [vmem:[#allocation5 + $0x318] sm:$0xff]
    %v219 = vld [vmem:[#allocation5 + $0x320] sm:$0xff]
    %v220 = vld [vmem:[#allocation5 + $0x328] sm:$0xff]
    %v221 = vld [vmem:[#allocation5 + $0x330] sm:$0xff]
    %v222 = vld [vmem:[#allocation5 + $0x338] sm:$0xff]
    %v223 = vld [vmem:[#allocation5 + $0x340] sm:$0xff]
    %v224 = vld [vmem:[#allocation5 + $0x348] sm:$0xff]
    %v225 = vld [vmem:[#allocation5 + $0x350] sm:$0xff]
    %v226 = vld [vmem:[#allocation5 + $0x358] sm:$0xff]
    %v227 = vld [vmem:[#allocation5 + $0x360] sm:$0xff]
    %v228 = vld [vmem:[#allocation5 + $0x368] sm:$0xff]
    %v229 = vld [vmem:[#allocation5 + $0x370] sm:$0xff]
    %v230 = vld [vmem:[#allocation5 + $0x378] sm:$0xff]
    %v231 = vld [vmem:[#allocation5 + $0x380] sm:$0xff]
    %v232 = vld [vmem:[#allocation5 + $0x388] sm:$0xff]
    %v233 = vld [vmem:[#allocation5 + $0x390] sm:$0xff]
    %v234 = vld [vmem:[#allocation5 + $0x398] sm:$0xff]
    %v235 = vld [vmem:[#allocation5 + $0x3a0] sm:$0xff]
    %v236 = vld [vmem:[#allocation5 + $0x3a8] sm:$0xff]
    %v237 = vld [vmem:[#allocation5 + $0x3b0] sm:$0xff]
    %v238 = vld [vmem:[#allocation5 + $0x3b8] sm:$0xff]
    %v239 = vld [vmem:[#allocation5 + $0x3c0] sm:$0xff]
    %v240 = vld [vmem:[#allocation5 + $0x3c8] sm:$0xff]
    %v241 = vld [vmem:[#allocation5 + $0x3d0] sm:$0xff]
    %v242 = vld [vmem:[#allocation5 + $0x3d8] sm:$0xff]
    %v243 = vld [vmem:[#allocation5 + $0x3e0] sm:$0xff]
    %v244 = vld [vmem:[#allocation5 + $0x3e8] sm:$0xff]
    %v245 = vld [vmem:[#allocation5 + $0x3f0] sm:$0xff]
    %v246 = vld [vmem:[#allocation5 + $0x3f8] sm:$0xff]
    %v247 = vld [vmem:[#allocation5 + $0x400] sm:$0xff]
    %v248 = vld [vmem:[#allocation5 + $0x408] sm:$0xff]
    %v249 = vld [vmem:[#allocation5 + $0x410] sm:$0xff]
    %v250 = vld [vmem:[#allocation5 + $0x418] sm:$0xff]
    %v251 = vld [vmem:[#allocation5 + $0x420] sm:$0xff]
    %v252 = vld [vmem:[#allocation5 + $0x428] sm:$0xff]
    %v253 = vld [vmem:[#allocation5 + $0x430] sm:$0xff]
    %v254 = vld [vmem:[#allocation5 + $0x438] sm:$0xff]
    %v255 = vld [vmem:[#allocation5 + $0x440] sm:$0xff]
    %v256 = vld [vmem:[#allocation5 + $0x448] sm:$0xff]
    %v257 = vld [vmem:[#allocation5 + $0x450] sm:$0xff]
    %v258 = vld [vmem:[#allocation5 + $0x458] sm:$0xff]
    %v259 = vld [vmem:[#allocation5 + $0x460] sm:$0xff]
    %v260 = vld [vmem:[#allocation5 + $0x468] sm:$0xff]
    %v261 = vld [vmem:[#allocation5 + $0x470] sm:$0xff]
    %v262 = vld [vmem:[#allocation5 + $0x478] sm:$0xff]
    %v263 = vld [vmem:[#allocation5 + $0x480] sm:$0xff]
    %v264 = vld [vmem:[#allocation5 + $0x488] sm:$0xff]
    %v265 = vld [vmem:[#allocation5 + $0x490] sm:$0xff]
    %v266 = vld [vmem:[#allocation5 + $0x498] sm:$0xff]
    %v267 = vld [vmem:[#allocation5 + $0x4a0] sm:$0xff]
    %v268 = vld [vmem:[#allocation5 + $0x4a8] sm:$0xff]
    %v269 = vld [vmem:[#allocation5 + $0x4b0] sm:$0xff]
    %v270 = vld [vmem:[#allocation5 + $0x4b8] sm:$0xff]
    %v271 = vld [vmem:[#allocation5 + $0x4c0] sm:$0xff]
    %v272 = vld [vmem:[#allocation5 + $0x4c8] sm:$0xff]
    %v273 = vld [vmem:[#allocation5 + $0x4d0] sm:$0xff]
    %v274 = vld [vmem:[#allocation5 + $0x4d8] sm:$0xff]
    %v275 = vld [vmem:[#allocation5 + $0x4e0] sm:$0xff]
    %v276 = vld [vmem:[#allocation5 + $0x4e8] sm:$0xff]
    %v277 = vld [vmem:[#allocation5 + $0x4f0] sm:$0xff]
    %v278 = vld [vmem:[#allocation5 + $0x4f8] sm:$0xff]
    %v279 = vld [vmem:[#allocation5 + $0x500] sm:$0xff]
    %v280 = vld [vmem:[#allocation5 + $0x508] sm:$0xff]
    %v281 = vld [vmem:[#allocation5 + $0x510] sm:$0xff]
    %v282 = vld [vmem:[#allocation5 + $0x518] sm:$0xff]
    %v283 = vld [vmem:[#allocation5 + $0x520] sm:$0xff]
    %v284 = vld [vmem:[#allocation5 + $0x528] sm:$0xff]
    %v285 = vld [vmem:[#allocation5 + $0x530] sm:$0xff]
    %v286 = vld [vmem:[#allocation5 + $0x538] sm:$0xff]
    %v287 = vld [vmem:[#allocation5 + $0x540] sm:$0xff]
    %v288 = vld [vmem:[#allocation5 + $0x548] sm:$0xff]
    %v289 = vld [vmem:[#allocation5 + $0x550] sm:$0xff]
    %v290 = vld [vmem:[#allocation5 + $0x558] sm:$0xff]
    %v291 = vld [vmem:[#allocation5 + $0x560] sm:$0xff]
    %v292 = vld [vmem:[#allocation5 + $0x568] sm:$0xff]
    %v293 = vld [vmem:[#allocation5 + $0x570] sm:$0xff]
    %v294 = vld [vmem:[#allocation5 + $0x578] sm:$0xff]
    %v295 = vld [vmem:[#allocation5 + $0x580] sm:$0xff]
    %v296 = vld [vmem:[#allocation5 + $0x588] sm:$0xff]
    %v297 = vld [vmem:[#allocation5 + $0x590] sm:$0xff]
    %v298 = vld [vmem:[#allocation5 + $0x598] sm:$0xff]
    %v299 = vld [vmem:[#allocation5 + $0x5a0] sm:$0xff]
    %v300 = vld [vmem:[#allocation5 + $0x5a8] sm:$0xff]
    %v301 = vld [vmem:[#allocation5 + $0x5b0] sm:$0xff]
    %v302 = vld [vmem:[#allocation5 + $0x5b8] sm:$0xff]
    %v303 = vld [vmem:[#allocation5 + $0x5c0] sm:$0xff]
    %v304 = vld [vmem:[#allocation5 + $0x5c8] sm:$0xff]
    %v305 = vld [vmem:[#allocation5 + $0x5d0] sm:$0xff]
    %v306 = vld [vmem:[#allocation5 + $0x5d8] sm:$0xff]
    %v307 = vld [vmem:[#allocation5 + $0x5e0] sm:$0xff]
    %v308 = vld [vmem:[#allocation5 + $0x5e8] sm:$0xff]
    %v309 = vld [vmem:[#allocation5 + $0x5f0] sm:$0xff]
    %v310 = vld [vmem:[#allocation5 + $0x5f8] sm:$0xff]
    %v311 = vld [vmem:[#allocation5 + $0x600] sm:$0xff]
    %v312 = vld [vmem:[#allocation5 + $0x608] sm:$0xff]
    %v313 = vld [vmem:[#allocation5 + $0x610] sm:$0xff]
    %v314 = vld [vmem:[#allocation5 + $0x618] sm:$0xff]
    %v315 = vld [vmem:[#allocation5 + $0x620] sm:$0xff]
    %v316 = vld [vmem:[#allocation5 + $0x628] sm:$0xff]
    %v317 = vld [vmem:[#allocation5 + $0x630] sm:$0xff]
    %v318 = vld [vmem:[#allocation5 + $0x638] sm:$0xff]
    %v319 = vld [vmem:[#allocation5 + $0x640] sm:$0xff]
    %v320 = vld [vmem:[#allocation5 + $0x648] sm:$0xff]
    %v321 = vld [vmem:[#allocation5 + $0x650] sm:$0xff]
    %v322 = vld [vmem:[#allocation5 + $0x658] sm:$0xff]
    %v323 = vld [vmem:[#allocation5 + $0x660] sm:$0xff]
    %v324 = vld [vmem:[#allocation5 + $0x668] sm:$0xff]
    %v325 = vld [vmem:[#allocation5 + $0x670] sm:$0xff]
    %v326 = vld [vmem:[#allocation5 + $0x678] sm:$0xff]
    %v327 = vld [vmem:[#allocation5 + $0x680] sm:$0xff]
    %v328 = vld [vmem:[#allocation5 + $0x688] sm:$0xff]
    %v329 = vld [vmem:[#allocation5 + $0x690] sm:$0xff]
    %v330 = vld [vmem:[#allocation5 + $0x698] sm:$0xff]
    %v331 = vld [vmem:[#allocation5 + $0x6a0] sm:$0xff]
    %v332 = vld [vmem:[#allocation5 + $0x6a8] sm:$0xff]
    %v333 = vld [vmem:[#allocation5 + $0x6b0] sm:$0xff]
    %v334 = vld [vmem:[#allocation5 + $0x6b8] sm:$0xff]
    %v335 = vld [vmem:[#allocation5 + $0x6c0] sm:$0xff]
    %v336 = vld [vmem:[#allocation5 + $0x6c8] sm:$0xff]
    %v337 = vld [vmem:[#allocation5 + $0x6d0] sm:$0xff]
    %v338 = vld [vmem:[#allocation5 + $0x6d8] sm:$0xff]
    %v339 = vld [vmem:[#allocation5 + $0x6e0] sm:$0xff]
    %v340 = vld [vmem:[#allocation5 + $0x6e8] sm:$0xff]
    %v341 = vld [vmem:[#allocation5 + $0x6f0] sm:$0xff]
    %v342 = vld [vmem:[#allocation5 + $0x6f8] sm:$0xff]
    %v343 = vld [vmem:[#allocation5 + $0x700] sm:$0xff]
    %v344 = vld [vmem:[#allocation5 + $0x708] sm:$0xff]
    %v345 = vld [vmem:[#allocation5 + $0x710] sm:$0xff]
    %v346 = vld [vmem:[#allocation5 + $0x718] sm:$0xff]
    %v347 = vld [vmem:[#allocation5 + $0x720] sm:$0xff]
    %v348 = vld [vmem:[#allocation5 + $0x728] sm:$0xff]
    %v349 = vld [vmem:[#allocation5 + $0x730] sm:$0xff]
    %v350 = vld [vmem:[#allocation5 + $0x738] sm:$0xff]
    %v351 = vld [vmem:[#allocation5 + $0x740] sm:$0xff]
    %v352 = vld [vmem:[#allocation5 + $0x748] sm:$0xff]
    %v353 = vld [vmem:[#allocation5 + $0x750] sm:$0xff]
    %v354 = vld [vmem:[#allocation5 + $0x758] sm:$0xff]
    %v355 = vld [vmem:[#allocation5 + $0x760] sm:$0xff]
    %v356 = vld [vmem:[#allocation5 + $0x768] sm:$0xff]
    %v357 = vld [vmem:[#allocation5 + $0x770] sm:$0xff]
    %v358 = vld [vmem:[#allocation5 + $0x778] sm:$0xff]
    %v359 = vld [vmem:[#allocation5 + $0x780] sm:$0xff]
    %v360 = vld [vmem:[#allocation5 + $0x788] sm:$0xff]
    %v361 = vld [vmem:[#allocation5 + $0x790] sm:$0xff]
    %v362 = vld [vmem:[#allocation5 + $0x798] sm:$0xff]
    %v363 = vld [vmem:[#allocation5 + $0x7a0] sm:$0xff]
    %v364 = vld [vmem:[#allocation5 + $0x7a8] sm:$0xff]
    %v365 = vld [vmem:[#allocation5 + $0x7b0] sm:$0xff]
    %v366 = vld [vmem:[#allocation5 + $0x7b8] sm:$0xff]
    %v367 = vld [vmem:[#allocation5 + $0x7c0] sm:$0xff]
    %v368 = vld [vmem:[#allocation5 + $0x7c8] sm:$0xff]
    %v369 = vld [vmem:[#allocation5 + $0x7d0] sm:$0xff]
    %v370 = vld [vmem:[#allocation5 + $0x7d8] sm:$0xff]
    %v371 = vld [vmem:[#allocation5 + $0x7e0] sm:$0xff]
    %v372 = vld [vmem:[#allocation5 + $0x7e8] sm:$0xff]
    %v373 = vld [vmem:[#allocation5 + $0x7f0] sm:$0xff]
    %v374 = vld [vmem:[#allocation5 + $0x7f8] sm:$0xff]
    %v375 = vld [vmem:[#allocation7] sm:$0xff]
    %v377 = vlaneseq
    %v378 = vshrl.u32 %v377, 7
    %v379 = vsub.s32 0, %v378
    %v380 = vrot.slane %v375, %v379
    %v381 = vlaneseq
    %v382 = vshrl.u32 %v381, 7
    %v383 = vsub.s32 1, %v382
    %v384 = vrot.slane %v375, %v383
    %v385 = vlaneseq
    %v386 = vshrl.u32 %v385, 7
    %v387 = vsub.s32 2, %v386
    %v388 = vrot.slane %v375, %v387
    %v389 = vlaneseq
    %v390 = vshrl.u32 %v389, 7
    %v391 = vsub.s32 3, %v390
    %v392 = vrot.slane %v375, %v391
    %v393 = vlaneseq
    %v394 = vshrl.u32 %v393, 7
    %v395 = vsub.s32 4, %v394
    %v396 = vrot.slane %v375, %v395
    %v397 = vlaneseq
    %v398 = vshrl.u32 %v397, 7
    %v399 = vsub.s32 5, %v398
    %v400 = vrot.slane %v375, %v399
    %v401 = vlaneseq
    %v402 = vshrl.u32 %v401, 7
    %v403 = vsub.s32 6, %v402
    %v404 = vrot.slane %v375, %v403
    %v405 = vlaneseq
    %v406 = vshrl.u32 %v405, 7
    %v407 = vsub.s32 7, %v406
    %v408 = vrot.slane %v375, %v407
    %v673 = vunpack.c.l.b16 %v119
    %v674 = vunpack.c.h.b16 %v119
    %v675 = vunpack.c.l.b16 %v120
    %v676 = vunpack.c.h.b16 %v120
    %v677 = vunpack.c.l.b16 %v121
    %v678 = vunpack.c.h.b16 %v121
    %v679 = vunpack.c.l.b16 %v122
    %v680 = vunpack.c.h.b16 %v122
    %v681 = vunpack.c.l.b16 %v123
    %v682 = vunpack.c.h.b16 %v123
    %v683 = vunpack.c.l.b16 %v124
    %v684 = vunpack.c.h.b16 %v124
    %v685 = vunpack.c.l.b16 %v125
    %v686 = vunpack.c.h.b16 %v125
    %v687 = vunpack.c.l.b16 %v126
    %v688 = vunpack.c.h.b16 %v126
    %v689 = vunpack.c.l.b16 %v127
    %v690 = vunpack.c.h.b16 %v127
    %v691 = vunpack.c.l.b16 %v128
    %v692 = vunpack.c.h.b16 %v128
    %v693 = vunpack.c.l.b16 %v129
    %v694 = vunpack.c.h.b16 %v129
    %v695 = vunpack.c.l.b16 %v130
    %v696 = vunpack.c.h.b16 %v130
    %v697 = vunpack.c.l.b16 %v131
    %v698 = vunpack.c.h.b16 %v131
    %v699 = vunpack.c.l.b16 %v132
    %v700 = vunpack.c.h.b16 %v132
    %v701 = vunpack.c.l.b16 %v133
    %v702 = vunpack.c.h.b16 %v133
    %v703 = vunpack.c.l.b16 %v134
    %v704 = vunpack.c.h.b16 %v134
    %v705 = vunpack.c.l.b16 %v135
    %v706 = vunpack.c.h.b16 %v135
    %v707 = vunpack.c.l.b16 %v136
    %v708 = vunpack.c.h.b16 %v136
    %v709 = vunpack.c.l.b16 %v137
    %v710 = vunpack.c.h.b16 %v137
    %v711 = vunpack.c.l.b16 %v138
    %v712 = vunpack.c.h.b16 %v138
    %v713 = vunpack.c.l.b16 %v139
    %v714 = vunpack.c.h.b16 %v139
    %v715 = vunpack.c.l.b16 %v140
    %v716 = vunpack.c.h.b16 %v140
    %v717 = vunpack.c.l.b16 %v141
    %v718 = vunpack.c.h.b16 %v141
    %v719 = vunpack.c.l.b16 %v142
    %v720 = vunpack.c.h.b16 %v142
    %v721 = vunpack.c.l.b16 %v143
    %v722 = vunpack.c.h.b16 %v143
    %v723 = vunpack.c.l.b16 %v144
    %v724 = vunpack.c.h.b16 %v144
    %v725 = vunpack.c.l.b16 %v145
    %v726 = vunpack.c.h.b16 %v145
    %v727 = vunpack.c.l.b16 %v146
    %v728 = vunpack.c.h.b16 %v146
    %v729 = vunpack.c.l.b16 %v147
    %v730 = vunpack.c.h.b16 %v147
    %v731 = vunpack.c.l.b16 %v148
    %v732 = vunpack.c.h.b16 %v148
    %v733 = vunpack.c.l.b16 %v149
    %v734 = vunpack.c.h.b16 %v149
    %v735 = vunpack.c.l.b16 %v150
    %v736 = vunpack.c.h.b16 %v150
    %v737 = vunpack.c.l.b16 %v151
    %v738 = vunpack.c.h.b16 %v151
    %v739 = vunpack.c.l.b16 %v152
    %v740 = vunpack.c.h.b16 %v152
    %v741 = vunpack.c.l.b16 %v153
    %v742 = vunpack.c.h.b16 %v153
    %v743 = vunpack.c.l.b16 %v154
    %v744 = vunpack.c.h.b16 %v154
    %v745 = vunpack.c.l.b16 %v155
    %v746 = vunpack.c.h.b16 %v155
    %v747 = vunpack.c.l.b16 %v156
    %v748 = vunpack.c.h.b16 %v156
    %v749 = vunpack.c.l.b16 %v157
    %v750 = vunpack.c.h.b16 %v157
    %v751 = vunpack.c.l.b16 %v158
    %v752 = vunpack.c.h.b16 %v158
    %v753 = vunpack.c.l.b16 %v159
    %v754 = vunpack.c.h.b16 %v159
    %v755 = vunpack.c.l.b16 %v160
    %v756 = vunpack.c.h.b16 %v160
    %v757 = vunpack.c.l.b16 %v161
    %v758 = vunpack.c.h.b16 %v161
    %v759 = vunpack.c.l.b16 %v162
    %v760 = vunpack.c.h.b16 %v162
    %v761 = vunpack.c.l.b16 %v163
    %v762 = vunpack.c.h.b16 %v163
    %v763 = vunpack.c.l.b16 %v164
    %v764 = vunpack.c.h.b16 %v164
    %v765 = vunpack.c.l.b16 %v165
    %v766 = vunpack.c.h.b16 %v165
    %v767 = vunpack.c.l.b16 %v166
    %v768 = vunpack.c.h.b16 %v166
    %v769 = vunpack.c.l.b16 %v167
    %v770 = vunpack.c.h.b16 %v167
    %v771 = vunpack.c.l.b16 %v168
    %v772 = vunpack.c.h.b16 %v168
    %v773 = vunpack.c.l.b16 %v169
    %v774 = vunpack.c.h.b16 %v169
    %v775 = vunpack.c.l.b16 %v170
    %v776 = vunpack.c.h.b16 %v170
    %v777 = vunpack.c.l.b16 %v171
    %v778 = vunpack.c.h.b16 %v171
    %v779 = vunpack.c.l.b16 %v172
    %v780 = vunpack.c.h.b16 %v172
    %v781 = vunpack.c.l.b16 %v173
    %v782 = vunpack.c.h.b16 %v173
    %v783 = vunpack.c.l.b16 %v174
    %v784 = vunpack.c.h.b16 %v174
    %v785 = vunpack.c.l.b16 %v175
    %v786 = vunpack.c.h.b16 %v175
    %v787 = vunpack.c.l.b16 %v176
    %v788 = vunpack.c.h.b16 %v176
    %v789 = vunpack.c.l.b16 %v177
    %v790 = vunpack.c.h.b16 %v177
    %v791 = vunpack.c.l.b16 %v178
    %v792 = vunpack.c.h.b16 %v178
    %v793 = vunpack.c.l.b16 %v179
    %v794 = vunpack.c.h.b16 %v179
    %v795 = vunpack.c.l.b16 %v180
    %v796 = vunpack.c.h.b16 %v180
    %v797 = vunpack.c.l.b16 %v181
    %v798 = vunpack.c.h.b16 %v181
    %v799 = vunpack.c.l.b16 %v182
    %v800 = vunpack.c.h.b16 %v182
    %v801 = vunpack.c.l.b16 %v183
    %v802 = vunpack.c.h.b16 %v183
    %v803 = vunpack.c.l.b16 %v184
    %v804 = vunpack.c.h.b16 %v184
    %v805 = vunpack.c.l.b16 %v185
    %v806 = vunpack.c.h.b16 %v185
    %v807 = vunpack.c.l.b16 %v186
    %v808 = vunpack.c.h.b16 %v186
    %v809 = vunpack.c.l.b16 %v187
    %v810 = vunpack.c.h.b16 %v187
    %v811 = vunpack.c.l.b16 %v188
    %v812 = vunpack.c.h.b16 %v188
    %v813 = vunpack.c.l.b16 %v189
    %v814 = vunpack.c.h.b16 %v189
    %v815 = vunpack.c.l.b16 %v190
    %v816 = vunpack.c.h.b16 %v190
    %v817 = vunpack.c.l.b16 %v191
    %v818 = vunpack.c.h.b16 %v191
    %v819 = vunpack.c.l.b16 %v192
    %v820 = vunpack.c.h.b16 %v192
    %v821 = vunpack.c.l.b16 %v193
    %v822 = vunpack.c.h.b16 %v193
    %v823 = vunpack.c.l.b16 %v194
    %v824 = vunpack.c.h.b16 %v194
    %v825 = vunpack.c.l.b16 %v195
    %v826 = vunpack.c.h.b16 %v195
    %v827 = vunpack.c.l.b16 %v196
    %v828 = vunpack.c.h.b16 %v196
    %v829 = vunpack.c.l.b16 %v197
    %v830 = vunpack.c.h.b16 %v197
    %v831 = vunpack.c.l.b16 %v198
    %v832 = vunpack.c.h.b16 %v198
    %v833 = vunpack.c.l.b16 %v199
    %v834 = vunpack.c.h.b16 %v199
    %v835 = vunpack.c.l.b16 %v200
    %v836 = vunpack.c.h.b16 %v200
    %v837 = vunpack.c.l.b16 %v201
    %v838 = vunpack.c.h.b16 %v201
    %v839 = vunpack.c.l.b16 %v202
    %v840 = vunpack.c.h.b16 %v202
    %v841 = vunpack.c.l.b16 %v203
    %v842 = vunpack.c.h.b16 %v203
    %v843 = vunpack.c.l.b16 %v204
    %v844 = vunpack.c.h.b16 %v204
    %v845 = vunpack.c.l.b16 %v205
    %v846 = vunpack.c.h.b16 %v205
    %v847 = vunpack.c.l.b16 %v206
    %v848 = vunpack.c.h.b16 %v206
    %v849 = vunpack.c.l.b16 %v207
    %v850 = vunpack.c.h.b16 %v207
    %v851 = vunpack.c.l.b16 %v208
    %v852 = vunpack.c.h.b16 %v208
    %v853 = vunpack.c.l.b16 %v209
    %v854 = vunpack.c.h.b16 %v209
    %v855 = vunpack.c.l.b16 %v210
    %v856 = vunpack.c.h.b16 %v210
    %v857 = vunpack.c.l.b16 %v211
    %v858 = vunpack.c.h.b16 %v211
    %v859 = vunpack.c.l.b16 %v212
    %v860 = vunpack.c.h.b16 %v212
    %v861 = vunpack.c.l.b16 %v213
    %v862 = vunpack.c.h.b16 %v213
    %v863 = vunpack.c.l.b16 %v214
    %v864 = vunpack.c.h.b16 %v214
    %v865 = vunpack.c.l.b16 %v215
    %v866 = vunpack.c.h.b16 %v215
    %v867 = vunpack.c.l.b16 %v216
    %v868 = vunpack.c.h.b16 %v216
    %v869 = vunpack.c.l.b16 %v217
    %v870 = vunpack.c.h.b16 %v217
    %v871 = vunpack.c.l.b16 %v218
    %v872 = vunpack.c.h.b16 %v218
    %v873 = vunpack.c.l.b16 %v219
    %v874 = vunpack.c.h.b16 %v219
    %v875 = vunpack.c.l.b16 %v220
    %v876 = vunpack.c.h.b16 %v220
    %v877 = vunpack.c.l.b16 %v221
    %v878 = vunpack.c.h.b16 %v221
    %v879 = vunpack.c.l.b16 %v222
    %v880 = vunpack.c.h.b16 %v222
    %v881 = vunpack.c.l.b16 %v223
    %v882 = vunpack.c.h.b16 %v223
    %v883 = vunpack.c.l.b16 %v224
    %v884 = vunpack.c.h.b16 %v224
    %v885 = vunpack.c.l.b16 %v225
    %v886 = vunpack.c.h.b16 %v225
    %v887 = vunpack.c.l.b16 %v226
    %v888 = vunpack.c.h.b16 %v226
    %v889 = vunpack.c.l.b16 %v227
    %v890 = vunpack.c.h.b16 %v227
    %v891 = vunpack.c.l.b16 %v228
    %v892 = vunpack.c.h.b16 %v228
    %v893 = vunpack.c.l.b16 %v229
    %v894 = vunpack.c.h.b16 %v229
    %v895 = vunpack.c.l.b16 %v230
    %v896 = vunpack.c.h.b16 %v230
    %v897 = vunpack.c.l.b16 %v231
    %v898 = vunpack.c.h.b16 %v231
    %v899 = vunpack.c.l.b16 %v232
    %v900 = vunpack.c.h.b16 %v232
    %v901 = vunpack.c.l.b16 %v233
    %v902 = vunpack.c.h.b16 %v233
    %v903 = vunpack.c.l.b16 %v234
    %v904 = vunpack.c.h.b16 %v234
    %v905 = vunpack.c.l.b16 %v235
    %v906 = vunpack.c.h.b16 %v235
    %v907 = vunpack.c.l.b16 %v236
    %v908 = vunpack.c.h.b16 %v236
    %v909 = vunpack.c.l.b16 %v237
    %v910 = vunpack.c.h.b16 %v237
    %v911 = vunpack.c.l.b16 %v238
    %v912 = vunpack.c.h.b16 %v238
    %v913 = vunpack.c.l.b16 %v239
    %v914 = vunpack.c.h.b16 %v239
    %v915 = vunpack.c.l.b16 %v240
    %v916 = vunpack.c.h.b16 %v240
    %v917 = vunpack.c.l.b16 %v241
    %v918 = vunpack.c.h.b16 %v241
    %v919 = vunpack.c.l.b16 %v242
    %v920 = vunpack.c.h.b16 %v242
    %v921 = vunpack.c.l.b16 %v243
    %v922 = vunpack.c.h.b16 %v243
    %v923 = vunpack.c.l.b16 %v244
    %v924 = vunpack.c.h.b16 %v244
    %v925 = vunpack.c.l.b16 %v245
    %v926 = vunpack.c.h.b16 %v245
    %v927 = vunpack.c.l.b16 %v246
    %v928 = vunpack.c.h.b16 %v246
    %v929 = vunpack.c.l.b16 %v247
    %v930 = vunpack.c.h.b16 %v247
    %v931 = vunpack.c.l.b16 %v248
    %v932 = vunpack.c.h.b16 %v248
    %v933 = vunpack.c.l.b16 %v249
    %v934 = vunpack.c.h.b16 %v249
    %v935 = vunpack.c.l.b16 %v250
    %v936 = vunpack.c.h.b16 %v250
    %v937 = vunpack.c.l.b16 %v251
    %v938 = vunpack.c.h.b16 %v251
    %v939 = vunpack.c.l.b16 %v252
    %v940 = vunpack.c.h.b16 %v252
    %v941 = vunpack.c.l.b16 %v253
    %v942 = vunpack.c.h.b16 %v253
    %v943 = vunpack.c.l.b16 %v254
    %v944 = vunpack.c.h.b16 %v254
    %v945 = vunpack.c.l.b16 %v255
    %v946 = vunpack.c.h.b16 %v255
    %v947 = vunpack.c.l.b16 %v256
    %v948 = vunpack.c.h.b16 %v256
    %v949 = vunpack.c.l.b16 %v257
    %v950 = vunpack.c.h.b16 %v257
    %v951 = vunpack.c.l.b16 %v258
    %v952 = vunpack.c.h.b16 %v258
    %v953 = vunpack.c.l.b16 %v259
    %v954 = vunpack.c.h.b16 %v259
    %v955 = vunpack.c.l.b16 %v260
    %v956 = vunpack.c.h.b16 %v260
    %v957 = vunpack.c.l.b16 %v261
    %v958 = vunpack.c.h.b16 %v261
    %v959 = vunpack.c.l.b16 %v262
    %v960 = vunpack.c.h.b16 %v262
    %v961 = vunpack.c.l.b16 %v263
    %v962 = vunpack.c.h.b16 %v263
    %v963 = vunpack.c.l.b16 %v264
    %v964 = vunpack.c.h.b16 %v264
    %v965 = vunpack.c.l.b16 %v265
    %v966 = vunpack.c.h.b16 %v265
    %v967 = vunpack.c.l.b16 %v266
    %v968 = vunpack.c.h.b16 %v266
    %v969 = vunpack.c.l.b16 %v267
    %v970 = vunpack.c.h.b16 %v267
    %v971 = vunpack.c.l.b16 %v268
    %v972 = vunpack.c.h.b16 %v268
    %v973 = vunpack.c.l.b16 %v269
    %v974 = vunpack.c.h.b16 %v269
    %v975 = vunpack.c.l.b16 %v270
    %v976 = vunpack.c.h.b16 %v270
    %v977 = vunpack.c.l.b16 %v271
    %v978 = vunpack.c.h.b16 %v271
    %v979 = vunpack.c.l.b16 %v272
    %v980 = vunpack.c.h.b16 %v272
    %v981 = vunpack.c.l.b16 %v273
    %v982 = vunpack.c.h.b16 %v273
    %v983 = vunpack.c.l.b16 %v274
    %v984 = vunpack.c.h.b16 %v274
    %v985 = vunpack.c.l.b16 %v275
    %v986 = vunpack.c.h.b16 %v275
    %v987 = vunpack.c.l.b16 %v276
    %v988 = vunpack.c.h.b16 %v276
    %v989 = vunpack.c.l.b16 %v277
    %v990 = vunpack.c.h.b16 %v277
    %v991 = vunpack.c.l.b16 %v278
    %v992 = vunpack.c.h.b16 %v278
    %v993 = vunpack.c.l.b16 %v279
    %v994 = vunpack.c.h.b16 %v279
    %v995 = vunpack.c.l.b16 %v280
    %v996 = vunpack.c.h.b16 %v280
    %v997 = vunpack.c.l.b16 %v281
    %v998 = vunpack.c.h.b16 %v281
    %v999 = vunpack.c.l.b16 %v282
    %v1000 = vunpack.c.h.b16 %v282
    %v1001 = vunpack.c.l.b16 %v283
    %v1002 = vunpack.c.h.b16 %v283
    %v1003 = vunpack.c.l.b16 %v284
    %v1004 = vunpack.c.h.b16 %v284
    %v1005 = vunpack.c.l.b16 %v285
    %v1006 = vunpack.c.h.b16 %v285
    %v1007 = vunpack.c.l.b16 %v286
    %v1008 = vunpack.c.h.b16 %v286
    %v1009 = vunpack.c.l.b16 %v287
    %v1010 = vunpack.c.h.b16 %v287
    %v1011 = vunpack.c.l.b16 %v288
    %v1012 = vunpack.c.h.b16 %v288
    %v1013 = vunpack.c.l.b16 %v289
    %v1014 = vunpack.c.h.b16 %v289
    %v1015 = vunpack.c.l.b16 %v290
    %v1016 = vunpack.c.h.b16 %v290
    %v1017 = vunpack.c.l.b16 %v291
    %v1018 = vunpack.c.h.b16 %v291
    %v1019 = vunpack.c.l.b16 %v292
    %v1020 = vunpack.c.h.b16 %v292
    %v1021 = vunpack.c.l.b16 %v293
    %v1022 = vunpack.c.h.b16 %v293
    %v1023 = vunpack.c.l.b16 %v294
    %v1024 = vunpack.c.h.b16 %v294
    %v1025 = vunpack.c.l.b16 %v295
    %v1026 = vunpack.c.h.b16 %v295
    %v1027 = vunpack.c.l.b16 %v296
    %v1028 = vunpack.c.h.b16 %v296
    %v1029 = vunpack.c.l.b16 %v297
    %v1030 = vunpack.c.h.b16 %v297
    %v1031 = vunpack.c.l.b16 %v298
    %v1032 = vunpack.c.h.b16 %v298
    %v1033 = vunpack.c.l.b16 %v299
    %v1034 = vunpack.c.h.b16 %v299
    %v1035 = vunpack.c.l.b16 %v300
    %v1036 = vunpack.c.h.b16 %v300
    %v1037 = vunpack.c.l.b16 %v301
    %v1038 = vunpack.c.h.b16 %v301
    %v1039 = vunpack.c.l.b16 %v302
    %v1040 = vunpack.c.h.b16 %v302
    %v1041 = vunpack.c.l.b16 %v303
    %v1042 = vunpack.c.h.b16 %v303
    %v1043 = vunpack.c.l.b16 %v304
    %v1044 = vunpack.c.h.b16 %v304
    %v1045 = vunpack.c.l.b16 %v305
    %v1046 = vunpack.c.h.b16 %v305
    %v1047 = vunpack.c.l.b16 %v306
    %v1048 = vunpack.c.h.b16 %v306
    %v1049 = vunpack.c.l.b16 %v307
    %v1050 = vunpack.c.h.b16 %v307
    %v1051 = vunpack.c.l.b16 %v308
    %v1052 = vunpack.c.h.b16 %v308
    %v1053 = vunpack.c.l.b16 %v309
    %v1054 = vunpack.c.h.b16 %v309
    %v1055 = vunpack.c.l.b16 %v310
    %v1056 = vunpack.c.h.b16 %v310
    %v1057 = vunpack.c.l.b16 %v311
    %v1058 = vunpack.c.h.b16 %v311
    %v1059 = vunpack.c.l.b16 %v312
    %v1060 = vunpack.c.h.b16 %v312
    %v1061 = vunpack.c.l.b16 %v313
    %v1062 = vunpack.c.h.b16 %v313
    %v1063 = vunpack.c.l.b16 %v314
    %v1064 = vunpack.c.h.b16 %v314
    %v1065 = vunpack.c.l.b16 %v315
    %v1066 = vunpack.c.h.b16 %v315
    %v1067 = vunpack.c.l.b16 %v316
    %v1068 = vunpack.c.h.b16 %v316
    %v1069 = vunpack.c.l.b16 %v317
    %v1070 = vunpack.c.h.b16 %v317
    %v1071 = vunpack.c.l.b16 %v318
    %v1072 = vunpack.c.h.b16 %v318
    %v1073 = vunpack.c.l.b16 %v319
    %v1074 = vunpack.c.h.b16 %v319
    %v1075 = vunpack.c.l.b16 %v320
    %v1076 = vunpack.c.h.b16 %v320
    %v1077 = vunpack.c.l.b16 %v321
    %v1078 = vunpack.c.h.b16 %v321
    %v1079 = vunpack.c.l.b16 %v322
    %v1080 = vunpack.c.h.b16 %v322
    %v1081 = vunpack.c.l.b16 %v323
    %v1082 = vunpack.c.h.b16 %v323
    %v1083 = vunpack.c.l.b16 %v324
    %v1084 = vunpack.c.h.b16 %v324
    %v1085 = vunpack.c.l.b16 %v325
    %v1086 = vunpack.c.h.b16 %v325
    %v1087 = vunpack.c.l.b16 %v326
    %v1088 = vunpack.c.h.b16 %v326
    %v1089 = vunpack.c.l.b16 %v327
    %v1090 = vunpack.c.h.b16 %v327
    %v1091 = vunpack.c.l.b16 %v328
    %v1092 = vunpack.c.h.b16 %v328
    %v1093 = vunpack.c.l.b16 %v329
    %v1094 = vunpack.c.h.b16 %v329
    %v1095 = vunpack.c.l.b16 %v330
    %v1096 = vunpack.c.h.b16 %v330
    %v1097 = vunpack.c.l.b16 %v331
    %v1098 = vunpack.c.h.b16 %v331
    %v1099 = vunpack.c.l.b16 %v332
    %v1100 = vunpack.c.h.b16 %v332
    %v1101 = vunpack.c.l.b16 %v333
    %v1102 = vunpack.c.h.b16 %v333
    %v1103 = vunpack.c.l.b16 %v334
    %v1104 = vunpack.c.h.b16 %v334
    %v1105 = vunpack.c.l.b16 %v335
    %v1106 = vunpack.c.h.b16 %v335
    %v1107 = vunpack.c.l.b16 %v336
    %v1108 = vunpack.c.h.b16 %v336
    %v1109 = vunpack.c.l.b16 %v337
    %v1110 = vunpack.c.h.b16 %v337
    %v1111 = vunpack.c.l.b16 %v338
    %v1112 = vunpack.c.h.b16 %v338
    %v1113 = vunpack.c.l.b16 %v339
    %v1114 = vunpack.c.h.b16 %v339
    %v1115 = vunpack.c.l.b16 %v340
    %v1116 = vunpack.c.h.b16 %v340
    %v1117 = vunpack.c.l.b16 %v341
    %v1118 = vunpack.c.h.b16 %v341
    %v1119 = vunpack.c.l.b16 %v342
    %v1120 = vunpack.c.h.b16 %v342
    %v1121 = vunpack.c.l.b16 %v343
    %v1122 = vunpack.c.h.b16 %v343
    %v1123 = vunpack.c.l.b16 %v344
    %v1124 = vunpack.c.h.b16 %v344
    %v1125 = vunpack.c.l.b16 %v345
    %v1126 = vunpack.c.h.b16 %v345
    %v1127 = vunpack.c.l.b16 %v346
    %v1128 = vunpack.c.h.b16 %v346
    %v1129 = vunpack.c.l.b16 %v347
    %v1130 = vunpack.c.h.b16 %v347
    %v1131 = vunpack.c.l.b16 %v348
    %v1132 = vunpack.c.h.b16 %v348
    %v1133 = vunpack.c.l.b16 %v349
    %v1134 = vunpack.c.h.b16 %v349
    %v1135 = vunpack.c.l.b16 %v350
    %v1136 = vunpack.c.h.b16 %v350
    %v1137 = vunpack.c.l.b16 %v351
    %v1138 = vunpack.c.h.b16 %v351
    %v1139 = vunpack.c.l.b16 %v352
    %v1140 = vunpack.c.h.b16 %v352
    %v1141 = vunpack.c.l.b16 %v353
    %v1142 = vunpack.c.h.b16 %v353
    %v1143 = vunpack.c.l.b16 %v354
    %v1144 = vunpack.c.h.b16 %v354
    %v1145 = vunpack.c.l.b16 %v355
    %v1146 = vunpack.c.h.b16 %v355
    %v1147 = vunpack.c.l.b16 %v356
    %v1148 = vunpack.c.h.b16 %v356
    %v1149 = vunpack.c.l.b16 %v357
    %v1150 = vunpack.c.h.b16 %v357
    %v1151 = vunpack.c.l.b16 %v358
    %v1152 = vunpack.c.h.b16 %v358
    %v1153 = vunpack.c.l.b16 %v359
    %v1154 = vunpack.c.h.b16 %v359
    %v1155 = vunpack.c.l.b16 %v360
    %v1156 = vunpack.c.h.b16 %v360
    %v1157 = vunpack.c.l.b16 %v361
    %v1158 = vunpack.c.h.b16 %v361
    %v1159 = vunpack.c.l.b16 %v362
    %v1160 = vunpack.c.h.b16 %v362
    %v1161 = vunpack.c.l.b16 %v363
    %v1162 = vunpack.c.h.b16 %v363
    %v1163 = vunpack.c.l.b16 %v364
    %v1164 = vunpack.c.h.b16 %v364
    %v1165 = vunpack.c.l.b16 %v365
    %v1166 = vunpack.c.h.b16 %v365
    %v1167 = vunpack.c.l.b16 %v366
    %v1168 = vunpack.c.h.b16 %v366
    %v1169 = vunpack.c.l.b16 %v367
    %v1170 = vunpack.c.h.b16 %v367
    %v1171 = vunpack.c.l.b16 %v368
    %v1172 = vunpack.c.h.b16 %v368
    %v1173 = vunpack.c.l.b16 %v369
    %v1174 = vunpack.c.h.b16 %v369
    %v1175 = vunpack.c.l.b16 %v370
    %v1176 = vunpack.c.h.b16 %v370
    %v1177 = vunpack.c.l.b16 %v371
    %v1178 = vunpack.c.h.b16 %v371
    %v1179 = vunpack.c.l.b16 %v372
    %v1180 = vunpack.c.h.b16 %v372
    %v1181 = vunpack.c.l.b16 %v373
    %v1182 = vunpack.c.h.b16 %v373
    %v1183 = vunpack.c.l.b16 %v374
    %v1184 = vunpack.c.h.b16 %v374
    %v1185 = vpack.c.b16 %v681, %v673
    %v1186 = vpack.c.b16 %v682, %v674
    %v1187 = vpack.c.b16 %v683, %v675
    %v1188 = vpack.c.b16 %v684, %v676
    %v1189 = vpack.c.b16 %v685, %v677
    %v1190 = vpack.c.b16 %v686, %v678
    %v1191 = vpack.c.b16 %v687, %v679
    %v1192 = vpack.c.b16 %v688, %v680
    %v1193 = vpack.c.b16 %v697, %v689
    %v1194 = vpack.c.b16 %v698, %v690
    %v1195 = vpack.c.b16 %v699, %v691
    %v1196 = vpack.c.b16 %v700, %v692
    %v1197 = vpack.c.b16 %v701, %v693
    %v1198 = vpack.c.b16 %v702, %v694
    %v1199 = vpack.c.b16 %v703, %v695
    %v1200 = vpack.c.b16 %v704, %v696
    %v1201 = vpack.c.b16 %v713, %v705
    %v1202 = vpack.c.b16 %v714, %v706
    %v1203 = vpack.c.b16 %v715, %v707
    %v1204 = vpack.c.b16 %v716, %v708
    %v1205 = vpack.c.b16 %v717, %v709
    %v1206 = vpack.c.b16 %v718, %v710
    %v1207 = vpack.c.b16 %v719, %v711
    %v1208 = vpack.c.b16 %v720, %v712
    %v1209 = vpack.c.b16 %v729, %v721
    %v1210 = vpack.c.b16 %v730, %v722
    %v1211 = vpack.c.b16 %v731, %v723
    %v1212 = vpack.c.b16 %v732, %v724
    %v1213 = vpack.c.b16 %v733, %v725
    %v1214 = vpack.c.b16 %v734, %v726
    %v1215 = vpack.c.b16 %v735, %v727
    %v1216 = vpack.c.b16 %v736, %v728
    %v1217 = vpack.c.b16 %v745, %v737
    %v1218 = vpack.c.b16 %v746, %v738
    %v1219 = vpack.c.b16 %v747, %v739
    %v1220 = vpack.c.b16 %v748, %v740
    %v1221 = vpack.c.b16 %v749, %v741
    %v1222 = vpack.c.b16 %v750, %v742
    %v1223 = vpack.c.b16 %v751, %v743
    %v1224 = vpack.c.b16 %v752, %v744
    %v1225 = vpack.c.b16 %v761, %v753
    %v1226 = vpack.c.b16 %v762, %v754
    %v1227 = vpack.c.b16 %v763, %v755
    %v1228 = vpack.c.b16 %v764, %v756
    %v1229 = vpack.c.b16 %v765, %v757
    %v1230 = vpack.c.b16 %v766, %v758
    %v1231 = vpack.c.b16 %v767, %v759
    %v1232 = vpack.c.b16 %v768, %v760
    %v1233 = vpack.c.b16 %v777, %v769
    %v1234 = vpack.c.b16 %v778, %v770
    %v1235 = vpack.c.b16 %v779, %v771
    %v1236 = vpack.c.b16 %v780, %v772
    %v1237 = vpack.c.b16 %v781, %v773
    %v1238 = vpack.c.b16 %v782, %v774
    %v1239 = vpack.c.b16 %v783, %v775
    %v1240 = vpack.c.b16 %v784, %v776
    %v1241 = vpack.c.b16 %v793, %v785
    %v1242 = vpack.c.b16 %v794, %v786
    %v1243 = vpack.c.b16 %v795, %v787
    %v1244 = vpack.c.b16 %v796, %v788
    %v1245 = vpack.c.b16 %v797, %v789
    %v1246 = vpack.c.b16 %v798, %v790
    %v1247 = vpack.c.b16 %v799, %v791
    %v1248 = vpack.c.b16 %v800, %v792
    %v1249 = vpack.c.b16 %v809, %v801
    %v1250 = vpack.c.b16 %v810, %v802
    %v1251 = vpack.c.b16 %v811, %v803
    %v1252 = vpack.c.b16 %v812, %v804
    %v1253 = vpack.c.b16 %v813, %v805
    %v1254 = vpack.c.b16 %v814, %v806
    %v1255 = vpack.c.b16 %v815, %v807
    %v1256 = vpack.c.b16 %v816, %v808
    %v1257 = vpack.c.b16 %v825, %v817
    %v1258 = vpack.c.b16 %v826, %v818
    %v1259 = vpack.c.b16 %v827, %v819
    %v1260 = vpack.c.b16 %v828, %v820
    %v1261 = vpack.c.b16 %v829, %v821
    %v1262 = vpack.c.b16 %v830, %v822
    %v1263 = vpack.c.b16 %v831, %v823
    %v1264 = vpack.c.b16 %v832, %v824
    %v1265 = vpack.c.b16 %v841, %v833
    %v1266 = vpack.c.b16 %v842, %v834
    %v1267 = vpack.c.b16 %v843, %v835
    %v1268 = vpack.c.b16 %v844, %v836
    %v1269 = vpack.c.b16 %v845, %v837
    %v1270 = vpack.c.b16 %v846, %v838
    %v1271 = vpack.c.b16 %v847, %v839
    %v1272 = vpack.c.b16 %v848, %v840
    %v1273 = vpack.c.b16 %v857, %v849
    %v1274 = vpack.c.b16 %v858, %v850
    %v1275 = vpack.c.b16 %v859, %v851
    %v1276 = vpack.c.b16 %v860, %v852
    %v1277 = vpack.c.b16 %v861, %v853
    %v1278 = vpack.c.b16 %v862, %v854
    %v1279 = vpack.c.b16 %v863, %v855
    %v1280 = vpack.c.b16 %v864, %v856
    %v1281 = vpack.c.b16 %v873, %v865
    %v1282 = vpack.c.b16 %v874, %v866
    %v1283 = vpack.c.b16 %v875, %v867
    %v1284 = vpack.c.b16 %v876, %v868
    %v1285 = vpack.c.b16 %v877, %v869
    %v1286 = vpack.c.b16 %v878, %v870
    %v1287 = vpack.c.b16 %v879, %v871
    %v1288 = vpack.c.b16 %v880, %v872
    %v1289 = vpack.c.b16 %v889, %v881
    %v1290 = vpack.c.b16 %v890, %v882
    %v1291 = vpack.c.b16 %v891, %v883
    %v1292 = vpack.c.b16 %v892, %v884
    %v1293 = vpack.c.b16 %v893, %v885
    %v1294 = vpack.c.b16 %v894, %v886
    %v1295 = vpack.c.b16 %v895, %v887
    %v1296 = vpack.c.b16 %v896, %v888
    %v1297 = vpack.c.b16 %v905, %v897
    %v1298 = vpack.c.b16 %v906, %v898
    %v1299 = vpack.c.b16 %v907, %v899
    %v1300 = vpack.c.b16 %v908, %v900
    %v1301 = vpack.c.b16 %v909, %v901
    %v1302 = vpack.c.b16 %v910, %v902
    %v1303 = vpack.c.b16 %v911, %v903
    %v1304 = vpack.c.b16 %v912, %v904
    %v1305 = vpack.c.b16 %v921, %v913
    %v1306 = vpack.c.b16 %v922, %v914
    %v1307 = vpack.c.b16 %v923, %v915
    %v1308 = vpack.c.b16 %v924, %v916
    %v1309 = vpack.c.b16 %v925, %v917
    %v1310 = vpack.c.b16 %v926, %v918
    %v1311 = vpack.c.b16 %v927, %v919
    %v1312 = vpack.c.b16 %v928, %v920
    %v1313 = vpack.c.b16 %v937, %v929
    %v1314 = vpack.c.b16 %v938, %v930
    %v1315 = vpack.c.b16 %v939, %v931
    %v1316 = vpack.c.b16 %v940, %v932
    %v1317 = vpack.c.b16 %v941, %v933
    %v1318 = vpack.c.b16 %v942, %v934
    %v1319 = vpack.c.b16 %v943, %v935
    %v1320 = vpack.c.b16 %v944, %v936
    %v1321 = vpack.c.b16 %v953, %v945
    %v1322 = vpack.c.b16 %v954, %v946
    %v1323 = vpack.c.b16 %v955, %v947
    %v1324 = vpack.c.b16 %v956, %v948
    %v1325 = vpack.c.b16 %v957, %v949
    %v1326 = vpack.c.b16 %v958, %v950
    %v1327 = vpack.c.b16 %v959, %v951
    %v1328 = vpack.c.b16 %v960, %v952
    %v1329 = vpack.c.b16 %v969, %v961
    %v1330 = vpack.c.b16 %v970, %v962
    %v1331 = vpack.c.b16 %v971, %v963
    %v1332 = vpack.c.b16 %v972, %v964
    %v1333 = vpack.c.b16 %v973, %v965
    %v1334 = vpack.c.b16 %v974, %v966
    %v1335 = vpack.c.b16 %v975, %v967
    %v1336 = vpack.c.b16 %v976, %v968
    %v1337 = vpack.c.b16 %v985, %v977
    %v1338 = vpack.c.b16 %v986, %v978
    %v1339 = vpack.c.b16 %v987, %v979
    %v1340 = vpack.c.b16 %v988, %v980
    %v1341 = vpack.c.b16 %v989, %v981
    %v1342 = vpack.c.b16 %v990, %v982
    %v1343 = vpack.c.b16 %v991, %v983
    %v1344 = vpack.c.b16 %v992, %v984
    %v1345 = vpack.c.b16 %v1001, %v993
    %v1346 = vpack.c.b16 %v1002, %v994
    %v1347 = vpack.c.b16 %v1003, %v995
    %v1348 = vpack.c.b16 %v1004, %v996
    %v1349 = vpack.c.b16 %v1005, %v997
    %v1350 = vpack.c.b16 %v1006, %v998
    %v1351 = vpack.c.b16 %v1007, %v999
    %v1352 = vpack.c.b16 %v1008, %v1000
    %v1353 = vpack.c.b16 %v1017, %v1009
    %v1354 = vpack.c.b16 %v1018, %v1010
    %v1355 = vpack.c.b16 %v1019, %v1011
    %v1356 = vpack.c.b16 %v1020, %v1012
    %v1357 = vpack.c.b16 %v1021, %v1013
    %v1358 = vpack.c.b16 %v1022, %v1014
    %v1359 = vpack.c.b16 %v1023, %v1015
    %v1360 = vpack.c.b16 %v1024, %v1016
    %v1361 = vpack.c.b16 %v1033, %v1025
    %v1362 = vpack.c.b16 %v1034, %v1026
    %v1363 = vpack.c.b16 %v1035, %v1027
    %v1364 = vpack.c.b16 %v1036, %v1028
    %v1365 = vpack.c.b16 %v1037, %v1029
    %v1366 = vpack.c.b16 %v1038, %v1030
    %v1367 = vpack.c.b16 %v1039, %v1031
    %v1368 = vpack.c.b16 %v1040, %v1032
    %v1369 = vpack.c.b16 %v1049, %v1041
    %v1370 = vpack.c.b16 %v1050, %v1042
    %v1371 = vpack.c.b16 %v1051, %v1043
    %v1372 = vpack.c.b16 %v1052, %v1044
    %v1373 = vpack.c.b16 %v1053, %v1045
    %v1374 = vpack.c.b16 %v1054, %v1046
    %v1375 = vpack.c.b16 %v1055, %v1047
    %v1376 = vpack.c.b16 %v1056, %v1048
    %v1377 = vpack.c.b16 %v1065, %v1057
    %v1378 = vpack.c.b16 %v1066, %v1058
    %v1379 = vpack.c.b16 %v1067, %v1059
    %v1380 = vpack.c.b16 %v1068, %v1060
    %v1381 = vpack.c.b16 %v1069, %v1061
    %v1382 = vpack.c.b16 %v1070, %v1062
    %v1383 = vpack.c.b16 %v1071, %v1063
    %v1384 = vpack.c.b16 %v1072, %v1064
    %v1385 = vpack.c.b16 %v1081, %v1073
    %v1386 = vpack.c.b16 %v1082, %v1074
    %v1387 = vpack.c.b16 %v1083, %v1075
    %v1388 = vpack.c.b16 %v1084, %v1076
    %v1389 = vpack.c.b16 %v1085, %v1077
    %v1390 = vpack.c.b16 %v1086, %v1078
    %v1391 = vpack.c.b16 %v1087, %v1079
    %v1392 = vpack.c.b16 %v1088, %v1080
    %v1393 = vpack.c.b16 %v1097, %v1089
    %v1394 = vpack.c.b16 %v1098, %v1090
    %v1395 = vpack.c.b16 %v1099, %v1091
    %v1396 = vpack.c.b16 %v1100, %v1092
    %v1397 = vpack.c.b16 %v1101, %v1093
    %v1398 = vpack.c.b16 %v1102, %v1094
    %v1399 = vpack.c.b16 %v1103, %v1095
    %v1400 = vpack.c.b16 %v1104, %v1096
    %v1401 = vpack.c.b16 %v1113, %v1105
    %v1402 = vpack.c.b16 %v1114, %v1106
    %v1403 = vpack.c.b16 %v1115, %v1107
    %v1404 = vpack.c.b16 %v1116, %v1108
    %v1405 = vpack.c.b16 %v1117, %v1109
    %v1406 = vpack.c.b16 %v1118, %v1110
    %v1407 = vpack.c.b16 %v1119, %v1111
    %v1408 = vpack.c.b16 %v1120, %v1112
    %v1409 = vpack.c.b16 %v1129, %v1121
    %v1410 = vpack.c.b16 %v1130, %v1122
    %v1411 = vpack.c.b16 %v1131, %v1123
    %v1412 = vpack.c.b16 %v1132, %v1124
    %v1413 = vpack.c.b16 %v1133, %v1125
    %v1414 = vpack.c.b16 %v1134, %v1126
    %v1415 = vpack.c.b16 %v1135, %v1127
    %v1416 = vpack.c.b16 %v1136, %v1128
    %v1417 = vpack.c.b16 %v1145, %v1137
    %v1418 = vpack.c.b16 %v1146, %v1138
    %v1419 = vpack.c.b16 %v1147, %v1139
    %v1420 = vpack.c.b16 %v1148, %v1140
    %v1421 = vpack.c.b16 %v1149, %v1141
    %v1422 = vpack.c.b16 %v1150, %v1142
    %v1423 = vpack.c.b16 %v1151, %v1143
    %v1424 = vpack.c.b16 %v1152, %v1144
    %v1425 = vpack.c.b16 %v1161, %v1153
    %v1426 = vpack.c.b16 %v1162, %v1154
    %v1427 = vpack.c.b16 %v1163, %v1155
    %v1428 = vpack.c.b16 %v1164, %v1156
    %v1429 = vpack.c.b16 %v1165, %v1157
    %v1430 = vpack.c.b16 %v1166, %v1158
    %v1431 = vpack.c.b16 %v1167, %v1159
    %v1432 = vpack.c.b16 %v1168, %v1160
    %v1433 = vpack.c.b16 %v1177, %v1169
    %v1434 = vpack.c.b16 %v1178, %v1170
    %v1435 = vpack.c.b16 %v1179, %v1171
    %v1436 = vpack.c.b16 %v1180, %v1172
    %v1437 = vpack.c.b16 %v1181, %v1173
    %v1438 = vpack.c.b16 %v1182, %v1174
    %v1439 = vpack.c.b16 %v1183, %v1175
    %v1440 = vpack.c.b16 %v1184, %v1176
    %1697 = vmatprep.subr.bf16.mxu0 %v1186
    %1698 = vmatpush1.bf16.msra.mxu0 %v1185
    %1699 = vmatprep.subr.bf16.mxu0 %v1194
    %1700 = vmatpush1.bf16.msra.mxu0 %v1193
    %1701 = vmatprep.subr.bf16.mxu0 %v1202
    %1702 = vmatpush1.bf16.msra.mxu0 %v1201
    %1703 = vmatprep.subr.bf16.mxu0 %v1210
    %1704 = vmatpush1.bf16.msra.mxu0 %v1209
    %1705 = vmatprep.subr.bf16.mxu0 %v1218
    %1706 = vmatpush1.bf16.msra.mxu0 %v1217
    %1707 = vmatprep.subr.bf16.mxu0 %v1226
    %1708 = vmatpush1.bf16.msra.mxu0 %v1225
    %1709 = vmatprep.subr.bf16.mxu0 %v1234
    %1710 = vmatpush1.bf16.msra.mxu0 %v1233
    %1711 = vmatprep.subr.bf16.mxu0 %v1242
    %1712 = vmatpush1.bf16.msra.mxu0 %v1241
    %1713 = vmatprep.subr.bf16.mxu0 %v1250
    %1714 = vmatpush1.bf16.msra.mxu0 %v1249
    %1715 = vmatprep.subr.bf16.mxu0 %v1258
    %1716 = vmatpush1.bf16.msra.mxu0 %v1257
    %1717 = vmatprep.subr.bf16.mxu0 %v1266
    %1718 = vmatpush1.bf16.msra.mxu0 %v1265
    %1719 = vmatprep.subr.bf16.mxu0 %v1274
    %1720 = vmatpush1.bf16.msra.mxu0 %v1273
    %1721 = vmatprep.subr.bf16.mxu0 %v1282
    %1722 = vmatpush1.bf16.msra.mxu0 %v1281
    %1723 = vmatprep.subr.bf16.mxu0 %v1290
    %1724 = vmatpush1.bf16.msra.mxu0 %v1289
    %1725 = vmatprep.subr.bf16.mxu0 %v1298
    %1726 = vmatpush1.bf16.msra.mxu0 %v1297
    %1727 = vmatprep.subr.bf16.mxu0 %v1306
    %1728 = vmatpush1.bf16.msra.mxu0 %v1305
    %1729 = vmatprep.mubr.bf16.mxu0 %v116
    %1730 = vmatmul.mubr.bf16.gmra.mrb[0].mxu0 %v115
    %v1731 = vpop.f32.mrb[0].mxu0
    %v1732 = vadd.f32 %v380, %v1731
    %v1733 = vpop.f32.mrb[0].mxu0
    %v1734 = vadd.f32 %v384, %v1733
    %v1735 = vpop.f32.mrb[0].mxu0
    %v1736 = vpop.f32.mrb[0].mxu0
    %1737 = vdwg.mxu0
    %1738 = vmatprep.subr.bf16.mxu0 %v1314
    %1739 = vmatpush1.bf16.msra.mxu0 %v1313
    %1740 = vmatprep.subr.bf16.mxu0 %v1322
    %1741 = vmatpush1.bf16.msra.mxu0 %v1321
    %1742 = vmatprep.subr.bf16.mxu0 %v1330
    %1743 = vmatpush1.bf16.msra.mxu0 %v1329
    %1744 = vmatprep.subr.bf16.mxu0 %v1338
    %1745 = vmatpush1.bf16.msra.mxu0 %v1337
    %1746 = vmatprep.subr.bf16.mxu0 %v1346
    %1747 = vmatpush1.bf16.msra.mxu0 %v1345
    %1748 = vmatprep.subr.bf16.mxu0 %v1354
    %1749 = vmatpush1.bf16.msra.mxu0 %v1353
    %1750 = vmatprep.subr.bf16.mxu0 %v1362
    %1751 = vmatpush1.bf16.msra.mxu0 %v1361
    %1752 = vmatprep.subr.bf16.mxu0 %v1370
    %1753 = vmatpush1.bf16.msra.mxu0 %v1369
    %1754 = vmatprep.subr.bf16.mxu0 %v1378
    %1755 = vmatpush1.bf16.msra.mxu0 %v1377
    %1756 = vmatprep.subr.bf16.mxu0 %v1386
    %1757 = vmatpush1.bf16.msra.mxu0 %v1385
    %1758 = vmatprep.subr.bf16.mxu0 %v1394
    %1759 = vmatpush1.bf16.msra.mxu0 %v1393
    %1760 = vmatprep.subr.bf16.mxu0 %v1402
    %1761 = vmatpush1.bf16.msra.mxu0 %v1401
    %1762 = vmatprep.subr.bf16.mxu0 %v1410
    %1763 = vmatpush1.bf16.msra.mxu0 %v1409
    %1764 = vmatprep.subr.bf16.mxu0 %v1418
    %1765 = vmatpush1.bf16.msra.mxu0 %v1417
    %1766 = vmatprep.subr.bf16.mxu0 %v1426
    %1767 = vmatpush1.bf16.msra.mxu0 %v1425
    %1768 = vmatprep.subr.bf16.mxu0 %v1434
    %1769 = vmatpush1.bf16.msra.mxu0 %v1433
    %1770 = vmatprep.mubr.bf16.mxu0 %v118
    %1771 = vmatmul.mubr.bf16.gmra.mrb[0].mxu0 %v117
    %v1772 = vpop.f32.mrb[0].mxu0
    %v1773 = vadd.f32 %v1732, %v1772
    %v1774 = vpop.f32.mrb[0].mxu0
    %v1775 = vadd.f32 %v1734, %v1774
    %v1776 = vpop.f32.mrb[0].mxu0
    %v1777 = vpop.f32.mrb[0].mxu0
    %1778 = vdwg.mxu0
    %1779 = vmatprep.subr.bf16.mxu0 %v1188
    %1780 = vmatpush1.bf16.msra.mxu0 %v1187
    %1781 = vmatprep.subr.bf16.mxu0 %v1196
    %1782 = vmatpush1.bf16.msra.mxu0 %v1195
    %1783 = vmatprep.subr.bf16.mxu0 %v1204
    %1784 = vmatpush1.bf16.msra.mxu0 %v1203
    %1785 = vmatprep.subr.bf16.mxu0 %v1212
    %1786 = vmatpush1.bf16.msra.mxu0 %v1211
    %1787 = vmatprep.subr.bf16.mxu0 %v1220
    %1788 = vmatpush1.bf16.msra.mxu0 %v1219
    %1789 = vmatprep.subr.bf16.mxu0 %v1228
    %1790 = vmatpush1.bf16.msra.mxu0 %v1227
    %1791 = vmatprep.subr.bf16.mxu0 %v1236
    %1792 = vmatpush1.bf16.msra.mxu0 %v1235
    %1793 = vmatprep.subr.bf16.mxu0 %v1244
    %1794 = vmatpush1.bf16.msra.mxu0 %v1243
    %1795 = vmatprep.subr.bf16.mxu0 %v1252
    %1796 = vmatpush1.bf16.msra.mxu0 %v1251
    %1797 = vmatprep.subr.bf16.mxu0 %v1260
    %1798 = vmatpush1.bf16.msra.mxu0 %v1259
    %1799 = vmatprep.subr.bf16.mxu0 %v1268
    %1800 = vmatpush1.bf16.msra.mxu0 %v1267
    %1801 = vmatprep.subr.bf16.mxu0 %v1276
    %1802 = vmatpush1.bf16.msra.mxu0 %v1275
    %1803 = vmatprep.subr.bf16.mxu0 %v1284
    %1804 = vmatpush1.bf16.msra.mxu0 %v1283
    %1805 = vmatprep.subr.bf16.mxu0 %v1292
    %1806 = vmatpush1.bf16.msra.mxu0 %v1291
    %1807 = vmatprep.subr.bf16.mxu0 %v1300
    %1808 = vmatpush1.bf16.msra.mxu0 %v1299
    %1809 = vmatprep.subr.bf16.mxu0 %v1308
    %1810 = vmatpush1.bf16.msra.mxu0 %v1307
    %1811 = vmatprep.mubr.bf16.mxu0 %v116
    %1812 = vmatmul.mubr.bf16.gmra.mrb[0].mxu0 %v115
    %v1813 = vpop.f32.mrb[0].mxu0
    %v1814 = vadd.f32 %v388, %v1813
    %v1815 = vpop.f32.mrb[0].mxu0
    %v1816 = vadd.f32 %v392, %v1815
    %v1817 = vpop.f32.mrb[0].mxu0
    %v1818 = vpop.f32.mrb[0].mxu0
    %1819 = vdwg.mxu0
    %1820 = vmatprep.subr.bf16.mxu0 %v1316
    %1821 = vmatpush1.bf16.msra.mxu0 %v1315
    %1822 = vmatprep.subr.bf16.mxu0 %v1324
    %1823 = vmatpush1.bf16.msra.mxu0 %v1323
    %1824 = vmatprep.subr.bf16.mxu0 %v1332
    %1825 = vmatpush1.bf16.msra.mxu0 %v1331
    %1826 = vmatprep.subr.bf16.mxu0 %v1340
    %1827 = vmatpush1.bf16.msra.mxu0 %v1339
    %1828 = vmatprep.subr.bf16.mxu0 %v1348
    %1829 = vmatpush1.bf16.msra.mxu0 %v1347
    %1830 = vmatprep.subr.bf16.mxu0 %v1356
    %1831 = vmatpush1.bf16.msra.mxu0 %v1355
    %1832 = vmatprep.subr.bf16.mxu0 %v1364
    %1833 = vmatpush1.bf16.msra.mxu0 %v1363
    %1834 = vmatprep.subr.bf16.mxu0 %v1372
    %1835 = vmatpush1.bf16.msra.mxu0 %v1371
    %1836 = vmatprep.subr.bf16.mxu0 %v1380
    %1837 = vmatpush1.bf16.msra.mxu0 %v1379
    %1838 = vmatprep.subr.bf16.mxu0 %v1388
    %1839 = vmatpush1.bf16.msra.mxu0 %v1387
    %1840 = vmatprep.subr.bf16.mxu0 %v1396
    %1841 = vmatpush1.bf16.msra.mxu0 %v1395
    %1842 = vmatprep.subr.bf16.mxu0 %v1404
    %1843 = vmatpush1.bf16.msra.mxu0 %v1403
    %1844 = vmatprep.subr.bf16.mxu0 %v1412
    %1845 = vmatpush1.bf16.msra.mxu0 %v1411
    %1846 = vmatprep.subr.bf16.mxu0 %v1420
    %1847 = vmatpush1.bf16.msra.mxu0 %v1419
    %1848 = vmatprep.subr.bf16.mxu0 %v1428
    %1849 = vmatpush1.bf16.msra.mxu0 %v1427
    %1850 = vmatprep.subr.bf16.mxu0 %v1436
    %1851 = vmatpush1.bf16.msra.mxu0 %v1435
    %1852 = vmatprep.mubr.bf16.mxu0 %v118
    %1853 = vmatmul.mubr.bf16.gmra.mrb[0].mxu0 %v117
    %v1854 = vpop.f32.mrb[0].mxu0
    %v1855 = vadd.f32 %v1814, %v1854
    %v1856 = vpop.f32.mrb[0].mxu0
    %v1857 = vadd.f32 %v1816, %v1856
    %v1858 = vpop.f32.mrb[0].mxu0
    %v1859 = vpop.f32.mrb[0].mxu0
    %1860 = vdwg.mxu0
    %1861 = vmatprep.subr.bf16.mxu0 %v1190
    %1862 = vmatpush1.bf16.msra.mxu0 %v1189
    %1863 = vmatprep.subr.bf16.mxu0 %v1198
    %1864 = vmatpush1.bf16.msra.mxu0 %v1197
    %1865 = vmatprep.subr.bf16.mxu0 %v1206
    %1866 = vmatpush1.bf16.msra.mxu0 %v1205
    %1867 = vmatprep.subr.bf16.mxu0 %v1214
    %1868 = vmatpush1.bf16.msra.mxu0 %v1213
    %1869 = vmatprep.subr.bf16.mxu0 %v1222
    %1870 = vmatpush1.bf16.msra.mxu0 %v1221
    %1871 = vmatprep.subr.bf16.mxu0 %v1230
    %1872 = vmatpush1.bf16.msra.mxu0 %v1229
    %1873 = vmatprep.subr.bf16.mxu0 %v1238
    %1874 = vmatpush1.bf16.msra.mxu0 %v1237
    %1875 = vmatprep.subr.bf16.mxu0 %v1246
    %1876 = vmatpush1.bf16.msra.mxu0 %v1245
    %1877 = vmatprep.subr.bf16.mxu0 %v1254
    %1878 = vmatpush1.bf16.msra.mxu0 %v1253
    %1879 = vmatprep.subr.bf16.mxu0 %v1262
    %1880 = vmatpush1.bf16.msra.mxu0 %v1261
    %1881 = vmatprep.subr.bf16.mxu0 %v1270
    %1882 = vmatpush1.bf16.msra.mxu0 %v1269
    %1883 = vmatprep.subr.bf16.mxu0 %v1278
    %1884 = vmatpush1.bf16.msra.mxu0 %v1277
    %1885 = vmatprep.subr.bf16.mxu0 %v1286
    %1886 = vmatpush1.bf16.msra.mxu0 %v1285
    %1887 = vmatprep.subr.bf16.mxu0 %v1294
    %1888 = vmatpush1.bf16.msra.mxu0 %v1293
    %1889 = vmatprep.subr.bf16.mxu0 %v1302
    %1890 = vmatpush1.bf16.msra.mxu0 %v1301
    %1891 = vmatprep.subr.bf16.mxu0 %v1310
    %1892 = vmatpush1.bf16.msra.mxu0 %v1309
    %1893 = vmatprep.mubr.bf16.mxu0 %v116
    %1894 = vmatmul.mubr.bf16.gmra.mrb[0].mxu0 %v115
    %v1895 = vpop.f32.mrb[0].mxu0
    %v1896 = vadd.f32 %v396, %v1895
    %v1897 = vpop.f32.mrb[0].mxu0
    %v1898 = vadd.f32 %v400, %v1897
    %v1899 = vpop.f32.mrb[0].mxu0
    %v1900 = vpop.f32.mrb[0].mxu0
    %1901 = vdwg.mxu0
    %1902 = vmatprep.subr.bf16.mxu0 %v1318
    %1903 = vmatpush1.bf16.msra.mxu0 %v1317
    %1904 = vmatprep.subr.bf16.mxu0 %v1326
    %1905 = vmatpush1.bf16.msra.mxu0 %v1325
    %1906 = vmatprep.subr.bf16.mxu0 %v1334
    %1907 = vmatpush1.bf16.msra.mxu0 %v1333
    %1908 = vmatprep.subr.bf16.mxu0 %v1342
    %1909 = vmatpush1.bf16.msra.mxu0 %v1341
    %1910 = vmatprep.subr.bf16.mxu0 %v1350
    %1911 = vmatpush1.bf16.msra.mxu0 %v1349
    %1912 = vmatprep.subr.bf16.mxu0 %v1358
    %1913 = vmatpush1.bf16.msra.mxu0 %v1357
    %1914 = vmatprep.subr.bf16.mxu0 %v1366
    %1915 = vmatpush1.bf16.msra.mxu0 %v1365
    %1916 = vmatprep.subr.bf16.mxu0 %v1374
    %1917 = vmatpush1.bf16.msra.mxu0 %v1373
    %1918 = vmatprep.subr.bf16.mxu0 %v1382
    %1919 = vmatpush1.bf16.msra.mxu0 %v1381
    %1920 = vmatprep.subr.bf16.mxu0 %v1390
    %1921 = vmatpush1.bf16.msra.mxu0 %v1389
    %1922 = vmatprep.subr.bf16.mxu0 %v1398
    %1923 = vmatpush1.bf16.msra.mxu0 %v1397
    %1924 = vmatprep.subr.bf16.mxu0 %v1406
    %1925 = vmatpush1.bf16.msra.mxu0 %v1405
    %1926 = vmatprep.subr.bf16.mxu0 %v1414
    %1927 = vmatpush1.bf16.msra.mxu0 %v1413
    %1928 = vmatprep.subr.bf16.mxu0 %v1422
    %1929 = vmatpush1.bf16.msra.mxu0 %v1421
    %1930 = vmatprep.subr.bf16.mxu0 %v1430
    %1931 = vmatpush1.bf16.msra.mxu0 %v1429
    %1932 = vmatprep.subr.bf16.mxu0 %v1438
    %1933 = vmatpush1.bf16.msra.mxu0 %v1437
    %1934 = vmatprep.mubr.bf16.mxu0 %v118
    %1935 = vmatmul.mubr.bf16.gmra.mrb[0].mxu0 %v117
    %v1936 = vpop.f32.mrb[0].mxu0
    %v1937 = vadd.f32 %v1896, %v1936
    %v1938 = vpop.f32.mrb[0].mxu0
    %v1939 = vadd.f32 %v1898, %v1938
    %v1940 = vpop.f32.mrb[0].mxu0
    %v1941 = vpop.f32.mrb[0].mxu0
    %1942 = vdwg.mxu0
    %1943 = vmatprep.subr.bf16.mxu0 %v1192
    %1944 = vmatpush1.bf16.msra.mxu0 %v1191
    %1945 = vmatprep.subr.bf16.mxu0 %v1200
    %1946 = vmatpush1.bf16.msra.mxu0 %v1199
    %1947 = vmatprep.subr.bf16.mxu0 %v1208
    %1948 = vmatpush1.bf16.msra.mxu0 %v1207
    %1949 = vmatprep.subr.bf16.mxu0 %v1216
    %1950 = vmatpush1.bf16.msra.mxu0 %v1215
    %1951 = vmatprep.subr.bf16.mxu0 %v1224
    %1952 = vmatpush1.bf16.msra.mxu0 %v1223
    %1953 = vmatprep.subr.bf16.mxu0 %v1232
    %1954 = vmatpush1.bf16.msra.mxu0 %v1231
    %1955 = vmatprep.subr.bf16.mxu0 %v1240
    %1956 = vmatpush1.bf16.msra.mxu0 %v1239
    %1957 = vmatprep.subr.bf16.mxu0 %v1248
    %1958 = vmatpush1.bf16.msra.mxu0 %v1247
    %1959 = vmatprep.subr.bf16.mxu0 %v1256
    %1960 = vmatpush1.bf16.msra.mxu0 %v1255
    %1961 = vmatprep.subr.bf16.mxu0 %v1264
    %1962 = vmatpush1.bf16.msra.mxu0 %v1263
    %1963 = vmatprep.subr.bf16.mxu0 %v1272
    %1964 = vmatpush1.bf16.msra.mxu0 %v1271
    %1965 = vmatprep.subr.bf16.mxu0 %v1280
    %1966 = vmatpush1.bf16.msra.mxu0 %v1279
    %1967 = vmatprep.subr.bf16.mxu0 %v1288
    %1968 = vmatpush1.bf16.msra.mxu0 %v1287
    %1969 = vmatprep.subr.bf16.mxu0 %v1296
    %1970 = vmatpush1.bf16.msra.mxu0 %v1295
    %1971 = vmatprep.subr.bf16.mxu0 %v1304
    %1972 = vmatpush1.bf16.msra.mxu0 %v1303
    %1973 = vmatprep.subr.bf16.mxu0 %v1312
    %1974 = vmatpush1.bf16.msra.mxu0 %v1311
    %1975 = vmatprep.mubr.bf16.mxu0 %v116
    %1976 = vmatmul.mubr.bf16.gmra.mrb[0].mxu0 %v115
    %v1977 = vpop.f32.mrb[0].mxu0
    %v1978 = vadd.f32 %v404, %v1977
    %v1979 = vpop.f32.mrb[0].mxu0
    %v1980 = vadd.f32 %v408, %v1979
    %v1981 = vpop.f32.mrb[0].mxu0
    %v1982 = vpop.f32.mrb[0].mxu0
    %1983 = vdwg.mxu0
    %1984 = vmatprep.subr.bf16.mxu0 %v1320
    %1985 = vmatpush1.bf16.msra.mxu0 %v1319
    %1986 = vmatprep.subr.bf16.mxu0 %v1328
    %1987 = vmatpush1.bf16.msra.mxu0 %v1327
    %1988 = vmatprep.subr.bf16.mxu0 %v1336
    %1989 = vmatpush1.bf16.msra.mxu0 %v1335
    %1990 = vmatprep.subr.bf16.mxu0 %v1344
    %1991 = vmatpush1.bf16.msra.mxu0 %v1343
    %1992 = vmatprep.subr.bf16.mxu0 %v1352
    %1993 = vmatpush1.bf16.msra.mxu0 %v1351
    %1994 = vmatprep.subr.bf16.mxu0 %v1360
    %1995 = vmatpush1.bf16.msra.mxu0 %v1359
    %1996 = vmatprep.subr.bf16.mxu0 %v1368
    %1997 = vmatpush1.bf16.msra.mxu0 %v1367
    %1998 = vmatprep.subr.bf16.mxu0 %v1376
    %1999 = vmatpush1.bf16.msra.mxu0 %v1375
    %2000 = vmatprep.subr.bf16.mxu0 %v1384
    %2001 = vmatpush1.bf16.msra.mxu0 %v1383
    %2002 = vmatprep.subr.bf16.mxu0 %v1392
    %2003 = vmatpush1.bf16.msra.mxu0 %v1391
    %2004 = vmatprep.subr.bf16.mxu0 %v1400
    %2005 = vmatpush1.bf16.msra.mxu0 %v1399
    %2006 = vmatprep.subr.bf16.mxu0 %v1408
    %2007 = vmatpush1.bf16.msra.mxu0 %v1407
    %2008 = vmatprep.subr.bf16.mxu0 %v1416
    %2009 = vmatpush1.bf16.msra.mxu0 %v1415
    %2010 = vmatprep.subr.bf16.mxu0 %v1424
    %2011 = vmatpush1.bf16.msra.mxu0 %v1423
    %2012 = vmatprep.subr.bf16.mxu0 %v1432
    %2013 = vmatpush1.bf16.msra.mxu0 %v1431
    %2014 = vmatprep.subr.bf16.mxu0 %v1440
    %2015 = vmatpush1.bf16.msra.mxu0 %v1439
    %2016 = vmatprep.mubr.bf16.mxu0 %v118
    %2017 = vmatmul.mubr.bf16.gmra.mrb[0].mxu0 %v117
    %v2018 = vpop.f32.mrb[0].mxu0
    %v2019 = vadd.f32 %v1978, %v2018
    %v2020 = vpop.f32.mrb[0].mxu0
    %v2021 = vadd.f32 %v1980, %v2020
    %v2022 = vpop.f32.mrb[0].mxu0
    %v2023 = vpop.f32.mrb[0].mxu0
    %2024 = vdwg.mxu0
    %vm2025 = vcmp.ge.f32.partialorder %v1773, 0.0
    %vm2026 = vcmp.ge.f32.partialorder %v1775, 0.0
    %vm2027 = vcmp.ge.f32.partialorder %v1855, 0.0
    %vm2028 = vcmp.ge.f32.partialorder %v1857, 0.0
    %vm2029 = vcmp.ge.f32.partialorder %v1937, 0.0
    %vm2030 = vcmp.ge.f32.partialorder %v1939, 0.0
    %vm2031 = vcmp.ge.f32.partialorder %v2019, 0.0
    %vm2032 = vcmp.ge.f32.partialorder %v2021, 0.0
    %v2033 = vmul.f32 %v1773, 0.01
    %v2034 = vmul.f32 %v1775, 0.01
    %v2035 = vmul.f32 %v1855, 0.01
    %v2036 = vmul.f32 %v1857, 0.01
    %v2037 = vmul.f32 %v1937, 0.01
    %v2038 = vmul.f32 %v1939, 0.01
    %v2039 = vmul.f32 %v2019, 0.01
    %v2040 = vmul.f32 %v2021, 0.01
    %v2041 = vsel %vm2025, %v1773, %v2033
    %v2042 = vsel %vm2026, %v1775, %v2034
    %v2043 = vsel %vm2027, %v1855, %v2035
    %v2044 = vsel %vm2028, %v1857, %v2036
    %v2045 = vsel %vm2029, %v1937, %v2037
    %v2046 = vsel %vm2030, %v1939, %v2038
    %v2047 = vsel %vm2031, %v2019, %v2039
    %v2048 = vsel %vm2032, %v2021, %v2040
    %v2049 = vpack.c.bf16 %v2041, %v2041
    %v2050 = vpack.c.bf16 %v2042, %v2042
    %v2051 = vpack.c.bf16 %v2043, %v2043
    %v2052 = vpack.c.bf16 %v2044, %v2044
    %v2053 = vpack.c.bf16 %v2045, %v2045
    %v2054 = vpack.c.bf16 %v2046, %v2046
    %v2055 = vpack.c.bf16 %v2047, %v2047
    %v2056 = vpack.c.bf16 %v2048, %v2048
    %v2057 = vld [vmem:[#allocation8] sm:$0xff]
    %v2058 = vld [vmem:[#allocation8 + $0x8] sm:$0xff]
    %v2059 = vld [vmem:[#allocation8 + $0x10] sm:$0xff]
    %v2060 = vld [vmem:[#allocation8 + $0x18] sm:$0xff]
    %v2061 = vld [vmem:[#allocation8 + $0x20] sm:$0xff]
    %v2062 = vld [vmem:[#allocation8 + $0x28] sm:$0xff]
    %v2063 = vld [vmem:[#allocation8 + $0x30] sm:$0xff]
    %v2064 = vld [vmem:[#allocation8 + $0x38] sm:$0xff]
    %v2065 = vld [vmem:[#allocation8 + $0x40] sm:$0xff]
    %v2066 = vld [vmem:[#allocation8 + $0x48] sm:$0xff]
    %v2067 = vld [vmem:[#allocation8 + $0x50] sm:$0xff]
    %v2068 = vld [vmem:[#allocation8 + $0x58] sm:$0xff]
    %v2069 = vld [vmem:[#allocation8 + $0x60] sm:$0xff]
    %v2070 = vld [vmem:[#allocation8 + $0x68] sm:$0xff]
    %v2071 = vld [vmem:[#allocation8 + $0x70] sm:$0xff]
    %v2072 = vld [vmem:[#allocation8 + $0x78] sm:$0xff]
    %v2073 = vld [vmem:[#allocation8 + $0x80] sm:$0xff]
    %v2074 = vld [vmem:[#allocation8 + $0x88] sm:$0xff]
    %v2075 = vld [vmem:[#allocation8 + $0x90] sm:$0xff]
    %v2076 = vld [vmem:[#allocation8 + $0x98] sm:$0xff]
    %v2077 = vld [vmem:[#allocation8 + $0xa0] sm:$0xff]
    %v2078 = vld [vmem:[#allocation8 + $0xa8] sm:$0xff]
    %v2079 = vld [vmem:[#allocation8 + $0xb0] sm:$0xff]
    %v2080 = vld [vmem:[#allocation8 + $0xb8] sm:$0xff]
    %v2081 = vld [vmem:[#allocation8 + $0xc0] sm:$0xff]
    %v2082 = vld [vmem:[#allocation8 + $0xc8] sm:$0xff]
    %v2083 = vld [vmem:[#allocation8 + $0xd0] sm:$0xff]
    %v2084 = vld [vmem:[#allocation8 + $0xd8] sm:$0xff]
    %v2085 = vld [vmem:[#allocation8 + $0xe0] sm:$0xff]
    %v2086 = vld [vmem:[#allocation8 + $0xe8] sm:$0xff]
    %v2087 = vld [vmem:[#allocation8 + $0xf0] sm:$0xff]
    %v2088 = vld [vmem:[#allocation8 + $0xf8] sm:$0xff]
    %v2089 = vld [vmem:[#allocation8 + $0x100] sm:$0xff]
    %v2090 = vld [vmem:[#allocation8 + $0x108] sm:$0xff]
    %v2091 = vld [vmem:[#allocation8 + $0x110] sm:$0xff]
    %v2092 = vld [vmem:[#allocation8 + $0x118] sm:$0xff]
    %v2093 = vld [vmem:[#allocation8 + $0x120] sm:$0xff]
    %v2094 = vld [vmem:[#allocation8 + $0x128] sm:$0xff]
    %v2095 = vld [vmem:[#allocation8 + $0x130] sm:$0xff]
    %v2096 = vld [vmem:[#allocation8 + $0x138] sm:$0xff]
    %v2097 = vld [vmem:[#allocation8 + $0x140] sm:$0xff]
    %v2098 = vld [vmem:[#allocation8 + $0x148] sm:$0xff]
    %v2099 = vld [vmem:[#allocation8 + $0x150] sm:$0xff]
    %v2100 = vld [vmem:[#allocation8 + $0x158] sm:$0xff]
    %v2101 = vld [vmem:[#allocation8 + $0x160] sm:$0xff]
    %v2102 = vld [vmem:[#allocation8 + $0x168] sm:$0xff]
    %v2103 = vld [vmem:[#allocation8 + $0x170] sm:$0xff]
    %v2104 = vld [vmem:[#allocation8 + $0x178] sm:$0xff]
    %v2105 = vld [vmem:[#allocation8 + $0x180] sm:$0xff]
    %v2106 = vld [vmem:[#allocation8 + $0x188] sm:$0xff]
    %v2107 = vld [vmem:[#allocation8 + $0x190] sm:$0xff]
    %v2108 = vld [vmem:[#allocation8 + $0x198] sm:$0xff]
    %v2109 = vld [vmem:[#allocation8 + $0x1a0] sm:$0xff]
    %v2110 = vld [vmem:[#allocation8 + $0x1a8] sm:$0xff]
    %v2111 = vld [vmem:[#allocation8 + $0x1b0] sm:$0xff]
    %v2112 = vld [vmem:[#allocation8 + $0x1b8] sm:$0xff]
    %v2113 = vld [vmem:[#allocation8 + $0x1c0] sm:$0xff]
    %v2114 = vld [vmem:[#allocation8 + $0x1c8] sm:$0xff]
    %v2115 = vld [vmem:[#allocation8 + $0x1d0] sm:$0xff]
    %v2116 = vld [vmem:[#allocation8 + $0x1d8] sm:$0xff]
    %v2117 = vld [vmem:[#allocation8 + $0x1e0] sm:$0xff]
    %v2118 = vld [vmem:[#allocation8 + $0x1e8] sm:$0xff]
    %v2119 = vld [vmem:[#allocation8 + $0x1f0] sm:$0xff]
    %v2120 = vld [vmem:[#allocation8 + $0x1f8] sm:$0xff]
    %v2121 = vld [vmem:[#allocation8 + $0x200] sm:$0xff]
    %v2122 = vld [vmem:[#allocation8 + $0x208] sm:$0xff]
    %v2123 = vld [vmem:[#allocation8 + $0x210] sm:$0xff]
    %v2124 = vld [vmem:[#allocation8 + $0x218] sm:$0xff]
    %v2125 = vld [vmem:[#allocation8 + $0x220] sm:$0xff]
    %v2126 = vld [vmem:[#allocation8 + $0x228] sm:$0xff]
    %v2127 = vld [vmem:[#allocation8 + $0x230] sm:$0xff]
    %v2128 = vld [vmem:[#allocation8 + $0x238] sm:$0xff]
    %v2129 = vld [vmem:[#allocation8 + $0x240] sm:$0xff]
    %v2130 = vld [vmem:[#allocation8 + $0x248] sm:$0xff]
    %v2131 = vld [vmem:[#allocation8 + $0x250] sm:$0xff]
    %v2132 = vld [vmem:[#allocation8 + $0x258] sm:$0xff]
    %v2133 = vld [vmem:[#allocation8 + $0x260] sm:$0xff]
    %v2134 = vld [vmem:[#allocation8 + $0x268] sm:$0xff]
    %v2135 = vld [vmem:[#allocation8 + $0x270] sm:$0xff]
    %v2136 = vld [vmem:[#allocation8 + $0x278] sm:$0xff]
    %v2137 = vld [vmem:[#allocation8 + $0x280] sm:$0xff]
    %v2138 = vld [vmem:[#allocation8 + $0x288] sm:$0xff]
    %v2139 = vld [vmem:[#allocation8 + $0x290] sm:$0xff]
    %v2140 = vld [vmem:[#allocation8 + $0x298] sm:$0xff]
    %v2141 = vld [vmem:[#allocation8 + $0x2a0] sm:$0xff]
    %v2142 = vld [vmem:[#allocation8 + $0x2a8] sm:$0xff]
    %v2143 = vld [vmem:[#allocation8 + $0x2b0] sm:$0xff]
    %v2144 = vld [vmem:[#allocation8 + $0x2b8] sm:$0xff]
    %v2145 = vld [vmem:[#allocation8 + $0x2c0] sm:$0xff]
    %v2146 = vld [vmem:[#allocation8 + $0x2c8] sm:$0xff]
    %v2147 = vld [vmem:[#allocation8 + $0x2d0] sm:$0xff]
    %v2148 = vld [vmem:[#allocation8 + $0x2d8] sm:$0xff]
    %v2149 = vld [vmem:[#allocation8 + $0x2e0] sm:$0xff]
    %v2150 = vld [vmem:[#allocation8 + $0x2e8] sm:$0xff]
    %v2151 = vld [vmem:[#allocation8 + $0x2f0] sm:$0xff]
    %v2152 = vld [vmem:[#allocation8 + $0x2f8] sm:$0xff]
    %v2153 = vld [vmem:[#allocation8 + $0x300] sm:$0xff]
    %v2154 = vld [vmem:[#allocation8 + $0x308] sm:$0xff]
    %v2155 = vld [vmem:[#allocation8 + $0x310] sm:$0xff]
    %v2156 = vld [vmem:[#allocation8 + $0x318] sm:$0xff]
    %v2157 = vld [vmem:[#allocation8 + $0x320] sm:$0xff]
    %v2158 = vld [vmem:[#allocation8 + $0x328] sm:$0xff]
    %v2159 = vld [vmem:[#allocation8 + $0x330] sm:$0xff]
    %v2160 = vld [vmem:[#allocation8 + $0x338] sm:$0xff]
    %v2161 = vld [vmem:[#allocation8 + $0x340] sm:$0xff]
    %v2162 = vld [vmem:[#allocation8 + $0x348] sm:$0xff]
    %v2163 = vld [vmem:[#allocation8 + $0x350] sm:$0xff]
    %v2164 = vld [vmem:[#allocation8 + $0x358] sm:$0xff]
    %v2165 = vld [vmem:[#allocation8 + $0x360] sm:$0xff]
    %v2166 = vld [vmem:[#allocation8 + $0x368] sm:$0xff]
    %v2167 = vld [vmem:[#allocation8 + $0x370] sm:$0xff]
    %v2168 = vld [vmem:[#allocation8 + $0x378] sm:$0xff]
    %v2169 = vld [vmem:[#allocation8 + $0x380] sm:$0xff]
    %v2170 = vld [vmem:[#allocation8 + $0x388] sm:$0xff]
    %v2171 = vld [vmem:[#allocation8 + $0x390] sm:$0xff]
    %v2172 = vld [vmem:[#allocation8 + $0x398] sm:$0xff]
    %v2173 = vld [vmem:[#allocation8 + $0x3a0] sm:$0xff]
    %v2174 = vld [vmem:[#allocation8 + $0x3a8] sm:$0xff]
    %v2175 = vld [vmem:[#allocation8 + $0x3b0] sm:$0xff]
    %v2176 = vld [vmem:[#allocation8 + $0x3b8] sm:$0xff]
    %v2177 = vld [vmem:[#allocation8 + $0x3c0] sm:$0xff]
    %v2178 = vld [vmem:[#allocation8 + $0x3c8] sm:$0xff]
    %v2179 = vld [vmem:[#allocation8 + $0x3d0] sm:$0xff]
    %v2180 = vld [vmem:[#allocation8 + $0x3d8] sm:$0xff]
    %v2181 = vld [vmem:[#allocation8 + $0x3e0] sm:$0xff]
    %v2182 = vld [vmem:[#allocation8 + $0x3e8] sm:$0xff]
    %v2183 = vld [vmem:[#allocation8 + $0x3f0] sm:$0xff]
    %v2184 = vld [vmem:[#allocation8 + $0x3f8] sm:$0xff]
    %v2185 = vld [vmem:[#allocation8 + $0x400] sm:$0xff]
    %v2186 = vld [vmem:[#allocation8 + $0x408] sm:$0xff]
    %v2187 = vld [vmem:[#allocation8 + $0x410] sm:$0xff]
    %v2188 = vld [vmem:[#allocation8 + $0x418] sm:$0xff]
    %v2189 = vld [vmem:[#allocation8 + $0x420] sm:$0xff]
    %v2190 = vld [vmem:[#allocation8 + $0x428] sm:$0xff]
    %v2191 = vld [vmem:[#allocation8 + $0x430] sm:$0xff]
    %v2192 = vld [vmem:[#allocation8 + $0x438] sm:$0xff]
    %v2193 = vld [vmem:[#allocation8 + $0x440] sm:$0xff]
    %v2194 = vld [vmem:[#allocation8 + $0x448] sm:$0xff]
    %v2195 = vld [vmem:[#allocation8 + $0x450] sm:$0xff]
    %v2196 = vld [vmem:[#allocation8 + $0x458] sm:$0xff]
    %v2197 = vld [vmem:[#allocation8 + $0x460] sm:$0xff]
    %v2198 = vld [vmem:[#allocation8 + $0x468] sm:$0xff]
    %v2199 = vld [vmem:[#allocation8 + $0x470] sm:$0xff]
    %v2200 = vld [vmem:[#allocation8 + $0x478] sm:$0xff]
    %v2201 = vld [vmem:[#allocation8 + $0x480] sm:$0xff]
    %v2202 = vld [vmem:[#allocation8 + $0x488] sm:$0xff]
    %v2203 = vld [vmem:[#allocation8 + $0x490] sm:$0xff]
    %v2204 = vld [vmem:[#allocation8 + $0x498] sm:$0xff]
    %v2205 = vld [vmem:[#allocation8 + $0x4a0] sm:$0xff]
    %v2206 = vld [vmem:[#allocation8 + $0x4a8] sm:$0xff]
    %v2207 = vld [vmem:[#allocation8 + $0x4b0] sm:$0xff]
    %v2208 = vld [vmem:[#allocation8 + $0x4b8] sm:$0xff]
    %v2209 = vld [vmem:[#allocation8 + $0x4c0] sm:$0xff]
    %v2210 = vld [vmem:[#allocation8 + $0x4c8] sm:$0xff]
    %v2211 = vld [vmem:[#allocation8 + $0x4d0] sm:$0xff]
    %v2212 = vld [vmem:[#allocation8 + $0x4d8] sm:$0xff]
    %v2213 = vld [vmem:[#allocation8 + $0x4e0] sm:$0xff]
    %v2214 = vld [vmem:[#allocation8 + $0x4e8] sm:$0xff]
    %v2215 = vld [vmem:[#allocation8 + $0x4f0] sm:$0xff]
    %v2216 = vld [vmem:[#allocation8 + $0x4f8] sm:$0xff]
    %v2217 = vld [vmem:[#allocation8 + $0x500] sm:$0xff]
    %v2218 = vld [vmem:[#allocation8 + $0x508] sm:$0xff]
    %v2219 = vld [vmem:[#allocation8 + $0x510] sm:$0xff]
    %v2220 = vld [vmem:[#allocation8 + $0x518] sm:$0xff]
    %v2221 = vld [vmem:[#allocation8 + $0x520] sm:$0xff]
    %v2222 = vld [vmem:[#allocation8 + $0x528] sm:$0xff]
    %v2223 = vld [vmem:[#allocation8 + $0x530] sm:$0xff]
    %v2224 = vld [vmem:[#allocation8 + $0x538] sm:$0xff]
    %v2225 = vld [vmem:[#allocation8 + $0x540] sm:$0xff]
    %v2226 = vld [vmem:[#allocation8 + $0x548] sm:$0xff]
    %v2227 = vld [vmem:[#allocation8 + $0x550] sm:$0xff]
    %v2228 = vld [vmem:[#allocation8 + $0x558] sm:$0xff]
    %v2229 = vld [vmem:[#allocation8 + $0x560] sm:$0xff]
    %v2230 = vld [vmem:[#allocation8 + $0x568] sm:$0xff]
    %v2231 = vld [vmem:[#allocation8 + $0x570] sm:$0xff]
    %v2232 = vld [vmem:[#allocation8 + $0x578] sm:$0xff]
    %v2233 = vld [vmem:[#allocation8 + $0x580] sm:$0xff]
    %v2234 = vld [vmem:[#allocation8 + $0x588] sm:$0xff]
    %v2235 = vld [vmem:[#allocation8 + $0x590] sm:$0xff]
    %v2236 = vld [vmem:[#allocation8 + $0x598] sm:$0xff]
    %v2237 = vld [vmem:[#allocation8 + $0x5a0] sm:$0xff]
    %v2238 = vld [vmem:[#allocation8 + $0x5a8] sm:$0xff]
    %v2239 = vld [vmem:[#allocation8 + $0x5b0] sm:$0xff]
    %v2240 = vld [vmem:[#allocation8 + $0x5b8] sm:$0xff]
    %v2241 = vld [vmem:[#allocation8 + $0x5c0] sm:$0xff]
    %v2242 = vld [vmem:[#allocation8 + $0x5c8] sm:$0xff]
    %v2243 = vld [vmem:[#allocation8 + $0x5d0] sm:$0xff]
    %v2244 = vld [vmem:[#allocation8 + $0x5d8] sm:$0xff]
    %v2245 = vld [vmem:[#allocation8 + $0x5e0] sm:$0xff]
    %v2246 = vld [vmem:[#allocation8 + $0x5e8] sm:$0xff]
    %v2247 = vld [vmem:[#allocation8 + $0x5f0] sm:$0xff]
    %v2248 = vld [vmem:[#allocation8 + $0x5f8] sm:$0xff]
    %v2249 = vld [vmem:[#allocation8 + $0x600] sm:$0xff]
    %v2250 = vld [vmem:[#allocation8 + $0x608] sm:$0xff]
    %v2251 = vld [vmem:[#allocation8 + $0x610] sm:$0xff]
    %v2252 = vld [vmem:[#allocation8 + $0x618] sm:$0xff]
    %v2253 = vld [vmem:[#allocation8 + $0x620] sm:$0xff]
    %v2254 = vld [vmem:[#allocation8 + $0x628] sm:$0xff]
    %v2255 = vld [vmem:[#allocation8 + $0x630] sm:$0xff]
    %v2256 = vld [vmem:[#allocation8 + $0x638] sm:$0xff]
    %v2257 = vld [vmem:[#allocation8 + $0x640] sm:$0xff]
    %v2258 = vld [vmem:[#allocation8 + $0x648] sm:$0xff]
    %v2259 = vld [vmem:[#allocation8 + $0x650] sm:$0xff]
    %v2260 = vld [vmem:[#allocation8 + $0x658] sm:$0xff]
    %v2261 = vld [vmem:[#allocation8 + $0x660] sm:$0xff]
    %v2262 = vld [vmem:[#allocation8 + $0x668] sm:$0xff]
    %v2263 = vld [vmem:[#allocation8 + $0x670] sm:$0xff]
    %v2264 = vld [vmem:[#allocation8 + $0x678] sm:$0xff]
    %v2265 = vld [vmem:[#allocation8 + $0x680] sm:$0xff]
    %v2266 = vld [vmem:[#allocation8 + $0x688] sm:$0xff]
    %v2267 = vld [vmem:[#allocation8 + $0x690] sm:$0xff]
    %v2268 = vld [vmem:[#allocation8 + $0x698] sm:$0xff]
    %v2269 = vld [vmem:[#allocation8 + $0x6a0] sm:$0xff]
    %v2270 = vld [vmem:[#allocation8 + $0x6a8] sm:$0xff]
    %v2271 = vld [vmem:[#allocation8 + $0x6b0] sm:$0xff]
    %v2272 = vld [vmem:[#allocation8 + $0x6b8] sm:$0xff]
    %v2273 = vld [vmem:[#allocation8 + $0x6c0] sm:$0xff]
    %v2274 = vld [vmem:[#allocation8 + $0x6c8] sm:$0xff]
    %v2275 = vld [vmem:[#allocation8 + $0x6d0] sm:$0xff]
    %v2276 = vld [vmem:[#allocation8 + $0x6d8] sm:$0xff]
    %v2277 = vld [vmem:[#allocation8 + $0x6e0] sm:$0xff]
    %v2278 = vld [vmem:[#allocation8 + $0x6e8] sm:$0xff]
    %v2279 = vld [vmem:[#allocation8 + $0x6f0] sm:$0xff]
    %v2280 = vld [vmem:[#allocation8 + $0x6f8] sm:$0xff]
    %v2281 = vld [vmem:[#allocation8 + $0x700] sm:$0xff]
    %v2282 = vld [vmem:[#allocation8 + $0x708] sm:$0xff]
    %v2283 = vld [vmem:[#allocation8 + $0x710] sm:$0xff]
    %v2284 = vld [vmem:[#allocation8 + $0x718] sm:$0xff]
    %v2285 = vld [vmem:[#allocation8 + $0x720] sm:$0xff]
    %v2286 = vld [vmem:[#allocation8 + $0x728] sm:$0xff]
    %v2287 = vld [vmem:[#allocation8 + $0x730] sm:$0xff]
    %v2288 = vld [vmem:[#allocation8 + $0x738] sm:$0xff]
    %v2289 = vld [vmem:[#allocation8 + $0x740] sm:$0xff]
    %v2290 = vld [vmem:[#allocation8 + $0x748] sm:$0xff]
    %v2291 = vld [vmem:[#allocation8 + $0x750] sm:$0xff]
    %v2292 = vld [vmem:[#allocation8 + $0x758] sm:$0xff]
    %v2293 = vld [vmem:[#allocation8 + $0x760] sm:$0xff]
    %v2294 = vld [vmem:[#allocation8 + $0x768] sm:$0xff]
    %v2295 = vld [vmem:[#allocation8 + $0x770] sm:$0xff]
    %v2296 = vld [vmem:[#allocation8 + $0x778] sm:$0xff]
    %v2297 = vld [vmem:[#allocation8 + $0x780] sm:$0xff]
    %v2298 = vld [vmem:[#allocation8 + $0x788] sm:$0xff]
    %v2299 = vld [vmem:[#allocation8 + $0x790] sm:$0xff]
    %v2300 = vld [vmem:[#allocation8 + $0x798] sm:$0xff]
    %v2301 = vld [vmem:[#allocation8 + $0x7a0] sm:$0xff]
    %v2302 = vld [vmem:[#allocation8 + $0x7a8] sm:$0xff]
    %v2303 = vld [vmem:[#allocation8 + $0x7b0] sm:$0xff]
    %v2304 = vld [vmem:[#allocation8 + $0x7b8] sm:$0xff]
    %v2305 = vld [vmem:[#allocation8 + $0x7c0] sm:$0xff]
    %v2306 = vld [vmem:[#allocation8 + $0x7c8] sm:$0xff]
    %v2307 = vld [vmem:[#allocation8 + $0x7d0] sm:$0xff]
    %v2308 = vld [vmem:[#allocation8 + $0x7d8] sm:$0xff]
    %v2309 = vld [vmem:[#allocation8 + $0x7e0] sm:$0xff]
    %v2310 = vld [vmem:[#allocation8 + $0x7e8] sm:$0xff]
    %v2311 = vld [vmem:[#allocation8 + $0x7f0] sm:$0xff]
    %v2312 = vld [vmem:[#allocation8 + $0x7f8] sm:$0xff]
    %v2313 = vld [vmem:[%s4] sm:$0xf]
    %v2315 = vlaneseq
    %v2316 = vshrl.u32 %v2315, 7
    %v2317 = vsub.s32 0, %v2316
    %v2318 = vrot.slane %v2313, %v2317
    %v2319 = vlaneseq
    %v2320 = vshrl.u32 %v2319, 7
    %v2321 = vsub.s32 1, %v2320
    %v2322 = vrot.slane %v2313, %v2321
    %v2323 = vlaneseq
    %v2324 = vshrl.u32 %v2323, 7
    %v2325 = vsub.s32 2, %v2324
    %v2326 = vrot.slane %v2313, %v2325
    %v2327 = vlaneseq
    %v2328 = vshrl.u32 %v2327, 7
    %v2329 = vsub.s32 3, %v2328
    %v2330 = vrot.slane %v2313, %v2329
    %v2591 = vunpack.c.l.b16 %v2057
    %v2592 = vunpack.c.h.b16 %v2057
    %v2593 = vunpack.c.l.b16 %v2058
    %v2594 = vunpack.c.h.b16 %v2058
    %v2595 = vunpack.c.l.b16 %v2059
    %v2596 = vunpack.c.h.b16 %v2059
    %v2597 = vunpack.c.l.b16 %v2060
    %v2598 = vunpack.c.h.b16 %v2060
    %v2599 = vunpack.c.l.b16 %v2061
    %v2600 = vunpack.c.h.b16 %v2061
    %v2601 = vunpack.c.l.b16 %v2062
    %v2602 = vunpack.c.h.b16 %v2062
    %v2603 = vunpack.c.l.b16 %v2063
    %v2604 = vunpack.c.h.b16 %v2063
    %v2605 = vunpack.c.l.b16 %v2064
    %v2606 = vunpack.c.h.b16 %v2064
    %v2607 = vunpack.c.l.b16 %v2065
    %v2608 = vunpack.c.h.b16 %v2065
    %v2609 = vunpack.c.l.b16 %v2066
    %v2610 = vunpack.c.h.b16 %v2066
    %v2611 = vunpack.c.l.b16 %v2067
    %v2612 = vunpack.c.h.b16 %v2067
    %v2613 = vunpack.c.l.b16 %v2068
    %v2614 = vunpack.c.h.b16 %v2068
    %v2615 = vunpack.c.l.b16 %v2069
    %v2616 = vunpack.c.h.b16 %v2069
    %v2617 = vunpack.c.l.b16 %v2070
    %v2618 = vunpack.c.h.b16 %v2070
    %v2619 = vunpack.c.l.b16 %v2071
    %v2620 = vunpack.c.h.b16 %v2071
    %v2621 = vunpack.c.l.b16 %v2072
    %v2622 = vunpack.c.h.b16 %v2072
    %v2623 = vunpack.c.l.b16 %v2073
    %v2624 = vunpack.c.h.b16 %v2073
    %v2625 = vunpack.c.l.b16 %v2074
    %v2626 = vunpack.c.h.b16 %v2074
    %v2627 = vunpack.c.l.b16 %v2075
    %v2628 = vunpack.c.h.b16 %v2075
    %v2629 = vunpack.c.l.b16 %v2076
    %v2630 = vunpack.c.h.b16 %v2076
    %v2631 = vunpack.c.l.b16 %v2077
    %v2632 = vunpack.c.h.b16 %v2077
    %v2633 = vunpack.c.l.b16 %v2078
    %v2634 = vunpack.c.h.b16 %v2078
    %v2635 = vunpack.c.l.b16 %v2079
    %v2636 = vunpack.c.h.b16 %v2079
    %v2637 = vunpack.c.l.b16 %v2080
    %v2638 = vunpack.c.h.b16 %v2080
    %v2639 = vunpack.c.l.b16 %v2081
    %v2640 = vunpack.c.h.b16 %v2081
    %v2641 = vunpack.c.l.b16 %v2082
    %v2642 = vunpack.c.h.b16 %v2082
    %v2643 = vunpack.c.l.b16 %v2083
    %v2644 = vunpack.c.h.b16 %v2083
    %v2645 = vunpack.c.l.b16 %v2084
    %v2646 = vunpack.c.h.b16 %v2084
    %v2647 = vunpack.c.l.b16 %v2085
    %v2648 = vunpack.c.h.b16 %v2085
    %v2649 = vunpack.c.l.b16 %v2086
    %v2650 = vunpack.c.h.b16 %v2086
    %v2651 = vunpack.c.l.b16 %v2087
    %v2652 = vunpack.c.h.b16 %v2087
    %v2653 = vunpack.c.l.b16 %v2088
    %v2654 = vunpack.c.h.b16 %v2088
    %v2655 = vunpack.c.l.b16 %v2089
    %v2656 = vunpack.c.h.b16 %v2089
    %v2657 = vunpack.c.l.b16 %v2090
    %v2658 = vunpack.c.h.b16 %v2090
    %v2659 = vunpack.c.l.b16 %v2091
    %v2660 = vunpack.c.h.b16 %v2091
    %v2661 = vunpack.c.l.b16 %v2092
    %v2662 = vunpack.c.h.b16 %v2092
    %v2663 = vunpack.c.l.b16 %v2093
    %v2664 = vunpack.c.h.b16 %v2093
    %v2665 = vunpack.c.l.b16 %v2094
    %v2666 = vunpack.c.h.b16 %v2094
    %v2667 = vunpack.c.l.b16 %v2095
    %v2668 = vunpack.c.h.b16 %v2095
    %v2669 = vunpack.c.l.b16 %v2096
    %v2670 = vunpack.c.h.b16 %v2096
    %v2671 = vunpack.c.l.b16 %v2097
    %v2672 = vunpack.c.h.b16 %v2097
    %v2673 = vunpack.c.l.b16 %v2098
    %v2674 = vunpack.c.h.b16 %v2098
    %v2675 = vunpack.c.l.b16 %v2099
    %v2676 = vunpack.c.h.b16 %v2099
    %v2677 = vunpack.c.l.b16 %v2100
    %v2678 = vunpack.c.h.b16 %v2100
    %v2679 = vunpack.c.l.b16 %v2101
    %v2680 = vunpack.c.h.b16 %v2101
    %v2681 = vunpack.c.l.b16 %v2102
    %v2682 = vunpack.c.h.b16 %v2102
    %v2683 = vunpack.c.l.b16 %v2103
    %v2684 = vunpack.c.h.b16 %v2103
    %v2685 = vunpack.c.l.b16 %v2104
    %v2686 = vunpack.c.h.b16 %v2104
    %v2687 = vunpack.c.l.b16 %v2105
    %v2688 = vunpack.c.h.b16 %v2105
    %v2689 = vunpack.c.l.b16 %v2106
    %v2690 = vunpack.c.h.b16 %v2106
    %v2691 = vunpack.c.l.b16 %v2107
    %v2692 = vunpack.c.h.b16 %v2107
    %v2693 = vunpack.c.l.b16 %v2108
    %v2694 = vunpack.c.h.b16 %v2108
    %v2695 = vunpack.c.l.b16 %v2109
    %v2696 = vunpack.c.h.b16 %v2109
    %v2697 = vunpack.c.l.b16 %v2110
    %v2698 = vunpack.c.h.b16 %v2110
    %v2699 = vunpack.c.l.b16 %v2111
    %v2700 = vunpack.c.h.b16 %v2111
    %v2701 = vunpack.c.l.b16 %v2112
    %v2702 = vunpack.c.h.b16 %v2112
    %v2703 = vunpack.c.l.b16 %v2113
    %v2704 = vunpack.c.h.b16 %v2113
    %v2705 = vunpack.c.l.b16 %v2114
    %v2706 = vunpack.c.h.b16 %v2114
    %v2707 = vunpack.c.l.b16 %v2115
    %v2708 = vunpack.c.h.b16 %v2115
    %v2709 = vunpack.c.l.b16 %v2116
    %v2710 = vunpack.c.h.b16 %v2116
    %v2711 = vunpack.c.l.b16 %v2117
    %v2712 = vunpack.c.h.b16 %v2117
    %v2713 = vunpack.c.l.b16 %v2118
    %v2714 = vunpack.c.h.b16 %v2118
    %v2715 = vunpack.c.l.b16 %v2119
    %v2716 = vunpack.c.h.b16 %v2119
    %v2717 = vunpack.c.l.b16 %v2120
    %v2718 = vunpack.c.h.b16 %v2120
    %v2719 = vunpack.c.l.b16 %v2121
    %v2720 = vunpack.c.h.b16 %v2121
    %v2721 = vunpack.c.l.b16 %v2122
    %v2722 = vunpack.c.h.b16 %v2122
    %v2723 = vunpack.c.l.b16 %v2123
    %v2724 = vunpack.c.h.b16 %v2123
    %v2725 = vunpack.c.l.b16 %v2124
    %v2726 = vunpack.c.h.b16 %v2124
    %v2727 = vunpack.c.l.b16 %v2125
    %v2728 = vunpack.c.h.b16 %v2125
    %v2729 = vunpack.c.l.b16 %v2126
    %v2730 = vunpack.c.h.b16 %v2126
    %v2731 = vunpack.c.l.b16 %v2127
    %v2732 = vunpack.c.h.b16 %v2127
    %v2733 = vunpack.c.l.b16 %v2128
    %v2734 = vunpack.c.h.b16 %v2128
    %v2735 = vunpack.c.l.b16 %v2129
    %v2736 = vunpack.c.h.b16 %v2129
    %v2737 = vunpack.c.l.b16 %v2130
    %v2738 = vunpack.c.h.b16 %v2130
    %v2739 = vunpack.c.l.b16 %v2131
    %v2740 = vunpack.c.h.b16 %v2131
    %v2741 = vunpack.c.l.b16 %v2132
    %v2742 = vunpack.c.h.b16 %v2132
    %v2743 = vunpack.c.l.b16 %v2133
    %v2744 = vunpack.c.h.b16 %v2133
    %v2745 = vunpack.c.l.b16 %v2134
    %v2746 = vunpack.c.h.b16 %v2134
    %v2747 = vunpack.c.l.b16 %v2135
    %v2748 = vunpack.c.h.b16 %v2135
    %v2749 = vunpack.c.l.b16 %v2136
    %v2750 = vunpack.c.h.b16 %v2136
    %v2751 = vunpack.c.l.b16 %v2137
    %v2752 = vunpack.c.h.b16 %v2137
    %v2753 = vunpack.c.l.b16 %v2138
    %v2754 = vunpack.c.h.b16 %v2138
    %v2755 = vunpack.c.l.b16 %v2139
    %v2756 = vunpack.c.h.b16 %v2139
    %v2757 = vunpack.c.l.b16 %v2140
    %v2758 = vunpack.c.h.b16 %v2140
    %v2759 = vunpack.c.l.b16 %v2141
    %v2760 = vunpack.c.h.b16 %v2141
    %v2761 = vunpack.c.l.b16 %v2142
    %v2762 = vunpack.c.h.b16 %v2142
    %v2763 = vunpack.c.l.b16 %v2143
    %v2764 = vunpack.c.h.b16 %v2143
    %v2765 = vunpack.c.l.b16 %v2144
    %v2766 = vunpack.c.h.b16 %v2144
    %v2767 = vunpack.c.l.b16 %v2145
    %v2768 = vunpack.c.h.b16 %v2145
    %v2769 = vunpack.c.l.b16 %v2146
    %v2770 = vunpack.c.h.b16 %v2146
    %v2771 = vunpack.c.l.b16 %v2147
    %v2772 = vunpack.c.h.b16 %v2147
    %v2773 = vunpack.c.l.b16 %v2148
    %v2774 = vunpack.c.h.b16 %v2148
    %v2775 = vunpack.c.l.b16 %v2149
    %v2776 = vunpack.c.h.b16 %v2149
    %v2777 = vunpack.c.l.b16 %v2150
    %v2778 = vunpack.c.h.b16 %v2150
    %v2779 = vunpack.c.l.b16 %v2151
    %v2780 = vunpack.c.h.b16 %v2151
    %v2781 = vunpack.c.l.b16 %v2152
    %v2782 = vunpack.c.h.b16 %v2152
    %v2783 = vunpack.c.l.b16 %v2153
    %v2784 = vunpack.c.h.b16 %v2153
    %v2785 = vunpack.c.l.b16 %v2154
    %v2786 = vunpack.c.h.b16 %v2154
    %v2787 = vunpack.c.l.b16 %v2155
    %v2788 = vunpack.c.h.b16 %v2155
    %v2789 = vunpack.c.l.b16 %v2156
    %v2790 = vunpack.c.h.b16 %v2156
    %v2791 = vunpack.c.l.b16 %v2157
    %v2792 = vunpack.c.h.b16 %v2157
    %v2793 = vunpack.c.l.b16 %v2158
    %v2794 = vunpack.c.h.b16 %v2158
    %v2795 = vunpack.c.l.b16 %v2159
    %v2796 = vunpack.c.h.b16 %v2159
    %v2797 = vunpack.c.l.b16 %v2160
    %v2798 = vunpack.c.h.b16 %v2160
    %v2799 = vunpack.c.l.b16 %v2161
    %v2800 = vunpack.c.h.b16 %v2161
    %v2801 = vunpack.c.l.b16 %v2162
    %v2802 = vunpack.c.h.b16 %v2162
    %v2803 = vunpack.c.l.b16 %v2163
    %v2804 = vunpack.c.h.b16 %v2163
    %v2805 = vunpack.c.l.b16 %v2164
    %v2806 = vunpack.c.h.b16 %v2164
    %v2807 = vunpack.c.l.b16 %v2165
    %v2808 = vunpack.c.h.b16 %v2165
    %v2809 = vunpack.c.l.b16 %v2166
    %v2810 = vunpack.c.h.b16 %v2166
    %v2811 = vunpack.c.l.b16 %v2167
    %v2812 = vunpack.c.h.b16 %v2167
    %v2813 = vunpack.c.l.b16 %v2168
    %v2814 = vunpack.c.h.b16 %v2168
    %v2815 = vunpack.c.l.b16 %v2169
    %v2816 = vunpack.c.h.b16 %v2169
    %v2817 = vunpack.c.l.b16 %v2170
    %v2818 = vunpack.c.h.b16 %v2170
    %v2819 = vunpack.c.l.b16 %v2171
    %v2820 = vunpack.c.h.b16 %v2171
    %v2821 = vunpack.c.l.b16 %v2172
    %v2822 = vunpack.c.h.b16 %v2172
    %v2823 = vunpack.c.l.b16 %v2173
    %v2824 = vunpack.c.h.b16 %v2173
    %v2825 = vunpack.c.l.b16 %v2174
    %v2826 = vunpack.c.h.b16 %v2174
    %v2827 = vunpack.c.l.b16 %v2175
    %v2828 = vunpack.c.h.b16 %v2175
    %v2829 = vunpack.c.l.b16 %v2176
    %v2830 = vunpack.c.h.b16 %v2176
    %v2831 = vunpack.c.l.b16 %v2177
    %v2832 = vunpack.c.h.b16 %v2177
    %v2833 = vunpack.c.l.b16 %v2178
    %v2834 = vunpack.c.h.b16 %v2178
    %v2835 = vunpack.c.l.b16 %v2179
    %v2836 = vunpack.c.h.b16 %v2179
    %v2837 = vunpack.c.l.b16 %v2180
    %v2838 = vunpack.c.h.b16 %v2180
    %v2839 = vunpack.c.l.b16 %v2181
    %v2840 = vunpack.c.h.b16 %v2181
    %v2841 = vunpack.c.l.b16 %v2182
    %v2842 = vunpack.c.h.b16 %v2182
    %v2843 = vunpack.c.l.b16 %v2183
    %v2844 = vunpack.c.h.b16 %v2183
    %v2845 = vunpack.c.l.b16 %v2184
    %v2846 = vunpack.c.h.b16 %v2184
    %v2847 = vunpack.c.l.b16 %v2185
    %v2848 = vunpack.c.h.b16 %v2185
    %v2849 = vunpack.c.l.b16 %v2186
    %v2850 = vunpack.c.h.b16 %v2186
    %v2851 = vunpack.c.l.b16 %v2187
    %v2852 = vunpack.c.h.b16 %v2187
    %v2853 = vunpack.c.l.b16 %v2188
    %v2854 = vunpack.c.h.b16 %v2188
    %v2855 = vunpack.c.l.b16 %v2189
    %v2856 = vunpack.c.h.b16 %v2189
    %v2857 = vunpack.c.l.b16 %v2190
    %v2858 = vunpack.c.h.b16 %v2190
    %v2859 = vunpack.c.l.b16 %v2191
    %v2860 = vunpack.c.h.b16 %v2191
    %v2861 = vunpack.c.l.b16 %v2192
    %v2862 = vunpack.c.h.b16 %v2192
    %v2863 = vunpack.c.l.b16 %v2193
    %v2864 = vunpack.c.h.b16 %v2193
    %v2865 = vunpack.c.l.b16 %v2194
    %v2866 = vunpack.c.h.b16 %v2194
    %v2867 = vunpack.c.l.b16 %v2195
    %v2868 = vunpack.c.h.b16 %v2195
    %v2869 = vunpack.c.l.b16 %v2196
    %v2870 = vunpack.c.h.b16 %v2196
    %v2871 = vunpack.c.l.b16 %v2197
    %v2872 = vunpack.c.h.b16 %v2197
    %v2873 = vunpack.c.l.b16 %v2198
    %v2874 = vunpack.c.h.b16 %v2198
    %v2875 = vunpack.c.l.b16 %v2199
    %v2876 = vunpack.c.h.b16 %v2199
    %v2877 = vunpack.c.l.b16 %v2200
    %v2878 = vunpack.c.h.b16 %v2200
    %v2879 = vunpack.c.l.b16 %v2201
    %v2880 = vunpack.c.h.b16 %v2201
    %v2881 = vunpack.c.l.b16 %v2202
    %v2882 = vunpack.c.h.b16 %v2202
    %v2883 = vunpack.c.l.b16 %v2203
    %v2884 = vunpack.c.h.b16 %v2203
    %v2885 = vunpack.c.l.b16 %v2204
    %v2886 = vunpack.c.h.b16 %v2204
    %v2887 = vunpack.c.l.b16 %v2205
    %v2888 = vunpack.c.h.b16 %v2205
    %v2889 = vunpack.c.l.b16 %v2206
    %v2890 = vunpack.c.h.b16 %v2206
    %v2891 = vunpack.c.l.b16 %v2207
    %v2892 = vunpack.c.h.b16 %v2207
    %v2893 = vunpack.c.l.b16 %v2208
    %v2894 = vunpack.c.h.b16 %v2208
    %v2895 = vunpack.c.l.b16 %v2209
    %v2896 = vunpack.c.h.b16 %v2209
    %v2897 = vunpack.c.l.b16 %v2210
    %v2898 = vunpack.c.h.b16 %v2210
    %v2899 = vunpack.c.l.b16 %v2211
    %v2900 = vunpack.c.h.b16 %v2211
    %v2901 = vunpack.c.l.b16 %v2212
    %v2902 = vunpack.c.h.b16 %v2212
    %v2903 = vunpack.c.l.b16 %v2213
    %v2904 = vunpack.c.h.b16 %v2213
    %v2905 = vunpack.c.l.b16 %v2214
    %v2906 = vunpack.c.h.b16 %v2214
    %v2907 = vunpack.c.l.b16 %v2215
    %v2908 = vunpack.c.h.b16 %v2215
    %v2909 = vunpack.c.l.b16 %v2216
    %v2910 = vunpack.c.h.b16 %v2216
    %v2911 = vunpack.c.l.b16 %v2217
    %v2912 = vunpack.c.h.b16 %v2217
    %v2913 = vunpack.c.l.b16 %v2218
    %v2914 = vunpack.c.h.b16 %v2218
    %v2915 = vunpack.c.l.b16 %v2219
    %v2916 = vunpack.c.h.b16 %v2219
    %v2917 = vunpack.c.l.b16 %v2220
    %v2918 = vunpack.c.h.b16 %v2220
    %v2919 = vunpack.c.l.b16 %v2221
    %v2920 = vunpack.c.h.b16 %v2221
    %v2921 = vunpack.c.l.b16 %v2222
    %v2922 = vunpack.c.h.b16 %v2222
    %v2923 = vunpack.c.l.b16 %v2223
    %v2924 = vunpack.c.h.b16 %v2223
    %v2925 = vunpack.c.l.b16 %v2224
    %v2926 = vunpack.c.h.b16 %v2224
    %v2927 = vunpack.c.l.b16 %v2225
    %v2928 = vunpack.c.h.b16 %v2225
    %v2929 = vunpack.c.l.b16 %v2226
    %v2930 = vunpack.c.h.b16 %v2226
    %v2931 = vunpack.c.l.b16 %v2227
    %v2932 = vunpack.c.h.b16 %v2227
    %v2933 = vunpack.c.l.b16 %v2228
    %v2934 = vunpack.c.h.b16 %v2228
    %v2935 = vunpack.c.l.b16 %v2229
    %v2936 = vunpack.c.h.b16 %v2229
    %v2937 = vunpack.c.l.b16 %v2230
    %v2938 = vunpack.c.h.b16 %v2230
    %v2939 = vunpack.c.l.b16 %v2231
    %v2940 = vunpack.c.h.b16 %v2231
    %v2941 = vunpack.c.l.b16 %v2232
    %v2942 = vunpack.c.h.b16 %v2232
    %v2943 = vunpack.c.l.b16 %v2233
    %v2944 = vunpack.c.h.b16 %v2233
    %v2945 = vunpack.c.l.b16 %v2234
    %v2946 = vunpack.c.h.b16 %v2234
    %v2947 = vunpack.c.l.b16 %v2235
    %v2948 = vunpack.c.h.b16 %v2235
    %v2949 = vunpack.c.l.b16 %v2236
    %v2950 = vunpack.c.h.b16 %v2236
    %v2951 = vunpack.c.l.b16 %v2237
    %v2952 = vunpack.c.h.b16 %v2237
    %v2953 = vunpack.c.l.b16 %v2238
    %v2954 = vunpack.c.h.b16 %v2238
    %v2955 = vunpack.c.l.b16 %v2239
    %v2956 = vunpack.c.h.b16 %v2239
    %v2957 = vunpack.c.l.b16 %v2240
    %v2958 = vunpack.c.h.b16 %v2240
    %v2959 = vunpack.c.l.b16 %v2241
    %v2960 = vunpack.c.h.b16 %v2241
    %v2961 = vunpack.c.l.b16 %v2242
    %v2962 = vunpack.c.h.b16 %v2242
    %v2963 = vunpack.c.l.b16 %v2243
    %v2964 = vunpack.c.h.b16 %v2243
    %v2965 = vunpack.c.l.b16 %v2244
    %v2966 = vunpack.c.h.b16 %v2244
    %v2967 = vunpack.c.l.b16 %v2245
    %v2968 = vunpack.c.h.b16 %v2245
    %v2969 = vunpack.c.l.b16 %v2246
    %v2970 = vunpack.c.h.b16 %v2246
    %v2971 = vunpack.c.l.b16 %v2247
    %v2972 = vunpack.c.h.b16 %v2247
    %v2973 = vunpack.c.l.b16 %v2248
    %v2974 = vunpack.c.h.b16 %v2248
    %v2975 = vunpack.c.l.b16 %v2249
    %v2976 = vunpack.c.h.b16 %v2249
    %v2977 = vunpack.c.l.b16 %v2250
    %v2978 = vunpack.c.h.b16 %v2250
    %v2979 = vunpack.c.l.b16 %v2251
    %v2980 = vunpack.c.h.b16 %v2251
    %v2981 = vunpack.c.l.b16 %v2252
    %v2982 = vunpack.c.h.b16 %v2252
    %v2983 = vunpack.c.l.b16 %v2253
    %v2984 = vunpack.c.h.b16 %v2253
    %v2985 = vunpack.c.l.b16 %v2254
    %v2986 = vunpack.c.h.b16 %v2254
    %v2987 = vunpack.c.l.b16 %v2255
    %v2988 = vunpack.c.h.b16 %v2255
    %v2989 = vunpack.c.l.b16 %v2256
    %v2990 = vunpack.c.h.b16 %v2256
    %v2991 = vunpack.c.l.b16 %v2257
    %v2992 = vunpack.c.h.b16 %v2257
    %v2993 = vunpack.c.l.b16 %v2258
    %v2994 = vunpack.c.h.b16 %v2258
    %v2995 = vunpack.c.l.b16 %v2259
    %v2996 = vunpack.c.h.b16 %v2259
    %v2997 = vunpack.c.l.b16 %v2260
    %v2998 = vunpack.c.h.b16 %v2260
    %v2999 = vunpack.c.l.b16 %v2261
    %v3000 = vunpack.c.h.b16 %v2261
    %v3001 = vunpack.c.l.b16 %v2262
    %v3002 = vunpack.c.h.b16 %v2262
    %v3003 = vunpack.c.l.b16 %v2263
    %v3004 = vunpack.c.h.b16 %v2263
    %v3005 = vunpack.c.l.b16 %v2264
    %v3006 = vunpack.c.h.b16 %v2264
    %v3007 = vunpack.c.l.b16 %v2265
    %v3008 = vunpack.c.h.b16 %v2265
    %v3009 = vunpack.c.l.b16 %v2266
    %v3010 = vunpack.c.h.b16 %v2266
    %v3011 = vunpack.c.l.b16 %v2267
    %v3012 = vunpack.c.h.b16 %v2267
    %v3013 = vunpack.c.l.b16 %v2268
    %v3014 = vunpack.c.h.b16 %v2268
    %v3015 = vunpack.c.l.b16 %v2269
    %v3016 = vunpack.c.h.b16 %v2269
    %v3017 = vunpack.c.l.b16 %v2270
    %v3018 = vunpack.c.h.b16 %v2270
    %v3019 = vunpack.c.l.b16 %v2271
    %v3020 = vunpack.c.h.b16 %v2271
    %v3021 = vunpack.c.l.b16 %v2272
    %v3022 = vunpack.c.h.b16 %v2272
    %v3023 = vunpack.c.l.b16 %v2273
    %v3024 = vunpack.c.h.b16 %v2273
    %v3025 = vunpack.c.l.b16 %v2274
    %v3026 = vunpack.c.h.b16 %v2274
    %v3027 = vunpack.c.l.b16 %v2275
    %v3028 = vunpack.c.h.b16 %v2275
    %v3029 = vunpack.c.l.b16 %v2276
    %v3030 = vunpack.c.h.b16 %v2276
    %v3031 = vunpack.c.l.b16 %v2277
    %v3032 = vunpack.c.h.b16 %v2277
    %v3033 = vunpack.c.l.b16 %v2278
    %v3034 = vunpack.c.h.b16 %v2278
    %v3035 = vunpack.c.l.b16 %v2279
    %v3036 = vunpack.c.h.b16 %v2279
    %v3037 = vunpack.c.l.b16 %v2280
    %v3038 = vunpack.c.h.b16 %v2280
    %v3039 = vunpack.c.l.b16 %v2281
    %v3040 = vunpack.c.h.b16 %v2281
    %v3041 = vunpack.c.l.b16 %v2282
    %v3042 = vunpack.c.h.b16 %v2282
    %v3043 = vunpack.c.l.b16 %v2283
    %v3044 = vunpack.c.h.b16 %v2283
    %v3045 = vunpack.c.l.b16 %v2284
    %v3046 = vunpack.c.h.b16 %v2284
    %v3047 = vunpack.c.l.b16 %v2285
    %v3048 = vunpack.c.h.b16 %v2285
    %v3049 = vunpack.c.l.b16 %v2286
    %v3050 = vunpack.c.h.b16 %v2286
    %v3051 = vunpack.c.l.b16 %v2287
    %v3052 = vunpack.c.h.b16 %v2287
    %v3053 = vunpack.c.l.b16 %v2288
    %v3054 = vunpack.c.h.b16 %v2288
    %v3055 = vunpack.c.l.b16 %v2289
    %v3056 = vunpack.c.h.b16 %v2289
    %v3057 = vunpack.c.l.b16 %v2290
    %v3058 = vunpack.c.h.b16 %v2290
    %v3059 = vunpack.c.l.b16 %v2291
    %v3060 = vunpack.c.h.b16 %v2291
    %v3061 = vunpack.c.l.b16 %v2292
    %v3062 = vunpack.c.h.b16 %v2292
    %v3063 = vunpack.c.l.b16 %v2293
    %v3064 = vunpack.c.h.b16 %v2293
    %v3065 = vunpack.c.l.b16 %v2294
    %v3066 = vunpack.c.h.b16 %v2294
    %v3067 = vunpack.c.l.b16 %v2295
    %v3068 = vunpack.c.h.b16 %v2295
    %v3069 = vunpack.c.l.b16 %v2296
    %v3070 = vunpack.c.h.b16 %v2296
    %v3071 = vunpack.c.l.b16 %v2297
    %v3072 = vunpack.c.h.b16 %v2297
    %v3073 = vunpack.c.l.b16 %v2298
    %v3074 = vunpack.c.h.b16 %v2298
    %v3075 = vunpack.c.l.b16 %v2299
    %v3076 = vunpack.c.h.b16 %v2299
    %v3077 = vunpack.c.l.b16 %v2300
    %v3078 = vunpack.c.h.b16 %v2300
    %v3079 = vunpack.c.l.b16 %v2301
    %v3080 = vunpack.c.h.b16 %v2301
    %v3081 = vunpack.c.l.b16 %v2302
    %v3082 = vunpack.c.h.b16 %v2302
    %v3083 = vunpack.c.l.b16 %v2303
    %v3084 = vunpack.c.h.b16 %v2303
    %v3085 = vunpack.c.l.b16 %v2304
    %v3086 = vunpack.c.h.b16 %v2304
    %v3087 = vunpack.c.l.b16 %v2305
    %v3088 = vunpack.c.h.b16 %v2305
    %v3089 = vunpack.c.l.b16 %v2306
    %v3090 = vunpack.c.h.b16 %v2306
    %v3091 = vunpack.c.l.b16 %v2307
    %v3092 = vunpack.c.h.b16 %v2307
    %v3093 = vunpack.c.l.b16 %v2308
    %v3094 = vunpack.c.h.b16 %v2308
    %v3095 = vunpack.c.l.b16 %v2309
    %v3096 = vunpack.c.h.b16 %v2309
    %v3097 = vunpack.c.l.b16 %v2310
    %v3098 = vunpack.c.h.b16 %v2310
    %v3099 = vunpack.c.l.b16 %v2311
    %v3100 = vunpack.c.h.b16 %v2311
    %v3101 = vunpack.c.l.b16 %v2312
    %v3102 = vunpack.c.h.b16 %v2312
    %v3103 = vpack.c.b16 %v2595, %v2591
    %v3104 = vpack.c.b16 %v2596, %v2592
    %v3105 = vpack.c.b16 %v2597, %v2593
    %v3106 = vpack.c.b16 %v2598, %v2594
    %v3107 = vpack.c.b16 %v2603, %v2599
    %v3108 = vpack.c.b16 %v2604, %v2600
    %v3109 = vpack.c.b16 %v2605, %v2601
    %v3110 = vpack.c.b16 %v2606, %v2602
    %v3111 = vpack.c.b16 %v2611, %v2607
    %v3112 = vpack.c.b16 %v2612, %v2608
    %v3113 = vpack.c.b16 %v2613, %v2609
    %v3114 = vpack.c.b16 %v2614, %v2610
    %v3115 = vpack.c.b16 %v2619, %v2615
    %v3116 = vpack.c.b16 %v2620, %v2616
    %v3117 = vpack.c.b16 %v2621, %v2617
    %v3118 = vpack.c.b16 %v2622, %v2618
    %v3119 = vpack.c.b16 %v2627, %v2623
    %v3120 = vpack.c.b16 %v2628, %v2624
    %v3121 = vpack.c.b16 %v2629, %v2625
    %v3122 = vpack.c.b16 %v2630, %v2626
    %v3123 = vpack.c.b16 %v2635, %v2631
    %v3124 = vpack.c.b16 %v2636, %v2632
    %v3125 = vpack.c.b16 %v2637, %v2633
    %v3126 = vpack.c.b16 %v2638, %v2634
    %v3127 = vpack.c.b16 %v2643, %v2639
    %v3128 = vpack.c.b16 %v2644, %v2640
    %v3129 = vpack.c.b16 %v2645, %v2641
    %v3130 = vpack.c.b16 %v2646, %v2642
    %v3131 = vpack.c.b16 %v2651, %v2647
    %v3132 = vpack.c.b16 %v2652, %v2648
    %v3133 = vpack.c.b16 %v2653, %v2649
    %v3134 = vpack.c.b16 %v2654, %v2650
    %v3135 = vpack.c.b16 %v2659, %v2655
    %v3136 = vpack.c.b16 %v2660, %v2656
    %v3137 = vpack.c.b16 %v2661, %v2657
    %v3138 = vpack.c.b16 %v2662, %v2658
    %v3139 = vpack.c.b16 %v2667, %v2663
    %v3140 = vpack.c.b16 %v2668, %v2664
    %v3141 = vpack.c.b16 %v2669, %v2665
    %v3142 = vpack.c.b16 %v2670, %v2666
    %v3143 = vpack.c.b16 %v2675, %v2671
    %v3144 = vpack.c.b16 %v2676, %v2672
    %v3145 = vpack.c.b16 %v2677, %v2673
    %v3146 = vpack.c.b16 %v2678, %v2674
    %v3147 = vpack.c.b16 %v2683, %v2679
    %v3148 = vpack.c.b16 %v2684, %v2680
    %v3149 = vpack.c.b16 %v2685, %v2681
    %v3150 = vpack.c.b16 %v2686, %v2682
    %v3151 = vpack.c.b16 %v2691, %v2687
    %v3152 = vpack.c.b16 %v2692, %v2688
    %v3153 = vpack.c.b16 %v2693, %v2689
    %v3154 = vpack.c.b16 %v2694, %v2690
    %v3155 = vpack.c.b16 %v2699, %v2695
    %v3156 = vpack.c.b16 %v2700, %v2696
    %v3157 = vpack.c.b16 %v2701, %v2697
    %v3158 = vpack.c.b16 %v2702, %v2698
    %v3159 = vpack.c.b16 %v2707, %v2703
    %v3160 = vpack.c.b16 %v2708, %v2704
    %v3161 = vpack.c.b16 %v2709, %v2705
    %v3162 = vpack.c.b16 %v2710, %v2706
    %v3163 = vpack.c.b16 %v2715, %v2711
    %v3164 = vpack.c.b16 %v2716, %v2712
    %v3165 = vpack.c.b16 %v2717, %v2713
    %v3166 = vpack.c.b16 %v2718, %v2714
    %v3167 = vpack.c.b16 %v2723, %v2719
    %v3168 = vpack.c.b16 %v2724, %v2720
    %v3169 = vpack.c.b16 %v2725, %v2721
    %v3170 = vpack.c.b16 %v2726, %v2722
    %v3171 = vpack.c.b16 %v2731, %v2727
    %v3172 = vpack.c.b16 %v2732, %v2728
    %v3173 = vpack.c.b16 %v2733, %v2729
    %v3174 = vpack.c.b16 %v2734, %v2730
    %v3175 = vpack.c.b16 %v2739, %v2735
    %v3176 = vpack.c.b16 %v2740, %v2736
    %v3177 = vpack.c.b16 %v2741, %v2737
    %v3178 = vpack.c.b16 %v2742, %v2738
    %v3179 = vpack.c.b16 %v2747, %v2743
    %v3180 = vpack.c.b16 %v2748, %v2744
    %v3181 = vpack.c.b16 %v2749, %v2745
    %v3182 = vpack.c.b16 %v2750, %v2746
    %v3183 = vpack.c.b16 %v2755, %v2751
    %v3184 = vpack.c.b16 %v2756, %v2752
    %v3185 = vpack.c.b16 %v2757, %v2753
    %v3186 = vpack.c.b16 %v2758, %v2754
    %v3187 = vpack.c.b16 %v2763, %v2759
    %v3188 = vpack.c.b16 %v2764, %v2760
    %v3189 = vpack.c.b16 %v2765, %v2761
    %v3190 = vpack.c.b16 %v2766, %v2762
    %v3191 = vpack.c.b16 %v2771, %v2767
    %v3192 = vpack.c.b16 %v2772, %v2768
    %v3193 = vpack.c.b16 %v2773, %v2769
    %v3194 = vpack.c.b16 %v2774, %v2770
    %v3195 = vpack.c.b16 %v2779, %v2775
    %v3196 = vpack.c.b16 %v2780, %v2776
    %v3197 = vpack.c.b16 %v2781, %v2777
    %v3198 = vpack.c.b16 %v2782, %v2778
    %v3199 = vpack.c.b16 %v2787, %v2783
    %v3200 = vpack.c.b16 %v2788, %v2784
    %v3201 = vpack.c.b16 %v2789, %v2785
    %v3202 = vpack.c.b16 %v2790, %v2786
    %v3203 = vpack.c.b16 %v2795, %v2791
    %v3204 = vpack.c.b16 %v2796, %v2792
    %v3205 = vpack.c.b16 %v2797, %v2793
    %v3206 = vpack.c.b16 %v2798, %v2794
    %v3207 = vpack.c.b16 %v2803, %v2799
    %v3208 = vpack.c.b16 %v2804, %v2800
    %v3209 = vpack.c.b16 %v2805, %v2801
    %v3210 = vpack.c.b16 %v2806, %v2802
    %v3211 = vpack.c.b16 %v2811, %v2807
    %v3212 = vpack.c.b16 %v2812, %v2808
    %v3213 = vpack.c.b16 %v2813, %v2809
    %v3214 = vpack.c.b16 %v2814, %v2810
    %v3215 = vpack.c.b16 %v2819, %v2815
    %v3216 = vpack.c.b16 %v2820, %v2816
    %v3217 = vpack.c.b16 %v2821, %v2817
    %v3218 = vpack.c.b16 %v2822, %v2818
    %v3219 = vpack.c.b16 %v2827, %v2823
    %v3220 = vpack.c.b16 %v2828, %v2824
    %v3221 = vpack.c.b16 %v2829, %v2825
    %v3222 = vpack.c.b16 %v2830, %v2826
    %v3223 = vpack.c.b16 %v2835, %v2831
    %v3224 = vpack.c.b16 %v2836, %v2832
    %v3225 = vpack.c.b16 %v2837, %v2833
    %v3226 = vpack.c.b16 %v2838, %v2834
    %v3227 = vpack.c.b16 %v2843, %v2839
    %v3228 = vpack.c.b16 %v2844, %v2840
    %v3229 = vpack.c.b16 %v2845, %v2841
    %v3230 = vpack.c.b16 %v2846, %v2842
    %v3231 = vpack.c.b16 %v2851, %v2847
    %v3232 = vpack.c.b16 %v2852, %v2848
    %v3233 = vpack.c.b16 %v2853, %v2849
    %v3234 = vpack.c.b16 %v2854, %v2850
    %v3235 = vpack.c.b16 %v2859, %v2855
    %v3236 = vpack.c.b16 %v2860, %v2856
    %v3237 = vpack.c.b16 %v2861, %v2857
    %v3238 = vpack.c.b16 %v2862, %v2858
    %v3239 = vpack.c.b16 %v2867, %v2863
    %v3240 = vpack.c.b16 %v2868, %v2864
    %v3241 = vpack.c.b16 %v2869, %v2865
    %v3242 = vpack.c.b16 %v2870, %v2866
    %v3243 = vpack.c.b16 %v2875, %v2871
    %v3244 = vpack.c.b16 %v2876, %v2872
    %v3245 = vpack.c.b16 %v2877, %v2873
    %v3246 = vpack.c.b16 %v2878, %v2874
    %v3247 = vpack.c.b16 %v2883, %v2879
    %v3248 = vpack.c.b16 %v2884, %v2880
    %v3249 = vpack.c.b16 %v2885, %v2881
    %v3250 = vpack.c.b16 %v2886, %v2882
    %v3251 = vpack.c.b16 %v2891, %v2887
    %v3252 = vpack.c.b16 %v2892, %v2888
    %v3253 = vpack.c.b16 %v2893, %v2889
    %v3254 = vpack.c.b16 %v2894, %v2890
    %v3255 = vpack.c.b16 %v2899, %v2895
    %v3256 = vpack.c.b16 %v2900, %v2896
    %v3257 = vpack.c.b16 %v2901, %v2897
    %v3258 = vpack.c.b16 %v2902, %v2898
    %v3259 = vpack.c.b16 %v2907, %v2903
    %v3260 = vpack.c.b16 %v2908, %v2904
    %v3261 = vpack.c.b16 %v2909, %v2905
    %v3262 = vpack.c.b16 %v2910, %v2906
    %v3263 = vpack.c.b16 %v2915, %v2911
    %v3264 = vpack.c.b16 %v2916, %v2912
    %v3265 = vpack.c.b16 %v2917, %v2913
    %v3266 = vpack.c.b16 %v2918, %v2914
    %v3267 = vpack.c.b16 %v2923, %v2919
    %v3268 = vpack.c.b16 %v2924, %v2920
    %v3269 = vpack.c.b16 %v2925, %v2921
    %v3270 = vpack.c.b16 %v2926, %v2922
    %v3271 = vpack.c.b16 %v2931, %v2927
    %v3272 = vpack.c.b16 %v2932, %v2928
    %v3273 = vpack.c.b16 %v2933, %v2929
    %v3274 = vpack.c.b16 %v2934, %v2930
    %v3275 = vpack.c.b16 %v2939, %v2935
    %v3276 = vpack.c.b16 %v2940, %v2936
    %v3277 = vpack.c.b16 %v2941, %v2937
    %v3278 = vpack.c.b16 %v2942, %v2938
    %v3279 = vpack.c.b16 %v2947, %v2943
    %v3280 = vpack.c.b16 %v2948, %v2944
    %v3281 = vpack.c.b16 %v2949, %v2945
    %v3282 = vpack.c.b16 %v2950, %v2946
    %v3283 = vpack.c.b16 %v2955, %v2951
    %v3284 = vpack.c.b16 %v2956, %v2952
    %v3285 = vpack.c.b16 %v2957, %v2953
    %v3286 = vpack.c.b16 %v2958, %v2954
    %v3287 = vpack.c.b16 %v2963, %v2959
    %v3288 = vpack.c.b16 %v2964, %v2960
    %v3289 = vpack.c.b16 %v2965, %v2961
    %v3290 = vpack.c.b16 %v2966, %v2962
    %v3291 = vpack.c.b16 %v2971, %v2967
    %v3292 = vpack.c.b16 %v2972, %v2968
    %v3293 = vpack.c.b16 %v2973, %v2969
    %v3294 = vpack.c.b16 %v2974, %v2970
    %v3295 = vpack.c.b16 %v2979, %v2975
    %v3296 = vpack.c.b16 %v2980, %v2976
    %v3297 = vpack.c.b16 %v2981, %v2977
    %v3298 = vpack.c.b16 %v2982, %v2978
    %v3299 = vpack.c.b16 %v2987, %v2983
    %v3300 = vpack.c.b16 %v2988, %v2984
    %v3301 = vpack.c.b16 %v2989, %v2985
    %v3302 = vpack.c.b16 %v2990, %v2986
    %v3303 = vpack.c.b16 %v2995, %v2991
    %v3304 = vpack.c.b16 %v2996, %v2992
    %v3305 = vpack.c.b16 %v2997, %v2993
    %v3306 = vpack.c.b16 %v2998, %v2994
    %v3307 = vpack.c.b16 %v3003, %v2999
    %v3308 = vpack.c.b16 %v3004, %v3000
    %v3309 = vpack.c.b16 %v3005, %v3001
    %v3310 = vpack.c.b16 %v3006, %v3002
    %v3311 = vpack.c.b16 %v3011, %v3007
    %v3312 = vpack.c.b16 %v3012, %v3008
    %v3313 = vpack.c.b16 %v3013, %v3009
    %v3314 = vpack.c.b16 %v3014, %v3010
    %v3315 = vpack.c.b16 %v3019, %v3015
    %v3316 = vpack.c.b16 %v3020, %v3016
    %v3317 = vpack.c.b16 %v3021, %v3017
    %v3318 = vpack.c.b16 %v3022, %v3018
    %v3319 = vpack.c.b16 %v3027, %v3023
    %v3320 = vpack.c.b16 %v3028, %v3024
    %v3321 = vpack.c.b16 %v3029, %v3025
    %v3322 = vpack.c.b16 %v3030, %v3026
    %v3323 = vpack.c.b16 %v3035, %v3031
    %v3324 = vpack.c.b16 %v3036, %v3032
    %v3325 = vpack.c.b16 %v3037, %v3033
    %v3326 = vpack.c.b16 %v3038, %v3034
    %v3327 = vpack.c.b16 %v3043, %v3039
    %v3328 = vpack.c.b16 %v3044, %v3040
    %v3329 = vpack.c.b16 %v3045, %v3041
    %v3330 = vpack.c.b16 %v3046, %v3042
    %v3331 = vpack.c.b16 %v3051, %v3047
    %v3332 = vpack.c.b16 %v3052, %v3048
    %v3333 = vpack.c.b16 %v3053, %v3049
    %v3334 = vpack.c.b16 %v3054, %v3050
    %v3335 = vpack.c.b16 %v3059, %v3055
    %v3336 = vpack.c.b16 %v3060, %v3056
    %v3337 = vpack.c.b16 %v3061, %v3057
    %v3338 = vpack.c.b16 %v3062, %v3058
    %v3339 = vpack.c.b16 %v3067, %v3063
    %v3340 = vpack.c.b16 %v3068, %v3064
    %v3341 = vpack.c.b16 %v3069, %v3065
    %v3342 = vpack.c.b16 %v3070, %v3066
    %v3343 = vpack.c.b16 %v3075, %v3071
    %v3344 = vpack.c.b16 %v3076, %v3072
    %v3345 = vpack.c.b16 %v3077, %v3073
    %v3346 = vpack.c.b16 %v3078, %v3074
    %v3347 = vpack.c.b16 %v3083, %v3079
    %v3348 = vpack.c.b16 %v3084, %v3080
    %v3349 = vpack.c.b16 %v3085, %v3081
    %v3350 = vpack.c.b16 %v3086, %v3082
    %v3351 = vpack.c.b16 %v3091, %v3087
    %v3352 = vpack.c.b16 %v3092, %v3088
    %v3353 = vpack.c.b16 %v3093, %v3089
    %v3354 = vpack.c.b16 %v3094, %v3090
    %v3355 = vpack.c.b16 %v3099, %v3095
    %v3356 = vpack.c.b16 %v3100, %v3096
    %v3357 = vpack.c.b16 %v3101, %v3097
    %v3358 = vpack.c.b16 %v3102, %v3098
    %3615 = vmatprep.subr.bf16.mxu0 %v3104
    %3616 = vmatpush1.bf16.msra.mxu0 %v3103
    %3617 = vmatprep.subr.bf16.mxu0 %v3108
    %3618 = vmatpush1.bf16.msra.mxu0 %v3107
    %3619 = vmatprep.subr.bf16.mxu0 %v3112
    %3620 = vmatpush1.bf16.msra.mxu0 %v3111
    %3621 = vmatprep.subr.bf16.mxu0 %v3116
    %3622 = vmatpush1.bf16.msra.mxu0 %v3115
    %3623 = vmatprep.subr.bf16.mxu0 %v3120
    %3624 = vmatpush1.bf16.msra.mxu0 %v3119
    %3625 = vmatprep.subr.bf16.mxu0 %v3124
    %3626 = vmatpush1.bf16.msra.mxu0 %v3123
    %3627 = vmatprep.subr.bf16.mxu0 %v3128
    %3628 = vmatpush1.bf16.msra.mxu0 %v3127
    %3629 = vmatprep.subr.bf16.mxu0 %v3132
    %3630 = vmatpush1.bf16.msra.mxu0 %v3131
    %3631 = vmatprep.subr.bf16.mxu0 %v3136
    %3632 = vmatpush1.bf16.msra.mxu0 %v3135
    %3633 = vmatprep.subr.bf16.mxu0 %v3140
    %3634 = vmatpush1.bf16.msra.mxu0 %v3139
    %3635 = vmatprep.subr.bf16.mxu0 %v3144
    %3636 = vmatpush1.bf16.msra.mxu0 %v3143
    %3637 = vmatprep.subr.bf16.mxu0 %v3148
    %3638 = vmatpush1.bf16.msra.mxu0 %v3147
    %3639 = vmatprep.subr.bf16.mxu0 %v3152
    %3640 = vmatpush1.bf16.msra.mxu0 %v3151
    %3641 = vmatprep.subr.bf16.mxu0 %v3156
    %3642 = vmatpush1.bf16.msra.mxu0 %v3155
    %3643 = vmatprep.subr.bf16.mxu0 %v3160
    %3644 = vmatpush1.bf16.msra.mxu0 %v3159
    %3645 = vmatprep.subr.bf16.mxu0 %v3164
    %3646 = vmatpush1.bf16.msra.mxu0 %v3163
    %3647 = vmatprep.mubr.bf16.mxu0 %v2050
    %3648 = vmatmul.mubr.bf16.gmra.mrb[0].mxu0 %v2049
    %v3649 = vpop.f32.mrb[0].mxu0
    %v3650 = vadd.f32 %v2318, %v3649
    %v3651 = vpop.f32.mrb[0].mxu0
    %v3652 = vadd.f32 %v2322, %v3651
    %v3653 = vpop.f32.mrb[0].mxu0
    %v3654 = vpop.f32.mrb[0].mxu0
    %3655 = vdwg.mxu0
    %3656 = vmatprep.subr.bf16.mxu0 %v3168
    %3657 = vmatpush1.bf16.msra.mxu0 %v3167
    %3658 = vmatprep.subr.bf16.mxu0 %v3172
    %3659 = vmatpush1.bf16.msra.mxu0 %v3171
    %3660 = vmatprep.subr.bf16.mxu0 %v3176
    %3661 = vmatpush1.bf16.msra.mxu0 %v3175
    %3662 = vmatprep.subr.bf16.mxu0 %v3180
    %3663 = vmatpush1.bf16.msra.mxu0 %v3179
    %3664 = vmatprep.subr.bf16.mxu0 %v3184
    %3665 = vmatpush1.bf16.msra.mxu0 %v3183
    %3666 = vmatprep.subr.bf16.mxu0 %v3188
    %3667 = vmatpush1.bf16.msra.mxu0 %v3187
    %3668 = vmatprep.subr.bf16.mxu0 %v3192
    %3669 = vmatpush1.bf16.msra.mxu0 %v3191
    %3670 = vmatprep.subr.bf16.mxu0 %v3196
    %3671 = vmatpush1.bf16.msra.mxu0 %v3195
    %3672 = vmatprep.subr.bf16.mxu0 %v3200
    %3673 = vmatpush1.bf16.msra.mxu0 %v3199
    %3674 = vmatprep.subr.bf16.mxu0 %v3204
    %3675 = vmatpush1.bf16.msra.mxu0 %v3203
    %3676 = vmatprep.subr.bf16.mxu0 %v3208
    %3677 = vmatpush1.bf16.msra.mxu0 %v3207
    %3678 = vmatprep.subr.bf16.mxu0 %v3212
    %3679 = vmatpush1.bf16.msra.mxu0 %v3211
    %3680 = vmatprep.subr.bf16.mxu0 %v3216
    %3681 = vmatpush1.bf16.msra.mxu0 %v3215
    %3682 = vmatprep.subr.bf16.mxu0 %v3220
    %3683 = vmatpush1.bf16.msra.mxu0 %v3219
    %3684 = vmatprep.subr.bf16.mxu0 %v3224
    %3685 = vmatpush1.bf16.msra.mxu0 %v3223
    %3686 = vmatprep.subr.bf16.mxu0 %v3228
    %3687 = vmatpush1.bf16.msra.mxu0 %v3227
    %3688 = vmatprep.mubr.bf16.mxu0 %v2052
    %3689 = vmatmul.mubr.bf16.gmra.mrb[0].mxu0 %v2051
    %v3690 = vpop.f32.mrb[0].mxu0
    %v3691 = vadd.f32 %v3650, %v3690
    %v3692 = vpop.f32.mrb[0].mxu0
    %v3693 = vadd.f32 %v3652, %v3692
    %v3694 = vpop.f32.mrb[0].mxu0
    %v3695 = vpop.f32.mrb[0].mxu0
    %3696 = vdwg.mxu0
    %3697 = vmatprep.subr.bf16.mxu0 %v3232
    %3698 = vmatpush1.bf16.msra.mxu0 %v3231
    %3699 = vmatprep.subr.bf16.mxu0 %v3236
    %3700 = vmatpush1.bf16.msra.mxu0 %v3235
    %3701 = vmatprep.subr.bf16.mxu0 %v3240
    %3702 = vmatpush1.bf16.msra.mxu0 %v3239
    %3703 = vmatprep.subr.bf16.mxu0 %v3244
    %3704 = vmatpush1.bf16.msra.mxu0 %v3243
    %3705 = vmatprep.subr.bf16.mxu0 %v3248
    %3706 = vmatpush1.bf16.msra.mxu0 %v3247
    %3707 = vmatprep.subr.bf16.mxu0 %v3252
    %3708 = vmatpush1.bf16.msra.mxu0 %v3251
    %3709 = vmatprep.subr.bf16.mxu0 %v3256
    %3710 = vmatpush1.bf16.msra.mxu0 %v3255
    %3711 = vmatprep.subr.bf16.mxu0 %v3260
    %3712 = vmatpush1.bf16.msra.mxu0 %v3259
    %3713 = vmatprep.subr.bf16.mxu0 %v3264
    %3714 = vmatpush1.bf16.msra.mxu0 %v3263
    %3715 = vmatprep.subr.bf16.mxu0 %v3268
    %3716 = vmatpush1.bf16.msra.mxu0 %v3267
    %3717 = vmatprep.subr.bf16.mxu0 %v3272
    %3718 = vmatpush1.bf16.msra.mxu0 %v3271
    %3719 = vmatprep.subr.bf16.mxu0 %v3276
    %3720 = vmatpush1.bf16.msra.mxu0 %v3275
    %3721 = vmatprep.subr.bf16.mxu0 %v3280
    %3722 = vmatpush1.bf16.msra.mxu0 %v3279
    %3723 = vmatprep.subr.bf16.mxu0 %v3284
    %3724 = vmatpush1.bf16.msra.mxu0 %v3283
    %3725 = vmatprep.subr.bf16.mxu0 %v3288
    %3726 = vmatpush1.bf16.msra.mxu0 %v3287
    %3727 = vmatprep.subr.bf16.mxu0 %v3292
    %3728 = vmatpush1.bf16.msra.mxu0 %v3291
    %3729 = vmatprep.mubr.bf16.mxu0 %v2054
    %3730 = vmatmul.mubr.bf16.gmra.mrb[0].mxu0 %v2053
    %v3731 = vpop.f32.mrb[0].mxu0
    %v3732 = vadd.f32 %v3691, %v3731
    %v3733 = vpop.f32.mrb[0].mxu0
    %v3734 = vadd.f32 %v3693, %v3733
    %v3735 = vpop.f32.mrb[0].mxu0
    %v3736 = vpop.f32.mrb[0].mxu0
    %3737 = vdwg.mxu0
    %3738 = vmatprep.subr.bf16.mxu0 %v3296
    %3739 = vmatpush1.bf16.msra.mxu0 %v3295
    %3740 = vmatprep.subr.bf16.mxu0 %v3300
    %3741 = vmatpush1.bf16.msra.mxu0 %v3299
    %3742 = vmatprep.subr.bf16.mxu0 %v3304
    %3743 = vmatpush1.bf16.msra.mxu0 %v3303
    %3744 = vmatprep.subr.bf16.mxu0 %v3308
    %3745 = vmatpush1.bf16.msra.mxu0 %v3307
    %3746 = vmatprep.subr.bf16.mxu0 %v3312
    %3747 = vmatpush1.bf16.msra.mxu0 %v3311
    %3748 = vmatprep.subr.bf16.mxu0 %v3316
    %3749 = vmatpush1.bf16.msra.mxu0 %v3315
    %3750 = vmatprep.subr.bf16.mxu0 %v3320
    %3751 = vmatpush1.bf16.msra.mxu0 %v3319
    %3752 = vmatprep.subr.bf16.mxu0 %v3324
    %3753 = vmatpush1.bf16.msra.mxu0 %v3323
    %3754 = vmatprep.subr.bf16.mxu0 %v3328
    %3755 = vmatpush1.bf16.msra.mxu0 %v3327
    %3756 = vmatprep.subr.bf16.mxu0 %v3332
    %3757 = vmatpush1.bf16.msra.mxu0 %v3331
    %3758 = vmatprep.subr.bf16.mxu0 %v3336
    %3759 = vmatpush1.bf16.msra.mxu0 %v3335
    %3760 = vmatprep.subr.bf16.mxu0 %v3340
    %3761 = vmatpush1.bf16.msra.mxu0 %v3339
    %3762 = vmatprep.subr.bf16.mxu0 %v3344
    %3763 = vmatpush1.bf16.msra.mxu0 %v3343
    %3764 = vmatprep.subr.bf16.mxu0 %v3348
    %3765 = vmatpush1.bf16.msra.mxu0 %v3347
    %3766 = vmatprep.subr.bf16.mxu0 %v3352
    %3767 = vmatpush1.bf16.msra.mxu0 %v3351
    %3768 = vmatprep.subr.bf16.mxu0 %v3356
    %3769 = vmatpush1.bf16.msra.mxu0 %v3355
    %3770 = vmatprep.mubr.bf16.mxu0 %v2056
    %3771 = vmatmul.mubr.bf16.gmra.mrb[0].mxu0 %v2055
    %v3772 = vpop.f32.mrb[0].mxu0
    %v3773 = vadd.f32 %v3732, %v3772
    %v3774 = vpop.f32.mrb[0].mxu0
    %v3775 = vadd.f32 %v3734, %v3774
    %v3776 = vpop.f32.mrb[0].mxu0
    %v3777 = vpop.f32.mrb[0].mxu0
    %3778 = vdwg.mxu0
    %3779 = vmatprep.subr.bf16.mxu0 %v3106
    %3780 = vmatpush1.bf16.msra.mxu0 %v3105
    %3781 = vmatprep.subr.bf16.mxu0 %v3110
    %3782 = vmatpush1.bf16.msra.mxu0 %v3109
    %3783 = vmatprep.subr.bf16.mxu0 %v3114
    %3784 = vmatpush1.bf16.msra.mxu0 %v3113
    %3785 = vmatprep.subr.bf16.mxu0 %v3118
    %3786 = vmatpush1.bf16.msra.mxu0 %v3117
    %3787 = vmatprep.subr.bf16.mxu0 %v3122
    %3788 = vmatpush1.bf16.msra.mxu0 %v3121
    %3789 = vmatprep.subr.bf16.mxu0 %v3126
    %3790 = vmatpush1.bf16.msra.mxu0 %v3125
    %3791 = vmatprep.subr.bf16.mxu0 %v3130
    %3792 = vmatpush1.bf16.msra.mxu0 %v3129
    %3793 = vmatprep.subr.bf16.mxu0 %v3134
    %3794 = vmatpush1.bf16.msra.mxu0 %v3133
    %3795 = vmatprep.subr.bf16.mxu0 %v3138
    %3796 = vmatpush1.bf16.msra.mxu0 %v3137
    %3797 = vmatprep.subr.bf16.mxu0 %v3142
    %3798 = vmatpush1.bf16.msra.mxu0 %v3141
    %3799 = vmatprep.subr.bf16.mxu0 %v3146
    %3800 = vmatpush1.bf16.msra.mxu0 %v3145
    %3801 = vmatprep.subr.bf16.mxu0 %v3150
    %3802 = vmatpush1.bf16.msra.mxu0 %v3149
    %3803 = vmatprep.subr.bf16.mxu0 %v3154
    %3804 = vmatpush1.bf16.msra.mxu0 %v3153
    %3805 = vmatprep.subr.bf16.mxu0 %v3158
    %3806 = vmatpush1.bf16.msra.mxu0 %v3157
    %3807 = vmatprep.subr.bf16.mxu0 %v3162
    %3808 = vmatpush1.bf16.msra.mxu0 %v3161
    %3809 = vmatprep.subr.bf16.mxu0 %v3166
    %3810 = vmatpush1.bf16.msra.mxu0 %v3165
    %3811 = vmatprep.mubr.bf16.mxu0 %v2050
    %3812 = vmatmul.mubr.bf16.gmra.mrb[0].mxu0 %v2049
    %v3813 = vpop.f32.mrb[0].mxu0
    %v3814 = vadd.f32 %v2326, %v3813
    %v3815 = vpop.f32.mrb[0].mxu0
    %v3816 = vadd.f32 %v2330, %v3815
    %v3817 = vpop.f32.mrb[0].mxu0
    %v3818 = vpop.f32.mrb[0].mxu0
    %3819 = vdwg.mxu0
    %3820 = vmatprep.subr.bf16.mxu0 %v3170
    %3821 = vmatpush1.bf16.msra.mxu0 %v3169
    %3822 = vmatprep.subr.bf16.mxu0 %v3174
    %3823 = vmatpush1.bf16.msra.mxu0 %v3173
    %3824 = vmatprep.subr.bf16.mxu0 %v3178
    %3825 = vmatpush1.bf16.msra.mxu0 %v3177
    %3826 = vmatprep.subr.bf16.mxu0 %v3182
    %3827 = vmatpush1.bf16.msra.mxu0 %v3181
    %3828 = vmatprep.subr.bf16.mxu0 %v3186
    %3829 = vmatpush1.bf16.msra.mxu0 %v3185
    %3830 = vmatprep.subr.bf16.mxu0 %v3190
    %3831 = vmatpush1.bf16.msra.mxu0 %v3189
    %3832 = vmatprep.subr.bf16.mxu0 %v3194
    %3833 = vmatpush1.bf16.msra.mxu0 %v3193
    %3834 = vmatprep.subr.bf16.mxu0 %v3198
    %3835 = vmatpush1.bf16.msra.mxu0 %v3197
    %3836 = vmatprep.subr.bf16.mxu0 %v3202
    %3837 = vmatpush1.bf16.msra.mxu0 %v3201
    %3838 = vmatprep.subr.bf16.mxu0 %v3206
    %3839 = vmatpush1.bf16.msra.mxu0 %v3205
    %3840 = vmatprep.subr.bf16.mxu0 %v3210
    %3841 = vmatpush1.bf16.msra.mxu0 %v3209
    %3842 = vmatprep.subr.bf16.mxu0 %v3214
    %3843 = vmatpush1.bf16.msra.mxu0 %v3213
    %3844 = vmatprep.subr.bf16.mxu0 %v3218
    %3845 = vmatpush1.bf16.msra.mxu0 %v3217
    %3846 = vmatprep.subr.bf16.mxu0 %v3222
    %3847 = vmatpush1.bf16.msra.mxu0 %v3221
    %3848 = vmatprep.subr.bf16.mxu0 %v3226
    %3849 = vmatpush1.bf16.msra.mxu0 %v3225
    %3850 = vmatprep.subr.bf16.mxu0 %v3230
    %3851 = vmatpush1.bf16.msra.mxu0 %v3229
    %3852 = vmatprep.mubr.bf16.mxu0 %v2052
    %3853 = vmatmul.mubr.bf16.gmra.mrb[0].mxu0 %v2051
    %v3854 = vpop.f32.mrb[0].mxu0
    %v3855 = vadd.f32 %v3814, %v3854
    %v3856 = vpop.f32.mrb[0].mxu0
    %v3857 = vadd.f32 %v3816, %v3856
    %v3858 = vpop.f32.mrb[0].mxu0
    %v3859 = vpop.f32.mrb[0].mxu0
    %3860 = vdwg.mxu0
    %3861 = vmatprep.subr.bf16.mxu0 %v3234
    %3862 = vmatpush1.bf16.msra.mxu0 %v3233
    %3863 = vmatprep.subr.bf16.mxu0 %v3238
    %3864 = vmatpush1.bf16.msra.mxu0 %v3237
    %3865 = vmatprep.subr.bf16.mxu0 %v3242
    %3866 = vmatpush1.bf16.msra.mxu0 %v3241
    %3867 = vmatprep.subr.bf16.mxu0 %v3246
    %3868 = vmatpush1.bf16.msra.mxu0 %v3245
    %3869 = vmatprep.subr.bf16.mxu0 %v3250
    %3870 = vmatpush1.bf16.msra.mxu0 %v3249
    %3871 = vmatprep.subr.bf16.mxu0 %v3254
    %3872 = vmatpush1.bf16.msra.mxu0 %v3253
    %3873 = vmatprep.subr.bf16.mxu0 %v3258
    %3874 = vmatpush1.bf16.msra.mxu0 %v3257
    %3875 = vmatprep.subr.bf16.mxu0 %v3262
    %3876 = vmatpush1.bf16.msra.mxu0 %v3261
    %3877 = vmatprep.subr.bf16.mxu0 %v3266
    %3878 = vmatpush1.bf16.msra.mxu0 %v3265
    %3879 = vmatprep.subr.bf16.mxu0 %v3270
    %3880 = vmatpush1.bf16.msra.mxu0 %v3269
    %3881 = vmatprep.subr.bf16.mxu0 %v3274
    %3882 = vmatpush1.bf16.msra.mxu0 %v3273
    %3883 = vmatprep.subr.bf16.mxu0 %v3278
    %3884 = vmatpush1.bf16.msra.mxu0 %v3277
    %3885 = vmatprep.subr.bf16.mxu0 %v3282
    %3886 = vmatpush1.bf16.msra.mxu0 %v3281
    %3887 = vmatprep.subr.bf16.mxu0 %v3286
    %3888 = vmatpush1.bf16.msra.mxu0 %v3285
    %3889 = vmatprep.subr.bf16.mxu0 %v3290
    %3890 = vmatpush1.bf16.msra.mxu0 %v3289
    %3891 = vmatprep.subr.bf16.mxu0 %v3294
    %3892 = vmatpush1.bf16.msra.mxu0 %v3293
    %3893 = vmatprep.mubr.bf16.mxu0 %v2054
    %3894 = vmatmul.mubr.bf16.gmra.mrb[0].mxu0 %v2053
    %v3895 = vpop.f32.mrb[0].mxu0
    %v3896 = vadd.f32 %v3855, %v3895
    %v3897 = vpop.f32.mrb[0].mxu0
    %v3898 = vadd.f32 %v3857, %v3897
    %v3899 = vpop.f32.mrb[0].mxu0
    %v3900 = vpop.f32.mrb[0].mxu0
    %3901 = vdwg.mxu0
    %3902 = vmatprep.subr.bf16.mxu0 %v3298
    %3903 = vmatpush1.bf16.msra.mxu0 %v3297
    %3904 = vmatprep.subr.bf16.mxu0 %v3302
    %3905 = vmatpush1.bf16.msra.mxu0 %v3301
    %3906 = vmatprep.subr.bf16.mxu0 %v3306
    %3907 = vmatpush1.bf16.msra.mxu0 %v3305
    %3908 = vmatprep.subr.bf16.mxu0 %v3310
    %3909 = vmatpush1.bf16.msra.mxu0 %v3309
    %3910 = vmatprep.subr.bf16.mxu0 %v3314
    %3911 = vmatpush1.bf16.msra.mxu0 %v3313
    %3912 = vmatprep.subr.bf16.mxu0 %v3318
    %3913 = vmatpush1.bf16.msra.mxu0 %v3317
    %3914 = vmatprep.subr.bf16.mxu0 %v3322
    %3915 = vmatpush1.bf16.msra.mxu0 %v3321
    %3916 = vmatprep.subr.bf16.mxu0 %v3326
    %3917 = vmatpush1.bf16.msra.mxu0 %v3325
    %3918 = vmatprep.subr.bf16.mxu0 %v3330
    %3919 = vmatpush1.bf16.msra.mxu0 %v3329
    %3920 = vmatprep.subr.bf16.mxu0 %v3334
    %3921 = vmatpush1.bf16.msra.mxu0 %v3333
    %3922 = vmatprep.subr.bf16.mxu0 %v3338
    %3923 = vmatpush1.bf16.msra.mxu0 %v3337
    %3924 = vmatprep.subr.bf16.mxu0 %v3342
    %3925 = vmatpush1.bf16.msra.mxu0 %v3341
    %3926 = vmatprep.subr.bf16.mxu0 %v3346
    %3927 = vmatpush1.bf16.msra.mxu0 %v3345
    %3928 = vmatprep.subr.bf16.mxu0 %v3350
    %3929 = vmatpush1.bf16.msra.mxu0 %v3349
    %3930 = vmatprep.subr.bf16.mxu0 %v3354
    %3931 = vmatpush1.bf16.msra.mxu0 %v3353
    %3932 = vmatprep.subr.bf16.mxu0 %v3358
    %3933 = vmatpush1.bf16.msra.mxu0 %v3357
    %3934 = vmatprep.mubr.bf16.mxu0 %v2056
    %3935 = vmatmul.mubr.bf16.gmra.mrb[0].mxu0 %v2055
    %v3936 = vpop.f32.mrb[0].mxu0
    %v3937 = vadd.f32 %v3896, %v3936
    %v3938 = vpop.f32.mrb[0].mxu0
    %v3939 = vadd.f32 %v3898, %v3938
    %v3940 = vpop.f32.mrb[0].mxu0
    %v3941 = vpop.f32.mrb[0].mxu0
    %3942 = vdwg.mxu0
    %vm3943 = vcmp.ge.f32.partialorder %v3773, 0.0
    %vm3944 = vcmp.ge.f32.partialorder %v3775, 0.0
    %vm3945 = vcmp.ge.f32.partialorder %v3937, 0.0
    %vm3946 = vcmp.ge.f32.partialorder %v3939, 0.0
    %v3947 = vmul.f32 %v3773, 0.01
    %v3948 = vmul.f32 %v3775, 0.01
    %v3949 = vmul.f32 %v3937, 0.01
    %v3950 = vmul.f32 %v3939, 0.01
    %v3951 = vsel %vm3943, %v3773, %v3947
    %v3952 = vsel %vm3944, %v3775, %v3948
    %v3953 = vsel %vm3945, %v3937, %v3949
    %v3954 = vsel %vm3946, %v3939, %v3950
    %v3955 = vpack.c.bf16 %v3951, %v3951
    %v3956 = vpack.c.bf16 %v3952, %v3952
    %v3957 = vpack.c.bf16 %v3953, %v3953
    %v3958 = vpack.c.bf16 %v3954, %v3954
    %v3959 = vld [vmem:[#allocation10] sm:$0xf]
    %v3960 = vld [vmem:[#allocation10 + $0x4] sm:$0xf]
    %v3961 = vld [vmem:[#allocation10 + $0x8] sm:$0xf]
    %v3962 = vld [vmem:[#allocation10 + $0xc] sm:$0xf]
    %v3963 = vld [vmem:[#allocation10 + $0x10] sm:$0xf]
    %v3964 = vld [vmem:[#allocation10 + $0x14] sm:$0xf]
    %v3965 = vld [vmem:[#allocation10 + $0x18] sm:$0xf]
    %v3966 = vld [vmem:[#allocation10 + $0x1c] sm:$0xf]
    %v3967 = vld [vmem:[#allocation10 + $0x20] sm:$0xf]
    %v3968 = vld [vmem:[#allocation10 + $0x24] sm:$0xf]
    %v3969 = vld [vmem:[#allocation10 + $0x28] sm:$0xf]
    %v3970 = vld [vmem:[#allocation10 + $0x2c] sm:$0xf]
    %v3971 = vld [vmem:[#allocation10 + $0x30] sm:$0xf]
    %v3972 = vld [vmem:[#allocation10 + $0x34] sm:$0xf]
    %v3973 = vld [vmem:[#allocation10 + $0x38] sm:$0xf]
    %v3974 = vld [vmem:[#allocation10 + $0x3c] sm:$0xf]
    %v3975 = vld [vmem:[#allocation10 + $0x40] sm:$0xf]
    %v3976 = vld [vmem:[#allocation10 + $0x44] sm:$0xf]
    %v3977 = vld [vmem:[#allocation10 + $0x48] sm:$0xf]
    %v3978 = vld [vmem:[#allocation10 + $0x4c] sm:$0xf]
    %v3979 = vld [vmem:[#allocation10 + $0x50] sm:$0xf]
    %v3980 = vld [vmem:[#allocation10 + $0x54] sm:$0xf]
    %v3981 = vld [vmem:[#allocation10 + $0x58] sm:$0xf]
    %v3982 = vld [vmem:[#allocation10 + $0x5c] sm:$0xf]
    %v3983 = vld [vmem:[#allocation10 + $0x60] sm:$0xf]
    %v3984 = vld [vmem:[#allocation10 + $0x64] sm:$0xf]
    %v3985 = vld [vmem:[#allocation10 + $0x68] sm:$0xf]
    %v3986 = vld [vmem:[#allocation10 + $0x6c] sm:$0xf]
    %v3987 = vld [vmem:[#allocation10 + $0x70] sm:$0xf]
    %v3988 = vld [vmem:[#allocation10 + $0x74] sm:$0xf]
    %v3989 = vld [vmem:[#allocation10 + $0x78] sm:$0xf]
    %v3990 = vld [vmem:[#allocation10 + $0x7c] sm:$0xf]
    %v3991 = vld [vmem:[#allocation10 + $0x80] sm:$0xf]
    %v3992 = vld [vmem:[#allocation10 + $0x84] sm:$0xf]
    %v3993 = vld [vmem:[#allocation10 + $0x88] sm:$0xf]
    %v3994 = vld [vmem:[#allocation10 + $0x8c] sm:$0xf]
    %v3995 = vld [vmem:[#allocation10 + $0x90] sm:$0xf]
    %v3996 = vld [vmem:[#allocation10 + $0x94] sm:$0xf]
    %v3997 = vld [vmem:[#allocation10 + $0x98] sm:$0xf]
    %v3998 = vld [vmem:[#allocation10 + $0x9c] sm:$0xf]
    %v3999 = vld [vmem:[#allocation10 + $0xa0] sm:$0xf]
    %v4000 = vld [vmem:[#allocation10 + $0xa4] sm:$0xf]
    %v4001 = vld [vmem:[#allocation10 + $0xa8] sm:$0xf]
    %v4002 = vld [vmem:[#allocation10 + $0xac] sm:$0xf]
    %v4003 = vld [vmem:[#allocation10 + $0xb0] sm:$0xf]
    %v4004 = vld [vmem:[#allocation10 + $0xb4] sm:$0xf]
    %v4005 = vld [vmem:[#allocation10 + $0xb8] sm:$0xf]
    %v4006 = vld [vmem:[#allocation10 + $0xbc] sm:$0xf]
    %v4007 = vld [vmem:[#allocation10 + $0xc0] sm:$0xf]
    %v4008 = vld [vmem:[#allocation10 + $0xc4] sm:$0xf]
    %v4009 = vld [vmem:[#allocation10 + $0xc8] sm:$0xf]
    %v4010 = vld [vmem:[#allocation10 + $0xcc] sm:$0xf]
    %v4011 = vld [vmem:[#allocation10 + $0xd0] sm:$0xf]
    %v4012 = vld [vmem:[#allocation10 + $0xd4] sm:$0xf]
    %v4013 = vld [vmem:[#allocation10 + $0xd8] sm:$0xf]
    %v4014 = vld [vmem:[#allocation10 + $0xdc] sm:$0xf]
    %v4015 = vld [vmem:[#allocation10 + $0xe0] sm:$0xf]
    %v4016 = vld [vmem:[#allocation10 + $0xe4] sm:$0xf]
    %v4017 = vld [vmem:[#allocation10 + $0xe8] sm:$0xf]
    %v4018 = vld [vmem:[#allocation10 + $0xec] sm:$0xf]
    %v4019 = vld [vmem:[#allocation10 + $0xf0] sm:$0xf]
    %v4020 = vld [vmem:[#allocation10 + $0xf4] sm:$0xf]
    %v4021 = vld [vmem:[#allocation10 + $0xf8] sm:$0xf]
    %v4022 = vld [vmem:[#allocation10 + $0xfc] sm:$0xf]
    %v4023 = vld [vmem:[%s6] sm:$0x1]
    %v4025 = vlaneseq
    %v4026 = vshrl.u32 %v4025, 7
    %v4027 = vsub.s32 0, %v4026
    %v4028 = vrot.slane %v4023, %v4027
    %v4094 = vunpack.c.l.b16 %v3959
    %v4095 = vunpack.c.l.b16 %v3960
    %v4096 = vunpack.c.l.b16 %v3961
    %v4097 = vunpack.c.l.b16 %v3962
    %v4098 = vunpack.c.l.b16 %v3963
    %v4099 = vunpack.c.l.b16 %v3964
    %v4100 = vunpack.c.l.b16 %v3965
    %v4101 = vunpack.c.l.b16 %v3966
    %v4102 = vunpack.c.l.b16 %v3967
    %v4103 = vunpack.c.l.b16 %v3968
    %v4104 = vunpack.c.l.b16 %v3969
    %v4105 = vunpack.c.l.b16 %v3970
    %v4106 = vunpack.c.l.b16 %v3971
    %v4107 = vunpack.c.l.b16 %v3972
    %v4108 = vunpack.c.l.b16 %v3973
    %v4109 = vunpack.c.l.b16 %v3974
    %v4110 = vunpack.c.l.b16 %v3975
    %v4111 = vunpack.c.l.b16 %v3976
    %v4112 = vunpack.c.l.b16 %v3977
    %v4113 = vunpack.c.l.b16 %v3978
    %v4114 = vunpack.c.l.b16 %v3979
    %v4115 = vunpack.c.l.b16 %v3980
    %v4116 = vunpack.c.l.b16 %v3981
    %v4117 = vunpack.c.l.b16 %v3982
    %v4118 = vunpack.c.l.b16 %v3983
    %v4119 = vunpack.c.l.b16 %v3984
    %v4120 = vunpack.c.l.b16 %v3985
    %v4121 = vunpack.c.l.b16 %v3986
    %v4122 = vunpack.c.l.b16 %v3987
    %v4123 = vunpack.c.l.b16 %v3988
    %v4124 = vunpack.c.l.b16 %v3989
    %v4125 = vunpack.c.l.b16 %v3990
    %v4126 = vunpack.c.l.b16 %v3991
    %v4127 = vunpack.c.l.b16 %v3992
    %v4128 = vunpack.c.l.b16 %v3993
    %v4129 = vunpack.c.l.b16 %v3994
    %v4130 = vunpack.c.l.b16 %v3995
    %v4131 = vunpack.c.l.b16 %v3996
    %v4132 = vunpack.c.l.b16 %v3997
    %v4133 = vunpack.c.l.b16 %v3998
    %v4134 = vunpack.c.l.b16 %v3999
    %v4135 = vunpack.c.l.b16 %v4000
    %v4136 = vunpack.c.l.b16 %v4001
    %v4137 = vunpack.c.l.b16 %v4002
    %v4138 = vunpack.c.l.b16 %v4003
    %v4139 = vunpack.c.l.b16 %v4004
    %v4140 = vunpack.c.l.b16 %v4005
    %v4141 = vunpack.c.l.b16 %v4006
    %v4142 = vunpack.c.l.b16 %v4007
    %v4143 = vunpack.c.l.b16 %v4008
    %v4144 = vunpack.c.l.b16 %v4009
    %v4145 = vunpack.c.l.b16 %v4010
    %v4146 = vunpack.c.l.b16 %v4011
    %v4147 = vunpack.c.l.b16 %v4012
    %v4148 = vunpack.c.l.b16 %v4013
    %v4149 = vunpack.c.l.b16 %v4014
    %v4150 = vunpack.c.l.b16 %v4015
    %v4151 = vunpack.c.l.b16 %v4016
    %v4152 = vunpack.c.l.b16 %v4017
    %v4153 = vunpack.c.l.b16 %v4018
    %v4154 = vunpack.c.l.b16 %v4019
    %v4155 = vunpack.c.l.b16 %v4020
    %v4156 = vunpack.c.l.b16 %v4021
    %v4157 = vunpack.c.l.b16 %v4022
    %v4158 = vpack.c.b16 %v4095, %v4094
    %v4159 = vpack.c.b16 %v4097, %v4096
    %v4160 = vpack.c.b16 %v4099, %v4098
    %v4161 = vpack.c.b16 %v4101, %v4100
    %v4162 = vpack.c.b16 %v4103, %v4102
    %v4163 = vpack.c.b16 %v4105, %v4104
    %v4164 = vpack.c.b16 %v4107, %v4106
    %v4165 = vpack.c.b16 %v4109, %v4108
    %v4166 = vpack.c.b16 %v4111, %v4110
    %v4167 = vpack.c.b16 %v4113, %v4112
    %v4168 = vpack.c.b16 %v4115, %v4114
    %v4169 = vpack.c.b16 %v4117, %v4116
    %v4170 = vpack.c.b16 %v4119, %v4118
    %v4171 = vpack.c.b16 %v4121, %v4120
    %v4172 = vpack.c.b16 %v4123, %v4122
    %v4173 = vpack.c.b16 %v4125, %v4124
    %v4174 = vpack.c.b16 %v4127, %v4126
    %v4175 = vpack.c.b16 %v4129, %v4128
    %v4176 = vpack.c.b16 %v4131, %v4130
    %v4177 = vpack.c.b16 %v4133, %v4132
    %v4178 = vpack.c.b16 %v4135, %v4134
    %v4179 = vpack.c.b16 %v4137, %v4136
    %v4180 = vpack.c.b16 %v4139, %v4138
    %v4181 = vpack.c.b16 %v4141, %v4140
    %v4182 = vpack.c.b16 %v4143, %v4142
    %v4183 = vpack.c.b16 %v4145, %v4144
    %v4184 = vpack.c.b16 %v4147, %v4146
    %v4185 = vpack.c.b16 %v4149, %v4148
    %v4186 = vpack.c.b16 %v4151, %v4150
    %v4187 = vpack.c.b16 %v4153, %v4152
    %v4188 = vpack.c.b16 %v4155, %v4154
    %v4189 = vpack.c.b16 %v4157, %v4156
    %4222 = vmatprep.subr.bf16.mxu0 0
    %4223 = vmatpush1.bf16.msra.mxu0 %v4158
    %4224 = vmatprep.subr.bf16.mxu0 0
    %4225 = vmatpush1.bf16.msra.mxu0 %v4159
    %4226 = vmatprep.subr.bf16.mxu0 0
    %4227 = vmatpush1.bf16.msra.mxu0 %v4160
    %4228 = vmatprep.subr.bf16.mxu0 0
    %4229 = vmatpush1.bf16.msra.mxu0 %v4161
    %4230 = vmatprep.subr.bf16.mxu0 0
    %4231 = vmatpush1.bf16.msra.mxu0 %v4162
    %4232 = vmatprep.subr.bf16.mxu0 0
    %4233 = vmatpush1.bf16.msra.mxu0 %v4163
    %4234 = vmatprep.subr.bf16.mxu0 0
    %4235 = vmatpush1.bf16.msra.mxu0 %v4164
    %4236 = vmatprep.subr.bf16.mxu0 0
    %4237 = vmatpush1.bf16.msra.mxu0 %v4165
    %4238 = vmatprep.subr.bf16.mxu0 0
    %4239 = vmatpush1.bf16.msra.mxu0 %v4166
    %4240 = vmatprep.subr.bf16.mxu0 0
    %4241 = vmatpush1.bf16.msra.mxu0 %v4167
    %4242 = vmatprep.subr.bf16.mxu0 0
    %4243 = vmatpush1.bf16.msra.mxu0 %v4168
    %4244 = vmatprep.subr.bf16.mxu0 0
    %4245 = vmatpush1.bf16.msra.mxu0 %v4169
    %4246 = vmatprep.subr.bf16.mxu0 0
    %4247 = vmatpush1.bf16.msra.mxu0 %v4170
    %4248 = vmatprep.subr.bf16.mxu0 0
    %4249 = vmatpush1.bf16.msra.mxu0 %v4171
    %4250 = vmatprep.subr.bf16.mxu0 0
    %4251 = vmatpush1.bf16.msra.mxu0 %v4172
    %4252 = vmatprep.subr.bf16.mxu0 0
    %4253 = vmatpush1.bf16.msra.mxu0 %v4173
    %4254 = vmatprep.mubr.bf16.mxu0 %v3956
    %4255 = vmatmul.mubr.bf16.gmra.mrb[0].mxu0 %v3955
    %v4256 = vpop.f32.mrb[0].mxu0
    %v4257 = vadd.f32 %v4028, %v4256
    %v4258 = vpop.f32.mrb[0].mxu0
    %v4259 = vpop.f32.mrb[0].mxu0
    %v4260 = vpop.f32.mrb[0].mxu0
    %4261 = vdwg.mxu0
    %4262 = vmatprep.subr.bf16.mxu0 0
    %4263 = vmatpush1.bf16.msra.mxu0 %v4174
    %4264 = vmatprep.subr.bf16.mxu0 0
    %4265 = vmatpush1.bf16.msra.mxu0 %v4175
    %4266 = vmatprep.subr.bf16.mxu0 0
    %4267 = vmatpush1.bf16.msra.mxu0 %v4176
    %4268 = vmatprep.subr.bf16.mxu0 0
    %4269 = vmatpush1.bf16.msra.mxu0 %v4177
    %4270 = vmatprep.subr.bf16.mxu0 0
    %4271 = vmatpush1.bf16.msra.mxu0 %v4178
    %4272 = vmatprep.subr.bf16.mxu0 0
    %4273 = vmatpush1.bf16.msra.mxu0 %v4179
    %4274 = vmatprep.subr.bf16.mxu0 0
    %4275 = vmatpush1.bf16.msra.mxu0 %v4180
    %4276 = vmatprep.subr.bf16.mxu0 0
    %4277 = vmatpush1.bf16.msra.mxu0 %v4181
    %4278 = vmatprep.subr.bf16.mxu0 0
    %4279 = vmatpush1.bf16.msra.mxu0 %v4182
    %4280 = vmatprep.subr.bf16.mxu0 0
    %4281 = vmatpush1.bf16.msra.mxu0 %v4183
    %4282 = vmatprep.subr.bf16.mxu0 0
    %4283 = vmatpush1.bf16.msra.mxu0 %v4184
    %4284 = vmatprep.subr.bf16.mxu0 0
    %4285 = vmatpush1.bf16.msra.mxu0 %v4185
    %4286 = vmatprep.subr.bf16.mxu0 0
    %4287 = vmatpush1.bf16.msra.mxu0 %v4186
    %4288 = vmatprep.subr.bf16.mxu0 0
    %4289 = vmatpush1.bf16.msra.mxu0 %v4187
    %4290 = vmatprep.subr.bf16.mxu0 0
    %4291 = vmatpush1.bf16.msra.mxu0 %v4188
    %4292 = vmatprep.subr.bf16.mxu0 0
    %4293 = vmatpush1.bf16.msra.mxu0 %v4189
    %4294 = vmatprep.mubr.bf16.mxu0 %v3958
    %4295 = vmatmul.mubr.bf16.gmra.mrb[0].mxu0 %v3957
    %v4296 = vpop.f32.mrb[0].mxu0
    %v4297 = vadd.f32 %v4257, %v4296
    %v4298 = vpop.f32.mrb[0].mxu0
    %v4299 = vpop.f32.mrb[0].mxu0
    %v4300 = vpop.f32.mrb[0].mxu0
    %4301 = vdwg.mxu0
    %v4302 = vtanh.pop %v4297
    %4303 = vst [vmem:[#allocation11] sm:$0x3] %v4302
    // Predicated region
    $region50: #{tpu_custom_call.1} parent=1 // pred_check
      _
    $region51: #{tpu_custom_call.1} parent=1 // pred_check_branch
      %4305 = sbr.rel (0) target = $region53
    $region52: #{tpu_custom_call.1} parent=1 // pred_region
      %s4307 = ssub.s32 32, 32
      %4308 = vsyncadd [#allocation4], %s4307
      %s4310 = sshll.u32 [#allocation11], 4
      %s4311 = int_to_ptr.vmem [resolvable:$true] %s4310
      %4313 = dma.vmem_to_hbm [thread:$0]  %s4311, 32, %s7, [#allocation4]
    $region53: #{tpu_custom_call.1} parent=1 // pred_fallthru
      _
    // Predicated region
    $region54: #{tpu_custom_call.1} parent=1 // pred_check
      _
    $region55: #{tpu_custom_call.1} parent=1 // pred_check_branch
      %4315 = sbr.rel (0) target = $region57
    $region56: #{tpu_custom_call.1} parent=1 // pred_region
      %4316 = dma.done [#allocation4], 32
    $region57: #{tpu_custom_call.1} parent=1 // pred_fallthru
      _
    %4317 = vsyncpa [#allocation3], 1
    %4318 = vsyncpa [#allocation6], 1
    %4319 = vsyncpa [#allocation9], 1
    %4320 = vsyncpa [#allocation4], 1

</llo_original>
